<compile_context>
chip_gen: v5e
topology: v5e:2x2
jax: 0.10.0
libtpu: 0.0.40
codegen_flags: <defaults>
</compile_context>

<pallas_src>
import jax
import jax.numpy as jnp
from jax.experimental import pallas as pl
from jax.experimental.pallas import tpu as pltpu

_LANE = 128   # lane tile (last dim)
_SUB = 8      # sublane tile (second-to-last dim)


def _ceil_to(x, m):
    return ((x + m - 1) // m) * m


def _pick_batch_block(B):
    """Return (padded batch, batch block).

    Blocks are made as large as possible (more MXU rows per matmul, fewer grid steps),
    capped at 256 rows.  Once the batch is big enough we keep >=2 blocks so
    dimension_semantics=("parallel",) can shard them across v7x's two TensorCores
    (no effect on v5e/v6e, which have a single TC).
    """
    Bp = _ceil_to(max(B, 1), _SUB)
    if Bp <= _SUB:
        return Bp, Bp
    BB = min(256, _ceil_to((Bp + 1) // 2, 16))   # 16-row granularity (bf16 sublane packing)
    Bp = _ceil_to(Bp, BB)
    return Bp, BB


def _decoder_kernel(h2_ref, h1_ref, e1_ref, x_ref,
                    w_attn_ref, w_hh_ref, w_fc_ref, vecs_ref, out_ref):
    f32 = jnp.float32
    bf16 = jnp.bfloat16
    Dp = h2_ref.shape[-1]        # padded hidden dim (multiple of 128)
    T = x_ref.shape[-1]          # decoder sequence length (static, small)
    Dg, G = w_hh_ref.shape       # GRU state width / packed gate width (see pack_params)
    Op = out_ref.shape[-1]       # padded output dim (multiple of 128)

    # ---------------- GlobalAttention (Luong "general") ----------------
    h2 = h2_ref[...]                                               # (BB, Dp) bf16
    # q = h2 @ W_in.T and oq = h2 @ W_oq.T fused into ONE MXU matmul (bf16 in, f32 acc).
    h2_lin = jnp.dot(h2, w_attn_ref[:, 0:2 * Dp],
                     preferred_element_type=f32)                   # (BB, 2Dp)
    q, oq = h2_lin[:, 0:Dp], h2_lin[:, Dp:2 * Dp]

    # scores / context: with M=1 a batched matmul degenerates into per-row MXU ops, so
    # run them on the VPU (multiply) + XLU (reduce) instead; these slots are otherwise
    # idle around the linears.  Upcast to f32 in-register for tight accumulation.
    h1 = h1_ref[...].astype(f32)                                   # (BB, S, Dp)
    e1 = e1_ref[...].astype(f32)                                   # (BB, S, Dp)
    scores = jnp.sum(q[:, None, :] * h1, axis=-1)                  # (BB, S)
    scores = scores - jnp.max(scores, axis=-1, keepdims=True)
    num = jnp.exp(scores)
    align = num * pl.reciprocal(jnp.sum(num, axis=-1, keepdims=True), approx=True)
    ctx = jnp.sum(align[:, :, None] * e1, axis=1)                  # (BB, Dp)

    oc = jnp.dot(ctx.astype(bf16), w_attn_ref[:, 2 * Dp:3 * Dp],
                 preferred_element_type=f32)                       # (BB, Dp)
    attn_h = jnp.tanh(oc + oq)                                     # (BB, Dp) == GRU h0

    # ---------------- GRU (num_layers=1, input_size=1), h0 = attn_h ----------------
    x = x_ref[...].astype(f32)                                     # (BB, T)
    w_ih = vecs_ref[0:1, 0:G]                                      # (1, G) f32, gate-packed
    b_ih = vecs_ref[1:2, 0:G]
    b_hh = vecs_ref[2:3, 0:G]
    w_hh = w_hh_ref[...]                                           # (Dg, G) bf16

    # Input-gate term is h-independent: compute it for ALL T steps in one op (hoists the
    # (1,G)->(BB,T,G) broadcasts out of the serial h->h chain).
    gx_all = x[:, :, None] * w_ih + b_ih                           # (BB, T, G)

    h = attn_h[:, 0:Dg]                                            # (BB, Dg) f32 state
    # TODO(synk): hold w_hh resident in the MXU across the T steps
    # (pltpu.matmul_push_rhs / matmul_acc_lhs / matmul_pop) to drop T-1 weight pushes.
    for t in range(T):                       # T static & tiny -> fully unrolled chain
        gx = gx_all[:, t]                                          # (BB, G)
        gh = jnp.dot(h.astype(bf16), w_hh, preferred_element_type=f32) + b_hh   # (BB, G)
        r = jax.nn.sigmoid(gx[:, 0:Dg] + gh[:, 0:Dg])
        z = jax.nn.sigmoid(gx[:, Dg:2 * Dg] + gh[:, Dg:2 * Dg])
        n = jnp.tanh(gx[:, 2 * Dg:3 * Dg] + r * gh[:, 2 * Dg:3 * Dg])
        h = (1.0 - z) * n + z * h                                  # (BB, Dg)

    # ------------- output linear on the final hidden (lane-dense Op-wide store) -------------
    out_ref[...] = (jnp.dot(h.astype(bf16), w_fc_ref[...], preferred_element_type=f32)
                    + vecs_ref[3:4, 0:Op])


def pack_params(params, dim, output_size):
    """Pre-transpose, gate-pack, pad and bf16-cast the DecoderRNN weights for the kernel."""
    D, O = dim, output_size
    Dp = _ceil_to(D, _LANE)
    Op = _ceil_to(O, _LANE)
    # GRU gate layout: when the three gates fit one 128-lane tile (3*D <= 128), pack them
    # contiguously (gate k at cols [k*D, (k+1)*D)) so the recurrence matmul is a single
    # MXU column pass; otherwise fall back to per-gate Dp padding.
    Dg = D if 3 * D <= _LANE else Dp
    G = _ceil_to(3 * Dg, _LANE)
    vec_w = max(G, Op)

    def pad_f32(a, r, c):
        a = jnp.asarray(a, jnp.float32)
        return jnp.pad(a, ((0, r - a.shape[0]), (0, c - a.shape[1])))

    def pack_gates(a):
        # a: (rows, 3*D), gate order [r|z|n] -> (rows, G), gate k at cols [k*Dg, k*Dg + D)
        a = jnp.asarray(a, jnp.float32)
        out = jnp.zeros((a.shape[0], G), jnp.float32)
        for k in range(3):
            out = out.at[:, k * Dg:k * Dg + D].set(a[:, k * D:(k + 1) * D])
        return out

    # GlobalAttention linears stored (in, out) and fused into one buffer:
    # [W_in.T | W_oq.T | W_oc.T] -> the kernel does x @ W with no `.T` and fuses the two
    # h2 linears into a single matmul.
    w_attn = jnp.concatenate([pad_f32(params["w_in"].T, Dp, Dp),
                              pad_f32(params["w_oq"].T, Dp, Dp),
                              pad_f32(params["w_oc"].T, Dp, Dp)],
                             axis=1).astype(jnp.bfloat16)              # (Dp, 3Dp)

    # GRU weight_hh: torch (3D, D) -> (D, 3D) -> gate-pack cols -> pad rows D -> Dg.
    w_hh = jnp.pad(pack_gates(params["w_hh"].T),
                   ((0, Dg - D), (0, 0))).astype(jnp.bfloat16)         # (Dg, G)

    # Output linear: (O, D) -> (D, O) -> pad to (Dg, Op).
    w_fc = jnp.pad(jnp.asarray(params["w_fc"].T, jnp.float32),
                   ((0, Dg - D), (0, Op - O))).astype(jnp.bfloat16)    # (Dg, Op)

    # Small vectors packed into ONE f32 buffer (single DMA): [w_ih; b_ih; b_hh; b_fc].
    vecs = jnp.zeros((4, vec_w), jnp.float32)
    vecs = vecs.at[0, 0:G].set(pack_gates(params["w_ih"])[0])
    vecs = vecs.at[1, 0:G].set(pack_gates(params["b_ih"])[0])
    vecs = vecs.at[2, 0:G].set(pack_gates(params["b_hh"])[0])
    vecs = vecs.at[3, 0:O].set(jnp.asarray(params["b_fc"], jnp.float32)[0])

    return {"w_attn": w_attn, "w_hh": w_hh, "w_fc": w_fc, "vecs": vecs,
            "D": D, "O": O, "Dp": Dp, "Op": Op, "Dg": Dg, "G": G}


def decoder_rnn_forward(packed, ii, inp, hidden, h1, h2, e1output):
    # `ii` and `hidden` are unused in the PyTorch forward (the GRU initial state is the
    # attention output, not `hidden`); kept in the signature for parity.
    del ii, hidden
    B, T, _ = inp.shape
    S = h1.shape[1]
    D, O = packed["D"], packed["O"]
    Dp, Op, Dg, G = packed["Dp"], packed["Op"], packed["Dg"], packed["G"]
    vec_w = packed["vecs"].shape[1]

    Bp, BB = _pick_batch_block(B)

    def padto(a, shape, dt):
        a = a.astype(dt)
        return jnp.pad(a, [(0, s - d) for d, s in zip(a.shape, shape)])

    # bf16 storage for the large activations halves HBM->VMEM DMA and feeds the MXU's
    # native bf16 path; accumulation and elementwise math stay f32 inside the kernel.
    h2q = padto(h2[:, 0, :], (Bp, Dp), jnp.bfloat16)              # (Bp, Dp)
    h1p = padto(h1, (Bp, S, Dp), jnp.bfloat16)                    # (Bp, S, Dp)
    e1p = padto(e1output, (Bp, S, Dp), jnp.bfloat16)              # (Bp, S, Dp)
    xp = padto(inp[:, :, 0], (Bp, T), jnp.float32)                # (Bp, T)

    # VMEM budget: double-buffered activation blocks + weight tiles + generous margin for
    # in-kernel f32 temporaries / spills; never below 32 MiB.
    act_blk = BB * Dp * 2 + 2 * BB * S * Dp * 2 + BB * T * 4 + BB * Op * 4
    wts = Dp * 3 * Dp * 2 + Dg * G * 2 + Dg * Op * 2 + 4 * vec_w * 4
    vmem_limit = int(max(32 << 20, 4 * act_blk + 2 * wts + (8 << 20)))

    # TODO(synk): on v7x at large D, add pipeline_mode=pl.Buffered(1) to the constant-index
    # weight specs so their tiles are not duplicated inside the 64 MiB VMEM.
    out = pl.pallas_call(
        _decoder_kernel,
        out_shape=jax.ShapeDtypeStruct((Bp, Op), jnp.float32),
        grid=(Bp // BB,),
        in_specs=[
            pl.BlockSpec((BB, Dp), lambda i: (i, 0)),             # h2
            pl.BlockSpec((BB, S, Dp), lambda i: (i, 0, 0)),       # h1
            pl.BlockSpec((BB, S, Dp), lambda i: (i, 0, 0)),       # e1output
            pl.BlockSpec((BB, T), lambda i: (i, 0)),              # x
            pl.BlockSpec((Dp, 3 * Dp), lambda i: (0, 0)),         # [W_in.T | W_oq.T | W_oc.T]
            pl.BlockSpec((Dg, G), lambda i: (0, 0)),              # GRU w_hh (gate-packed)
            pl.BlockSpec((Dg, Op), lambda i: (0, 0)),             # out linear (pre-transposed)
            pl.BlockSpec((4, vec_w), lambda i: (0, 0)),           # w_ih/b_ih/b_hh/b_fc (f32)
        ],
        out_specs=pl.BlockSpec((BB, Op), lambda i: (i, 0)),
        compiler_params=pltpu.CompilerParams(
            dimension_semantics=("parallel",),                    # shard batch blocks (v7x)
            vmem_limit_bytes=vmem_limit),
    )(h2q, h1p, e1p, xp,
      packed["w_attn"], packed["w_hh"], packed["w_fc"], packed["vecs"])

    return out[:B, :O][None]              # (1, B, O), mirrors self.out(hidden[-1:, :, :])


def decoder_rnn_reference(params, ii, inp, hidden, h1, h2, e1output):
    """Pure-JAX f32 reference (Luong 'general' attention + 1-layer GRU + linear)."""
    del ii, hidden
    x = inp[:, :, 0]
    h2q = h2[:, 0, :]
    D = h2q.shape[1]
    T = x.shape[1]

    q = h2q @ params["w_in"].T
    scores = jnp.sum(q[:, None, :] * h1, axis=-1)
    scores = scores - jnp.max(scores, axis=-1, keepdims=True)
    num = jnp.exp(scores)
    align = num / jnp.sum(num, axis=-1, keepdims=True)
    ctx = jnp.sum(align[:, :, None] * e1output, axis=1)
    h = jnp.tanh(ctx @ params["w_oc"].T + h2q @ params["w_oq"].T)

    for t in range(T):
        gx = x[:, t:t + 1] * params["w_ih"] + params["b_ih"]
        gh = h @ params["w_hh"].T + params["b_hh"]
        r = jax.nn.sigmoid(gx[:, 0:D] + gh[:, 0:D])
        z = jax.nn.sigmoid(gx[:, D:2 * D] + gh[:, D:2 * D])
        n = jnp.tanh(gx[:, 2 * D:3 * D] + r * gh[:, 2 * D:3 * D])
        h = (1.0 - z) * n + z * h
    return (h @ params["w_fc"].T + params["b_fc"])[None]


def make_params(key, dim, output_size):
    ks = jax.random.split(key, 9)
    s = 0.1
    return {
        # GlobalAttention: linear_in (D,D, no bias); linear_out (D, 2D, no bias) split into
        # context / query halves so the kernel avoids an in-VMEM concat.
        "w_in": s * jax.random.normal(ks[0], (dim, dim), jnp.float32),
        "w_oc": s * jax.random.normal(ks[1], (dim, dim), jnp.float32),
        "w_oq": s * jax.random.normal(ks[2], (dim, dim), jnp.float32),
        # GRU(input_size=1, hidden=dim): weight_ih (3D,1) stored transposed as (1,3D).
        "w_ih": s * jax.random.normal(ks[3], (1, 3 * dim), jnp.float32),
        "b_ih": s * jax.random.normal(ks[4], (1, 3 * dim), jnp.float32),
        "w_hh": s * jax.random.normal(ks[5], (3 * dim, dim), jnp.float32),
        "b_hh": s * jax.random.normal(ks[6], (1, 3 * dim), jnp.float32),
        # out = nn.Linear(dim, output_size)
        "w_fc": s * jax.random.normal(ks[7], (output_size, dim), jnp.float32),
        "b_fc": s * jax.random.normal(ks[8], (1, output_size), jnp.float32),
    }


if __name__ == "__main__":
    B, S, T, D, O = 4, 8, 8, 32, 1     # batch, src len, decoder seq len, args.dim, output_size

    key = jax.random.PRNGKey(0)
    kp, k1, k2, k3, k4 = jax.random.split(key, 5)
    params = make_params(kp, D, O)
    packed = pack_params(params, D, O)   # one-time host-side transpose / pad / pack / bf16

    inp = jax.random.normal(k1, (B, T, 1), jnp.float32)       # `input`
    h1 = jax.random.normal(k2, (B, S, D), jnp.float32)
    h2 = jax.random.normal(k3, (B, 1, D), jnp.float32)
    e1output = jax.random.normal(k4, (B, S, D), jnp.float32)
    hidden = jnp.zeros((1, B, D), jnp.float32)                 # unused (as in torch forward)
    ii = 0                                                     # unused (as in torch forward)

    out = jax.block_until_ready(
        decoder_rnn_forward(packed, ii, inp, hidden, h1, h2, e1output))
    ref = decoder_rnn_reference(params, ii, inp, hidden, h1, h2, e1output)

    assert out.shape == (1, B, O), out.shape
    # Kernel stores activations/weights in bf16 (f32 accumulate), so compare against the
    # f32 reference with a bf16-appropriate tolerance.
    assert jnp.allclose(out, ref, atol=5e-2, rtol=5e-2), (out, ref)
    print("KERNEL_OK")
</pallas_src>

<mosaic_0001>
module attributes {stable_mosaic.version = 11 : i64} {
  func.func @_decoder_kernel(%arg0: i32, %arg1: memref<8x128xbf16, #tpu.memory_space<vmem>>, %arg2: memref<8x8x128xbf16, #tpu.memory_space<vmem>>, %arg3: memref<8x8x128xbf16, #tpu.memory_space<vmem>>, %arg4: memref<8x8xf32, #tpu.memory_space<vmem>>, %arg5: memref<128x384xbf16, #tpu.memory_space<vmem>>, %arg6: memref<32x128xbf16, #tpu.memory_space<vmem>>, %arg7: memref<32x128xbf16, #tpu.memory_space<vmem>>, %arg8: memref<4x128xf32, #tpu.memory_space<vmem>>, %arg9: memref<8x128xf32, #tpu.memory_space<vmem>>) attributes {dimension_semantics = [#tpu.dimension_semantics<parallel>], iteration_bounds = array<i64: 1>, scalar_prefetch = 0 : i64, scratch_operands = 0 : i64, tpu.core_type = #tpu.core_type<tc>, window_params = [{transform_indices = @transform_0, window_bounds = array<i64: 8, 128>}, {transform_indices = @transform_1, window_bounds = array<i64: 8, 8, 128>}, {transform_indices = @transform_2, window_bounds = array<i64: 8, 8, 128>}, {transform_indices = @transform_3, window_bounds = array<i64: 8, 8>}, {pipeline_mode = #tpu.pipeline_mode<synchronous>, transform_indices = @transform_4, window_bounds = array<i64: 128, 384>}, {pipeline_mode = #tpu.pipeline_mode<synchronous>, transform_indices = @transform_5, window_bounds = array<i64: 32, 128>}, {pipeline_mode = #tpu.pipeline_mode<synchronous>, transform_indices = @transform_6, window_bounds = array<i64: 32, 128>}, {pipeline_mode = #tpu.pipeline_mode<synchronous>, transform_indices = @transform_7, window_bounds = array<i64: 4, 128>}, {transform_indices = @transform_8, window_bounds = array<i64: 8, 128>}]} {
    %c0 = arith.constant 0 : index
    %c0_0 = arith.constant 0 : index
    %0 = vector.load %arg1[%c0, %c0_0] : memref<8x128xbf16, #tpu.memory_space<vmem>>, vector<8x128xbf16>
    %c0_1 = arith.constant 0 : index
    %c0_2 = arith.constant 0 : index
    %1 = vector.load %arg5[%c0_1, %c0_2] : memref<128x384xbf16, #tpu.memory_space<vmem>>, vector<128x256xbf16>
    %cst = arith.constant dense<0.000000e+00> : vector<8x256xf32>
    %2 = tpu.matmul %0, %1, %cst {dimension_numbers = #tpu.dot_dimension_numbers<[1], [0], [0], [1], [0, 0, 1, 1], [], []>} : vector<8x128xbf16>, vector<128x256xbf16>, vector<8x256xf32> -> vector<8x256xf32>
    %3 = vector.extract_strided_slice %2 {offsets = [0, 0], sizes = [8, 128], strides = [1, 1]} : vector<8x256xf32> to vector<8x128xf32>
    %4 = vector.extract_strided_slice %2 {offsets = [0, 128], sizes = [8, 128], strides = [1, 1]} : vector<8x256xf32> to vector<8x128xf32>
    %c0_3 = arith.constant 0 : index
    %c0_4 = arith.constant 0 : index
    %c0_5 = arith.constant 0 : index
    %5 = vector.load %arg2[%c0_3, %c0_4, %c0_5] : memref<8x8x128xbf16, #tpu.memory_space<vmem>>, vector<8x8x128xbf16>
    %6 = arith.extf %5 : vector<8x8x128xbf16> to vector<8x8x128xf32>
    %c0_6 = arith.constant 0 : index
    %c0_7 = arith.constant 0 : index
    %c0_8 = arith.constant 0 : index
    %7 = vector.load %arg3[%c0_6, %c0_7, %c0_8] : memref<8x8x128xbf16, #tpu.memory_space<vmem>>, vector<8x8x128xbf16>
    %8 = arith.extf %7 : vector<8x8x128xbf16> to vector<8x8x128xf32>
    %9 = vector.shape_cast %3 : vector<8x128xf32> to vector<8x1x128xf32>
    %10 = vector.broadcast %9 : vector<8x1x128xf32> to vector<8x8x128xf32>
    %11 = arith.mulf %10, %6 : vector<8x8x128xf32>
    %cst_9 = arith.constant dense<0.000000e+00> : vector<8x8xf32>
    %12 = vector.multi_reduction <add>, %11, %cst_9 [2] : vector<8x8x128xf32> to vector<8x8xf32>
    %cst_10 = arith.constant dense<0xFF800000> : vector<8xf32>
    %13 = vector.multi_reduction <maximumf>, %12, %cst_10 [1] : vector<8x8xf32> to vector<8xf32>
    %14 = vector.shape_cast %13 : vector<8xf32> to vector<8x1xf32>
    %15 = vector.broadcast %14 : vector<8x1xf32> to vector<8x8xf32>
    %16 = arith.subf %12, %15 : vector<8x8xf32>
    %17 = math.exp %16 : vector<8x8xf32>
    %cst_11 = arith.constant dense<0.000000e+00> : vector<8xf32>
    %18 = vector.multi_reduction <add>, %17, %cst_11 [1] : vector<8x8xf32> to vector<8xf32>
    %19 = vector.shape_cast %18 : vector<8xf32> to vector<8x1xf32>
    %20 = tpu.reciprocal %19 {approx = true} : vector<8x1xf32> -> vector<8x1xf32>
    %21 = vector.broadcast %20 : vector<8x1xf32> to vector<8x8xf32>
    %22 = arith.mulf %17, %21 : vector<8x8xf32>
    %23 = vector.shape_cast %22 : vector<8x8xf32> to vector<8x8x1xf32>
    %24 = vector.broadcast %23 : vector<8x8x1xf32> to vector<8x8x128xf32>
    %25 = arith.mulf %24, %8 : vector<8x8x128xf32>
    %cst_12 = arith.constant dense<0.000000e+00> : vector<8x128xf32>
    %26 = vector.multi_reduction <add>, %25, %cst_12 [1] : vector<8x8x128xf32> to vector<8x128xf32>
    %27 = arith.truncf %26 : vector<8x128xf32> to vector<8x128xbf16>
    %c0_13 = arith.constant 0 : index
    %c256 = arith.constant 256 : index
    %28 = vector.load %arg5[%c0_13, %c256] : memref<128x384xbf16, #tpu.memory_space<vmem>>, vector<128x128xbf16>
    %cst_14 = arith.constant dense<0.000000e+00> : vector<8x128xf32>
    %29 = tpu.matmul %27, %28, %cst_14 {dimension_numbers = #tpu.dot_dimension_numbers<[1], [0], [0], [1], [0, 0, 1, 1], [], []>} : vector<8x128xbf16>, vector<128x128xbf16>, vector<8x128xf32> -> vector<8x128xf32>
    %30 = arith.addf %29, %4 : vector<8x128xf32>
    %31 = math.tanh %30 : vector<8x128xf32>
    %c0_15 = arith.constant 0 : index
    %c0_16 = arith.constant 0 : index
    %32 = vector.load %arg4[%c0_15, %c0_16] : memref<8x8xf32, #tpu.memory_space<vmem>>, vector<8x8xf32>
    %c0_17 = arith.constant 0 : index
    %c0_18 = arith.constant 0 : index
    %33 = vector.load %arg8[%c0_17, %c0_18] : memref<4x128xf32, #tpu.memory_space<vmem>>, vector<1x128xf32>
    %c1 = arith.constant 1 : index
    %c0_19 = arith.constant 0 : index
    %34 = vector.load %arg8[%c1, %c0_19] : memref<4x128xf32, #tpu.memory_space<vmem>>, vector<1x128xf32>
    %c2 = arith.constant 2 : index
    %c0_20 = arith.constant 0 : index
    %35 = vector.load %arg8[%c2, %c0_20] : memref<4x128xf32, #tpu.memory_space<vmem>>, vector<1x128xf32>
    %c0_21 = arith.constant 0 : index
    %c0_22 = arith.constant 0 : index
    %36 = vector.load %arg6[%c0_21, %c0_22] : memref<32x128xbf16, #tpu.memory_space<vmem>>, vector<32x128xbf16>
    %37 = vector.shape_cast %32 : vector<8x8xf32> to vector<8x8x1xf32>
    %38 = vector.shape_cast %33 : vector<1x128xf32> to vector<1x1x128xf32>
    %39 = vector.broadcast %37 : vector<8x8x1xf32> to vector<8x8x128xf32>
    %40 = vector.broadcast %38 : vector<1x1x128xf32> to vector<8x8x128xf32>
    %41 = arith.mulf %39, %40 : vector<8x8x128xf32>
    %42 = vector.shape_cast %34 : vector<1x128xf32> to vector<1x1x128xf32>
    %43 = vector.broadcast %42 : vector<1x1x128xf32> to vector<8x8x128xf32>
    %44 = arith.addf %41, %43 : vector<8x8x128xf32>
    %45 = vector.extract_strided_slice %31 {offsets = [0, 0], sizes = [8, 32], strides = [1, 1]} : vector<8x128xf32> to vector<8x32xf32>
    %46 = vector.extract_strided_slice %44 {offsets = [0, 0, 0], sizes = [8, 1, 128], strides = [1, 1, 1]} : vector<8x8x128xf32> to vector<8x1x128xf32>
    %47 = vector.shape_cast %46 : vector<8x1x128xf32> to vector<8x128xf32>
    %48 = arith.truncf %45 : vector<8x32xf32> to vector<8x32xbf16>
    %cst_23 = arith.constant dense<0.000000e+00> : vector<8x128xf32>
    %49 = tpu.matmul %48, %36, %cst_23 {dimension_numbers = #tpu.dot_dimension_numbers<[1], [0], [0], [1], [0, 0, 1, 1], [], []>} : vector<8x32xbf16>, vector<32x128xbf16>, vector<8x128xf32> -> vector<8x128xf32>
    %50 = vector.broadcast %35 : vector<1x128xf32> to vector<8x128xf32>
    %51 = arith.addf %49, %50 : vector<8x128xf32>
    %52 = vector.extract_strided_slice %47 {offsets = [0, 0], sizes = [8, 32], strides = [1, 1]} : vector<8x128xf32> to vector<8x32xf32>
    %53 = vector.extract_strided_slice %51 {offsets = [0, 0], sizes = [8, 32], strides = [1, 1]} : vector<8x128xf32> to vector<8x32xf32>
    %54 = arith.addf %52, %53 : vector<8x32xf32>
    %55 = arith.negf %54 : vector<8x32xf32>
    %56 = math.exp %55 : vector<8x32xf32>
    %cst_24 = arith.constant 1.000000e+00 : f32
    %57 = vector.broadcast %cst_24 : f32 to vector<8x32xf32>
    %58 = arith.addf %57, %56 : vector<8x32xf32>
    %59 = arith.divf %57, %58 : vector<8x32xf32>
    %60 = vector.extract_strided_slice %47 {offsets = [0, 32], sizes = [8, 32], strides = [1, 1]} : vector<8x128xf32> to vector<8x32xf32>
    %61 = vector.extract_strided_slice %51 {offsets = [0, 32], sizes = [8, 32], strides = [1, 1]} : vector<8x128xf32> to vector<8x32xf32>
    %62 = arith.addf %60, %61 : vector<8x32xf32>
    %63 = arith.negf %62 : vector<8x32xf32>
    %64 = math.exp %63 : vector<8x32xf32>
    %cst_25 = arith.constant 1.000000e+00 : f32
    %65 = vector.broadcast %cst_25 : f32 to vector<8x32xf32>
    %66 = arith.addf %65, %64 : vector<8x32xf32>
    %67 = arith.divf %65, %66 : vector<8x32xf32>
    %68 = vector.extract_strided_slice %47 {offsets = [0, 64], sizes = [8, 32], strides = [1, 1]} : vector<8x128xf32> to vector<8x32xf32>
    %69 = vector.extract_strided_slice %51 {offsets = [0, 64], sizes = [8, 32], strides = [1, 1]} : vector<8x128xf32> to vector<8x32xf32>
    %70 = arith.mulf %59, %69 : vector<8x32xf32>
    %71 = arith.addf %68, %70 : vector<8x32xf32>
    %72 = math.tanh %71 : vector<8x32xf32>
    %cst_26 = arith.constant 1.000000e+00 : f32
    %73 = vector.broadcast %cst_26 : f32 to vector<8x32xf32>
    %74 = arith.subf %73, %67 : vector<8x32xf32>
    %75 = arith.mulf %74, %72 : vector<8x32xf32>
    %76 = arith.mulf %67, %45 : vector<8x32xf32>
    %77 = arith.addf %75, %76 : vector<8x32xf32>
    %78 = vector.extract_strided_slice %44 {offsets = [0, 1, 0], sizes = [8, 1, 128], strides = [1, 1, 1]} : vector<8x8x128xf32> to vector<8x1x128xf32>
    %79 = vector.shape_cast %78 : vector<8x1x128xf32> to vector<8x128xf32>
    %80 = arith.truncf %77 : vector<8x32xf32> to vector<8x32xbf16>
    %cst_27 = arith.constant dense<0.000000e+00> : vector<8x128xf32>
    %81 = tpu.matmul %80, %36, %cst_27 {dimension_numbers = #tpu.dot_dimension_numbers<[1], [0], [0], [1], [0, 0, 1, 1], [], []>} : vector<8x32xbf16>, vector<32x128xbf16>, vector<8x128xf32> -> vector<8x128xf32>
    %82 = vector.broadcast %35 : vector<1x128xf32> to vector<8x128xf32>
    %83 = arith.addf %81, %82 : vector<8x128xf32>
    %84 = vector.extract_strided_slice %79 {offsets = [0, 0], sizes = [8, 32], strides = [1, 1]} : vector<8x128xf32> to vector<8x32xf32>
    %85 = vector.extract_strided_slice %83 {offsets = [0, 0], sizes = [8, 32], strides = [1, 1]} : vector<8x128xf32> to vector<8x32xf32>
    %86 = arith.addf %84, %85 : vector<8x32xf32>
    %87 = arith.negf %86 : vector<8x32xf32>
    %88 = math.exp %87 : vector<8x32xf32>
    %cst_28 = arith.constant 1.000000e+00 : f32
    %89 = vector.broadcast %cst_28 : f32 to vector<8x32xf32>
    %90 = arith.addf %89, %88 : vector<8x32xf32>
    %91 = arith.divf %89, %90 : vector<8x32xf32>
    %92 = vector.extract_strided_slice %79 {offsets = [0, 32], sizes = [8, 32], strides = [1, 1]} : vector<8x128xf32> to vector<8x32xf32>
    %93 = vector.extract_strided_slice %83 {offsets = [0, 32], sizes = [8, 32], strides = [1, 1]} : vector<8x128xf32> to vector<8x32xf32>
    %94 = arith.addf %92, %93 : vector<8x32xf32>
    %95 = arith.negf %94 : vector<8x32xf32>
    %96 = math.exp %95 : vector<8x32xf32>
    %cst_29 = arith.constant 1.000000e+00 : f32
    %97 = vector.broadcast %cst_29 : f32 to vector<8x32xf32>
    %98 = arith.addf %97, %96 : vector<8x32xf32>
    %99 = arith.divf %97, %98 : vector<8x32xf32>
    %100 = vector.extract_strided_slice %79 {offsets = [0, 64], sizes = [8, 32], strides = [1, 1]} : vector<8x128xf32> to vector<8x32xf32>
    %101 = vector.extract_strided_slice %83 {offsets = [0, 64], sizes = [8, 32], strides = [1, 1]} : vector<8x128xf32> to vector<8x32xf32>
    %102 = arith.mulf %91, %101 : vector<8x32xf32>
    %103 = arith.addf %100, %102 : vector<8x32xf32>
    %104 = math.tanh %103 : vector<8x32xf32>
    %cst_30 = arith.constant 1.000000e+00 : f32
    %105 = vector.broadcast %cst_30 : f32 to vector<8x32xf32>
    %106 = arith.subf %105, %99 : vector<8x32xf32>
    %107 = arith.mulf %106, %104 : vector<8x32xf32>
    %108 = arith.mulf %99, %77 : vector<8x32xf32>
    %109 = arith.addf %107, %108 : vector<8x32xf32>
    %110 = vector.extract_strided_slice %44 {offsets = [0, 2, 0], sizes = [8, 1, 128], strides = [1, 1, 1]} : vector<8x8x128xf32> to vector<8x1x128xf32>
    %111 = vector.shape_cast %110 : vector<8x1x128xf32> to vector<8x128xf32>
    %112 = arith.truncf %109 : vector<8x32xf32> to vector<8x32xbf16>
    %cst_31 = arith.constant dense<0.000000e+00> : vector<8x128xf32>
    %113 = tpu.matmul %112, %36, %cst_31 {dimension_numbers = #tpu.dot_dimension_numbers<[1], [0], [0], [1], [0, 0, 1, 1], [], []>} : vector<8x32xbf16>, vector<32x128xbf16>, vector<8x128xf32> -> vector<8x128xf32>
    %114 = vector.broadcast %35 : vector<1x128xf32> to vector<8x128xf32>
    %115 = arith.addf %113, %114 : vector<8x128xf32>
    %116 = vector.extract_strided_slice %111 {offsets = [0, 0], sizes = [8, 32], strides = [1, 1]} : vector<8x128xf32> to vector<8x32xf32>
    %117 = vector.extract_strided_slice %115 {offsets = [0, 0], sizes = [8, 32], strides = [1, 1]} : vector<8x128xf32> to vector<8x32xf32>
    %118 = arith.addf %116, %117 : vector<8x32xf32>
    %119 = arith.negf %118 : vector<8x32xf32>
    %120 = math.exp %119 : vector<8x32xf32>
    %cst_32 = arith.constant 1.000000e+00 : f32
    %121 = vector.broadcast %cst_32 : f32 to vector<8x32xf32>
    %122 = arith.addf %121, %120 : vector<8x32xf32>
    %123 = arith.divf %121, %122 : vector<8x32xf32>
    %124 = vector.extract_strided_slice %111 {offsets = [0, 32], sizes = [8, 32], strides = [1, 1]} : vector<8x128xf32> to vector<8x32xf32>
    %125 = vector.extract_strided_slice %115 {offsets = [0, 32], sizes = [8, 32], strides = [1, 1]} : vector<8x128xf32> to vector<8x32xf32>
    %126 = arith.addf %124, %125 : vector<8x32xf32>
    %127 = arith.negf %126 : vector<8x32xf32>
    %128 = math.exp %127 : vector<8x32xf32>
    %cst_33 = arith.constant 1.000000e+00 : f32
    %129 = vector.broadcast %cst_33 : f32 to vector<8x32xf32>
    %130 = arith.addf %129, %128 : vector<8x32xf32>
    %131 = arith.divf %129, %130 : vector<8x32xf32>
    %132 = vector.extract_strided_slice %111 {offsets = [0, 64], sizes = [8, 32], strides = [1, 1]} : vector<8x128xf32> to vector<8x32xf32>
    %133 = vector.extract_strided_slice %115 {offsets = [0, 64], sizes = [8, 32], strides = [1, 1]} : vector<8x128xf32> to vector<8x32xf32>
    %134 = arith.mulf %123, %133 : vector<8x32xf32>
    %135 = arith.addf %132, %134 : vector<8x32xf32>
    %136 = math.tanh %135 : vector<8x32xf32>
    %cst_34 = arith.constant 1.000000e+00 : f32
    %137 = vector.broadcast %cst_34 : f32 to vector<8x32xf32>
    %138 = arith.subf %137, %131 : vector<8x32xf32>
    %139 = arith.mulf %138, %136 : vector<8x32xf32>
    %140 = arith.mulf %131, %109 : vector<8x32xf32>
    %141 = arith.addf %139, %140 : vector<8x32xf32>
    %142 = vector.extract_strided_slice %44 {offsets = [0, 3, 0], sizes = [8, 1, 128], strides = [1, 1, 1]} : vector<8x8x128xf32> to vector<8x1x128xf32>
    %143 = vector.shape_cast %142 : vector<8x1x128xf32> to vector<8x128xf32>
    %144 = arith.truncf %141 : vector<8x32xf32> to vector<8x32xbf16>
    %cst_35 = arith.constant dense<0.000000e+00> : vector<8x128xf32>
    %145 = tpu.matmul %144, %36, %cst_35 {dimension_numbers = #tpu.dot_dimension_numbers<[1], [0], [0], [1], [0, 0, 1, 1], [], []>} : vector<8x32xbf16>, vector<32x128xbf16>, vector<8x128xf32> -> vector<8x128xf32>
    %146 = vector.broadcast %35 : vector<1x128xf32> to vector<8x128xf32>
    %147 = arith.addf %145, %146 : vector<8x128xf32>
    %148 = vector.extract_strided_slice %143 {offsets = [0, 0], sizes = [8, 32], strides = [1, 1]} : vector<8x128xf32> to vector<8x32xf32>
    %149 = vector.extract_strided_slice %147 {offsets = [0, 0], sizes = [8, 32], strides = [1, 1]} : vector<8x128xf32> to vector<8x32xf32>
    %150 = arith.addf %148, %149 : vector<8x32xf32>
    %151 = arith.negf %150 : vector<8x32xf32>
    %152 = math.exp %151 : vector<8x32xf32>
    %cst_36 = arith.constant 1.000000e+00 : f32
    %153 = vector.broadcast %cst_36 : f32 to vector<8x32xf32>
    %154 = arith.addf %153, %152 : vector<8x32xf32>
    %155 = arith.divf %153, %154 : vector<8x32xf32>
    %156 = vector.extract_strided_slice %143 {offsets = [0, 32], sizes = [8, 32], strides = [1, 1]} : vector<8x128xf32> to vector<8x32xf32>
    %157 = vector.extract_strided_slice %147 {offsets = [0, 32], sizes = [8, 32], strides = [1, 1]} : vector<8x128xf32> to vector<8x32xf32>
    %158 = arith.addf %156, %157 : vector<8x32xf32>
    %159 = arith.negf %158 : vector<8x32xf32>
    %160 = math.exp %159 : vector<8x32xf32>
    %cst_37 = arith.constant 1.000000e+00 : f32
    %161 = vector.broadcast %cst_37 : f32 to vector<8x32xf32>
    %162 = arith.addf %161, %160 : vector<8x32xf32>
    %163 = arith.divf %161, %162 : vector<8x32xf32>
    %164 = vector.extract_strided_slice %143 {offsets = [0, 64], sizes = [8, 32], strides = [1, 1]} : vector<8x128xf32> to vector<8x32xf32>
    %165 = vector.extract_strided_slice %147 {offsets = [0, 64], sizes = [8, 32], strides = [1, 1]} : vector<8x128xf32> to vector<8x32xf32>
    %166 = arith.mulf %155, %165 : vector<8x32xf32>
    %167 = arith.addf %164, %166 : vector<8x32xf32>
    %168 = math.tanh %167 : vector<8x32xf32>
    %cst_38 = arith.constant 1.000000e+00 : f32
    %169 = vector.broadcast %cst_38 : f32 to vector<8x32xf32>
    %170 = arith.subf %169, %163 : vector<8x32xf32>
    %171 = arith.mulf %170, %168 : vector<8x32xf32>
    %172 = arith.mulf %163, %141 : vector<8x32xf32>
    %173 = arith.addf %171, %172 : vector<8x32xf32>
    %174 = vector.extract_strided_slice %44 {offsets = [0, 4, 0], sizes = [8, 1, 128], strides = [1, 1, 1]} : vector<8x8x128xf32> to vector<8x1x128xf32>
    %175 = vector.shape_cast %174 : vector<8x1x128xf32> to vector<8x128xf32>
    %176 = arith.truncf %173 : vector<8x32xf32> to vector<8x32xbf16>
    %cst_39 = arith.constant dense<0.000000e+00> : vector<8x128xf32>
    %177 = tpu.matmul %176, %36, %cst_39 {dimension_numbers = #tpu.dot_dimension_numbers<[1], [0], [0], [1], [0, 0, 1, 1], [], []>} : vector<8x32xbf16>, vector<32x128xbf16>, vector<8x128xf32> -> vector<8x128xf32>
    %178 = vector.broadcast %35 : vector<1x128xf32> to vector<8x128xf32>
    %179 = arith.addf %177, %178 : vector<8x128xf32>
    %180 = vector.extract_strided_slice %175 {offsets = [0, 0], sizes = [8, 32], strides = [1, 1]} : vector<8x128xf32> to vector<8x32xf32>
    %181 = vector.extract_strided_slice %179 {offsets = [0, 0], sizes = [8, 32], strides = [1, 1]} : vector<8x128xf32> to vector<8x32xf32>
    %182 = arith.addf %180, %181 : vector<8x32xf32>
    %183 = arith.negf %182 : vector<8x32xf32>
    %184 = math.exp %183 : vector<8x32xf32>
    %cst_40 = arith.constant 1.000000e+00 : f32
    %185 = vector.broadcast %cst_40 : f32 to vector<8x32xf32>
    %186 = arith.addf %185, %184 : vector<8x32xf32>
    %187 = arith.divf %185, %186 : vector<8x32xf32>
    %188 = vector.extract_strided_slice %175 {offsets = [0, 32], sizes = [8, 32], strides = [1, 1]} : vector<8x128xf32> to vector<8x32xf32>
    %189 = vector.extract_strided_slice %179 {offsets = [0, 32], sizes = [8, 32], strides = [1, 1]} : vector<8x128xf32> to vector<8x32xf32>
    %190 = arith.addf %188, %189 : vector<8x32xf32>
    %191 = arith.negf %190 : vector<8x32xf32>
    %192 = math.exp %191 : vector<8x32xf32>
    %cst_41 = arith.constant 1.000000e+00 : f32
    %193 = vector.broadcast %cst_41 : f32 to vector<8x32xf32>
    %194 = arith.addf %193, %192 : vector<8x32xf32>
    %195 = arith.divf %193, %194 : vector<8x32xf32>
    %196 = vector.extract_strided_slice %175 {offsets = [0, 64], sizes = [8, 32], strides = [1, 1]} : vector<8x128xf32> to vector<8x32xf32>
    %197 = vector.extract_strided_slice %179 {offsets = [0, 64], sizes = [8, 32], strides = [1, 1]} : vector<8x128xf32> to vector<8x32xf32>
    %198 = arith.mulf %187, %197 : vector<8x32xf32>
    %199 = arith.addf %196, %198 : vector<8x32xf32>
    %200 = math.tanh %199 : vector<8x32xf32>
    %cst_42 = arith.constant 1.000000e+00 : f32
    %201 = vector.broadcast %cst_42 : f32 to vector<8x32xf32>
    %202 = arith.subf %201, %195 : vector<8x32xf32>
    %203 = arith.mulf %202, %200 : vector<8x32xf32>
    %204 = arith.mulf %195, %173 : vector<8x32xf32>
    %205 = arith.addf %203, %204 : vector<8x32xf32>
    %206 = vector.extract_strided_slice %44 {offsets = [0, 5, 0], sizes = [8, 1, 128], strides = [1, 1, 1]} : vector<8x8x128xf32> to vector<8x1x128xf32>
    %207 = vector.shape_cast %206 : vector<8x1x128xf32> to vector<8x128xf32>
    %208 = arith.truncf %205 : vector<8x32xf32> to vector<8x32xbf16>
    %cst_43 = arith.constant dense<0.000000e+00> : vector<8x128xf32>
    %209 = tpu.matmul %208, %36, %cst_43 {dimension_numbers = #tpu.dot_dimension_numbers<[1], [0], [0], [1], [0, 0, 1, 1], [], []>} : vector<8x32xbf16>, vector<32x128xbf16>, vector<8x128xf32> -> vector<8x128xf32>
    %210 = vector.broadcast %35 : vector<1x128xf32> to vector<8x128xf32>
    %211 = arith.addf %209, %210 : vector<8x128xf32>
    %212 = vector.extract_strided_slice %207 {offsets = [0, 0], sizes = [8, 32], strides = [1, 1]} : vector<8x128xf32> to vector<8x32xf32>
    %213 = vector.extract_strided_slice %211 {offsets = [0, 0], sizes = [8, 32], strides = [1, 1]} : vector<8x128xf32> to vector<8x32xf32>
    %214 = arith.addf %212, %213 : vector<8x32xf32>
    %215 = arith.negf %214 : vector<8x32xf32>
    %216 = math.exp %215 : vector<8x32xf32>
    %cst_44 = arith.constant 1.000000e+00 : f32
    %217 = vector.broadcast %cst_44 : f32 to vector<8x32xf32>
    %218 = arith.addf %217, %216 : vector<8x32xf32>
    %219 = arith.divf %217, %218 : vector<8x32xf32>
    %220 = vector.extract_strided_slice %207 {offsets = [0, 32], sizes = [8, 32], strides = [1, 1]} : vector<8x128xf32> to vector<8x32xf32>
    %221 = vector.extract_strided_slice %211 {offsets = [0, 32], sizes = [8, 32], strides = [1, 1]} : vector<8x128xf32> to vector<8x32xf32>
    %222 = arith.addf %220, %221 : vector<8x32xf32>
    %223 = arith.negf %222 : vector<8x32xf32>
    %224 = math.exp %223 : vector<8x32xf32>
    %cst_45 = arith.constant 1.000000e+00 : f32
    %225 = vector.broadcast %cst_45 : f32 to vector<8x32xf32>
    %226 = arith.addf %225, %224 : vector<8x32xf32>
    %227 = arith.divf %225, %226 : vector<8x32xf32>
    %228 = vector.extract_strided_slice %207 {offsets = [0, 64], sizes = [8, 32], strides = [1, 1]} : vector<8x128xf32> to vector<8x32xf32>
    %229 = vector.extract_strided_slice %211 {offsets = [0, 64], sizes = [8, 32], strides = [1, 1]} : vector<8x128xf32> to vector<8x32xf32>
    %230 = arith.mulf %219, %229 : vector<8x32xf32>
    %231 = arith.addf %228, %230 : vector<8x32xf32>
    %232 = math.tanh %231 : vector<8x32xf32>
    %cst_46 = arith.constant 1.000000e+00 : f32
    %233 = vector.broadcast %cst_46 : f32 to vector<8x32xf32>
    %234 = arith.subf %233, %227 : vector<8x32xf32>
    %235 = arith.mulf %234, %232 : vector<8x32xf32>
    %236 = arith.mulf %227, %205 : vector<8x32xf32>
    %237 = arith.addf %235, %236 : vector<8x32xf32>
    %238 = vector.extract_strided_slice %44 {offsets = [0, 6, 0], sizes = [8, 1, 128], strides = [1, 1, 1]} : vector<8x8x128xf32> to vector<8x1x128xf32>
    %239 = vector.shape_cast %238 : vector<8x1x128xf32> to vector<8x128xf32>
    %240 = arith.truncf %237 : vector<8x32xf32> to vector<8x32xbf16>
    %cst_47 = arith.constant dense<0.000000e+00> : vector<8x128xf32>
    %241 = tpu.matmul %240, %36, %cst_47 {dimension_numbers = #tpu.dot_dimension_numbers<[1], [0], [0], [1], [0, 0, 1, 1], [], []>} : vector<8x32xbf16>, vector<32x128xbf16>, vector<8x128xf32> -> vector<8x128xf32>
    %242 = vector.broadcast %35 : vector<1x128xf32> to vector<8x128xf32>
    %243 = arith.addf %241, %242 : vector<8x128xf32>
    %244 = vector.extract_strided_slice %239 {offsets = [0, 0], sizes = [8, 32], strides = [1, 1]} : vector<8x128xf32> to vector<8x32xf32>
    %245 = vector.extract_strided_slice %243 {offsets = [0, 0], sizes = [8, 32], strides = [1, 1]} : vector<8x128xf32> to vector<8x32xf32>
    %246 = arith.addf %244, %245 : vector<8x32xf32>
    %247 = arith.negf %246 : vector<8x32xf32>
    %248 = math.exp %247 : vector<8x32xf32>
    %cst_48 = arith.constant 1.000000e+00 : f32
    %249 = vector.broadcast %cst_48 : f32 to vector<8x32xf32>
    %250 = arith.addf %249, %248 : vector<8x32xf32>
    %251 = arith.divf %249, %250 : vector<8x32xf32>
    %252 = vector.extract_strided_slice %239 {offsets = [0, 32], sizes = [8, 32], strides = [1, 1]} : vector<8x128xf32> to vector<8x32xf32>
    %253 = vector.extract_strided_slice %243 {offsets = [0, 32], sizes = [8, 32], strides = [1, 1]} : vector<8x128xf32> to vector<8x32xf32>
    %254 = arith.addf %252, %253 : vector<8x32xf32>
    %255 = arith.negf %254 : vector<8x32xf32>
    %256 = math.exp %255 : vector<8x32xf32>
    %cst_49 = arith.constant 1.000000e+00 : f32
    %257 = vector.broadcast %cst_49 : f32 to vector<8x32xf32>
    %258 = arith.addf %257, %256 : vector<8x32xf32>
    %259 = arith.divf %257, %258 : vector<8x32xf32>
    %260 = vector.extract_strided_slice %239 {offsets = [0, 64], sizes = [8, 32], strides = [1, 1]} : vector<8x128xf32> to vector<8x32xf32>
    %261 = vector.extract_strided_slice %243 {offsets = [0, 64], sizes = [8, 32], strides = [1, 1]} : vector<8x128xf32> to vector<8x32xf32>
    %262 = arith.mulf %251, %261 : vector<8x32xf32>
    %263 = arith.addf %260, %262 : vector<8x32xf32>
    %264 = math.tanh %263 : vector<8x32xf32>
    %cst_50 = arith.constant 1.000000e+00 : f32
    %265 = vector.broadcast %cst_50 : f32 to vector<8x32xf32>
    %266 = arith.subf %265, %259 : vector<8x32xf32>
    %267 = arith.mulf %266, %264 : vector<8x32xf32>
    %268 = arith.mulf %259, %237 : vector<8x32xf32>
    %269 = arith.addf %267, %268 : vector<8x32xf32>
    %270 = vector.extract_strided_slice %44 {offsets = [0, 7, 0], sizes = [8, 1, 128], strides = [1, 1, 1]} : vector<8x8x128xf32> to vector<8x1x128xf32>
    %271 = vector.shape_cast %270 : vector<8x1x128xf32> to vector<8x128xf32>
    %272 = arith.truncf %269 : vector<8x32xf32> to vector<8x32xbf16>
    %cst_51 = arith.constant dense<0.000000e+00> : vector<8x128xf32>
    %273 = tpu.matmul %272, %36, %cst_51 {dimension_numbers = #tpu.dot_dimension_numbers<[1], [0], [0], [1], [0, 0, 1, 1], [], []>} : vector<8x32xbf16>, vector<32x128xbf16>, vector<8x128xf32> -> vector<8x128xf32>
    %274 = vector.broadcast %35 : vector<1x128xf32> to vector<8x128xf32>
    %275 = arith.addf %273, %274 : vector<8x128xf32>
    %276 = vector.extract_strided_slice %271 {offsets = [0, 0], sizes = [8, 32], strides = [1, 1]} : vector<8x128xf32> to vector<8x32xf32>
    %277 = vector.extract_strided_slice %275 {offsets = [0, 0], sizes = [8, 32], strides = [1, 1]} : vector<8x128xf32> to vector<8x32xf32>
    %278 = arith.addf %276, %277 : vector<8x32xf32>
    %279 = arith.negf %278 : vector<8x32xf32>
    %280 = math.exp %279 : vector<8x32xf32>
    %cst_52 = arith.constant 1.000000e+00 : f32
    %281 = vector.broadcast %cst_52 : f32 to vector<8x32xf32>
    %282 = arith.addf %281, %280 : vector<8x32xf32>
    %283 = arith.divf %281, %282 : vector<8x32xf32>
    %284 = vector.extract_strided_slice %271 {offsets = [0, 32], sizes = [8, 32], strides = [1, 1]} : vector<8x128xf32> to vector<8x32xf32>
    %285 = vector.extract_strided_slice %275 {offsets = [0, 32], sizes = [8, 32], strides = [1, 1]} : vector<8x128xf32> to vector<8x32xf32>
    %286 = arith.addf %284, %285 : vector<8x32xf32>
    %287 = arith.negf %286 : vector<8x32xf32>
    %288 = math.exp %287 : vector<8x32xf32>
    %cst_53 = arith.constant 1.000000e+00 : f32
    %289 = vector.broadcast %cst_53 : f32 to vector<8x32xf32>
    %290 = arith.addf %289, %288 : vector<8x32xf32>
    %291 = arith.divf %289, %290 : vector<8x32xf32>
    %292 = vector.extract_strided_slice %271 {offsets = [0, 64], sizes = [8, 32], strides = [1, 1]} : vector<8x128xf32> to vector<8x32xf32>
    %293 = vector.extract_strided_slice %275 {offsets = [0, 64], sizes = [8, 32], strides = [1, 1]} : vector<8x128xf32> to vector<8x32xf32>
    %294 = arith.mulf %283, %293 : vector<8x32xf32>
    %295 = arith.addf %292, %294 : vector<8x32xf32>
    %296 = math.tanh %295 : vector<8x32xf32>
    %cst_54 = arith.constant 1.000000e+00 : f32
    %297 = vector.broadcast %cst_54 : f32 to vector<8x32xf32>
    %298 = arith.subf %297, %291 : vector<8x32xf32>
    %299 = arith.mulf %298, %296 : vector<8x32xf32>
    %300 = arith.mulf %291, %269 : vector<8x32xf32>
    %301 = arith.addf %299, %300 : vector<8x32xf32>
    %302 = arith.truncf %301 : vector<8x32xf32> to vector<8x32xbf16>
    %c0_55 = arith.constant 0 : index
    %c0_56 = arith.constant 0 : index
    %303 = vector.load %arg7[%c0_55, %c0_56] : memref<32x128xbf16, #tpu.memory_space<vmem>>, vector<32x128xbf16>
    %cst_57 = arith.constant dense<0.000000e+00> : vector<8x128xf32>
    %304 = tpu.matmul %302, %303, %cst_57 {dimension_numbers = #tpu.dot_dimension_numbers<[1], [0], [0], [1], [0, 0, 1, 1], [], []>} : vector<8x32xbf16>, vector<32x128xbf16>, vector<8x128xf32> -> vector<8x128xf32>
    %c3 = arith.constant 3 : index
    %c0_58 = arith.constant 0 : index
    %305 = vector.load %arg8[%c3, %c0_58] : memref<4x128xf32, #tpu.memory_space<vmem>>, vector<1x128xf32>
    %306 = vector.broadcast %305 : vector<1x128xf32> to vector<8x128xf32>
    %307 = arith.addf %304, %306 : vector<8x128xf32>
    %c0_59 = arith.constant 0 : index
    %c0_60 = arith.constant 0 : index
    %308 = vector.load %arg9[%c0_59, %c0_60] : memref<8x128xf32, #tpu.memory_space<vmem>>, vector<8x128xf32>
    tpu.vector_store %arg9[%c0_59, %c0_60], %307 {strides = array<i32>} : memref<8x128xf32, #tpu.memory_space<vmem>>, vector<8x128xf32>,
    return
  }
  func.func @transform_0(%arg0: i32) -> (i32, i32) {
    %c0_i32 = arith.constant 0 : i32
    %c0_i32_0 = arith.constant 0 : i32
    return %arg0, %c0_i32 : i32, i32
  }
  func.func @transform_1(%arg0: i32) -> (i32, i32, i32) {
    %c0_i32 = arith.constant 0 : i32
    %c0_i32_0 = arith.constant 0 : i32
    %c0_i32_1 = arith.constant 0 : i32
    return %arg0, %c0_i32, %c0_i32_0 : i32, i32, i32
  }
  func.func @transform_2(%arg0: i32) -> (i32, i32, i32) {
    %c0_i32 = arith.constant 0 : i32
    %c0_i32_0 = arith.constant 0 : i32
    %c0_i32_1 = arith.constant 0 : i32
    return %arg0, %c0_i32, %c0_i32_0 : i32, i32, i32
  }
  func.func @transform_3(%arg0: i32) -> (i32, i32) {
    %c0_i32 = arith.constant 0 : i32
    %c0_i32_0 = arith.constant 0 : i32
    return %arg0, %c0_i32 : i32, i32
  }
  func.func @transform_4(%arg0: i32) -> (i32, i32) {
    %c0_i32 = arith.constant 0 : i32
    %c0_i32_0 = arith.constant 0 : i32
    %c0_i32_1 = arith.constant 0 : i32
    return %c0_i32, %c0_i32_0 : i32, i32
  }
  func.func @transform_5(%arg0: i32) -> (i32, i32) {
    %c0_i32 = arith.constant 0 : i32
    %c0_i32_0 = arith.constant 0 : i32
    %c0_i32_1 = arith.constant 0 : i32
    return %c0_i32, %c0_i32_0 : i32, i32
  }
  func.func @transform_6(%arg0: i32) -> (i32, i32) {
    %c0_i32 = arith.constant 0 : i32
    %c0_i32_0 = arith.constant 0 : i32
    %c0_i32_1 = arith.constant 0 : i32
    return %c0_i32, %c0_i32_0 : i32, i32
  }
  func.func @transform_7(%arg0: i32) -> (i32, i32) {
    %c0_i32 = arith.constant 0 : i32
    %c0_i32_0 = arith.constant 0 : i32
    %c0_i32_1 = arith.constant 0 : i32
    return %c0_i32, %c0_i32_0 : i32, i32
  }
  func.func @transform_8(%arg0: i32) -> (i32, i32) {
    %c0_i32 = arith.constant 0 : i32
    %c0_i32_0 = arith.constant 0 : i32
    return %arg0, %c0_i32 : i32, i32
  }
}

</mosaic_0001>

<llo_original>
// kernel: tpu_custom_call.1
$region0: #{tpu_custom_call.1}
  #allocation0 [shape = 'u32[]', space=smem, size = 0x4, offset = 0x4, fixed_abs, tag = 'smem constant byte address 0x4 - core index']
  #allocation1 [shape = 'u32[72,128]{1,0:T(1,128)}', space=vmem, size = 0x9000, scoped, tag = 'internal scratch']
  %s0 = inlined_call_operand.hbm [shape: bf16[8,128], index: 0, kind: input, shape index: {}]
  %s1 = inlined_call_operand.hbm [shape: bf16[8,8,128], index: 1, kind: input, shape index: {}]
  %s2 = inlined_call_operand.hbm [shape: bf16[8,8,128], index: 2, kind: input, shape index: {}]
  %s3 = inlined_call_operand.hbm [shape: f32[8,8], index: 3, kind: input, shape index: {}]
  %s4 = inlined_call_operand.hbm [shape: bf16[128,384], index: 4, kind: input, shape index: {}]
  %s5 = inlined_call_operand.hbm [shape: bf16[32,128], index: 5, kind: input, shape index: {}]
  %s6 = inlined_call_operand.hbm [shape: bf16[32,128], index: 6, kind: input, shape index: {}]
  %s7 = inlined_call_operand.vmem [shape: f32[4,128], index: 7, kind: input, shape index: {}]
  %s8 = inlined_call_operand.hbm [shape: f32[8,128], index: 8, kind: output, shape index: {}]
  %s9 = sld [smem:[#allocation0]]
  $region70: #{tpu_custom_call.1} parent=0
    _
  %s11 = ssub.s32 1, %s9
  %s12 = scalar_select 0, %s11, %s9
  $region1: #{tpu_custom_call.1} parent=0
    #allocation2 [shape = 'u8[2048]{0}', space=vmem, size = 0x800, scoped, tag = 'input window, operand 0, single buffered']
    #allocation3 [shape = 's32[1]{0}', space=sflag, size = 0x4, scoped, tag = 'scoped memory for tpu_custom_call.1']
    #allocation4 [shape = 's32[1]{0}', space=sflag, size = 0x4, scoped, tag = 'scoped memory for tpu_custom_call.1']
    #allocation5 [shape = 'u8[16384]{0}', space=vmem, size = 0x4000, scoped, tag = 'input window, operand 1, single buffered']
    #allocation6 [shape = 's32[1]{0}', space=sflag, size = 0x4, scoped, tag = 'scoped memory for tpu_custom_call.1']
    #allocation7 [shape = 'u8[16384]{0}', space=vmem, size = 0x4000, scoped, tag = 'input window, operand 2, single buffered']
    #allocation8 [shape = 'u8[4096]{0}', space=vmem, size = 0x1000, scoped, tag = 'input window, operand 3, single buffered']
    #allocation9 [shape = 's32[1]{0}', space=sflag, size = 0x4, scoped, tag = 'scoped memory for tpu_custom_call.1']
    #allocation10 [shape = 'u8[98304]{0}', space=vmem, size = 0x18000, scoped, tag = 'input window, operand 4, single buffered']
    #allocation11 [shape = 'u8[8192]{0}', space=vmem, size = 0x2000, scoped, tag = 'input window, operand 5, single buffered']
    #allocation12 [shape = 's32[1]{0}', space=sflag, size = 0x4, scoped, tag = 'scoped memory for tpu_custom_call.1']
    #allocation13 [shape = 'u8[8192]{0}', space=vmem, size = 0x2000, scoped, tag = 'input window, operand 6, single buffered']
    #allocation14 [shape = 'u8[4096]{0}', space=vmem, size = 0x1000, scoped, tag = 'output window, operand 0, single buffered']
    %13 = vsyncpa [#allocation3], 0
    %14 = vsyncpa [#allocation6], 0
    %15 = vsyncpa [#allocation9], 0
    %16 = vsyncpa [#allocation12], 0
    %17 = vsyncpa [#allocation4], 0
    // Predicated region
    $region2: #{tpu_custom_call.1} parent=1 // pred_check
      _
    $region3: #{tpu_custom_call.1} parent=1 // pred_check_branch
      %19 = sbr.rel (0) target = $region5
    $region4: #{tpu_custom_call.1} parent=1 // pred_region
      %21 = vsyncadd [#allocation3], 0
      %s23 = sshll.u32 %s0, 4
      %s24 = int_to_ptr.hbm [resolvable:$true] %s23
      %s25 = sshll.u32 [#allocation2], 4
      %s26 = int_to_ptr.vmem [resolvable:$true] %s25
      %28 = dma.hbm_to_vmem [thread:$0]  %s24, 64, %s26, [#allocation3]
    $region5: #{tpu_custom_call.1} parent=1 // pred_fallthru
      _
    // Predicated region
    $region6: #{tpu_custom_call.1} parent=1 // pred_check
      _
    $region7: #{tpu_custom_call.1} parent=1 // pred_check_branch
      %30 = sbr.rel (0) target = $region9
    $region8: #{tpu_custom_call.1} parent=1 // pred_region
      %32 = vsyncadd [#allocation6], 0
      %s33 = sshll.u32 %s1, 4
      %s34 = int_to_ptr.hbm [resolvable:$true] %s33
      %s35 = sshll.u32 [#allocation5], 4
      %s36 = int_to_ptr.vmem [resolvable:$true] %s35
      %41 = dma.hbm_to_vmem [thread:$0]  %s34, 512, %s36, [#allocation6], 64, 64, 4
    $region9: #{tpu_custom_call.1} parent=1 // pred_fallthru
      _
    // Predicated region
    $region10: #{tpu_custom_call.1} parent=1 // pred_check
      _
    $region11: #{tpu_custom_call.1} parent=1 // pred_check_branch
      %43 = sbr.rel (0) target = $region13
    $region12: #{tpu_custom_call.1} parent=1 // pred_region
      %45 = vsyncadd [#allocation6], 0
      %s46 = sshll.u32 %s2, 4
      %s47 = int_to_ptr.hbm [resolvable:$true] %s46
      %s48 = sshll.u32 [#allocation7], 4
      %s49 = int_to_ptr.vmem [resolvable:$true] %s48
      %54 = dma.hbm_to_vmem [thread:$0]  %s47, 512, %s49, [#allocation6], 64, 64, 4
    $region13: #{tpu_custom_call.1} parent=1 // pred_fallthru
      _
    // Predicated region
    $region14: #{tpu_custom_call.1} parent=1 // pred_check
      _
    $region15: #{tpu_custom_call.1} parent=1 // pred_check_branch
      %56 = sbr.rel (0) target = $region17
    $region16: #{tpu_custom_call.1} parent=1 // pred_region
      %58 = vsyncadd [#allocation9], 0
      %s60 = sshll.u32 %s3, 4
      %s61 = int_to_ptr.hbm [resolvable:$true] %s60
      %s62 = sshll.u32 [#allocation8], 4
      %s63 = int_to_ptr.vmem [resolvable:$true] %s62
      %65 = dma.hbm_to_vmem [thread:$0]  %s61, 128, %s63, [#allocation9]
    $region17: #{tpu_custom_call.1} parent=1 // pred_fallthru
      _
    // Predicated region
    $region18: #{tpu_custom_call.1} parent=1 // pred_check
      _
    $region19: #{tpu_custom_call.1} parent=1 // pred_check_branch
      %67 = sbr.rel (0) target = $region21
    $region20: #{tpu_custom_call.1} parent=1 // pred_region
      %69 = vsyncadd [#allocation9], 0
      %s70 = sshll.u32 %s4, 4
      %s71 = int_to_ptr.hbm [resolvable:$true] %s70
      %s72 = sshll.u32 [#allocation10], 4
      %s73 = int_to_ptr.vmem [resolvable:$true] %s72
      %78 = dma.hbm_to_vmem [thread:$0]  %s71, 3072, %s73, [#allocation9], 192, 192, 12
    $region21: #{tpu_custom_call.1} parent=1 // pred_fallthru
      _
    // Predicated region
    $region22: #{tpu_custom_call.1} parent=1 // pred_check
      _
    $region23: #{tpu_custom_call.1} parent=1 // pred_check_branch
      %80 = sbr.rel (0) target = $region25
    $region24: #{tpu_custom_call.1} parent=1 // pred_region
      %82 = vsyncadd [#allocation12], 0
      %s83 = sshll.u32 %s5, 4
      %s84 = int_to_ptr.hbm [resolvable:$true] %s83
      %s85 = sshll.u32 [#allocation11], 4
      %s86 = int_to_ptr.vmem [resolvable:$true] %s85
      %91 = dma.hbm_to_vmem [thread:$0]  %s84, 256, %s86, [#allocation12], 64, 64, 4
    $region25: #{tpu_custom_call.1} parent=1 // pred_fallthru
      _
    // Predicated region
    $region26: #{tpu_custom_call.1} parent=1 // pred_check
      _
    $region27: #{tpu_custom_call.1} parent=1 // pred_check_branch
      %93 = sbr.rel (0) target = $region29
    $region28: #{tpu_custom_call.1} parent=1 // pred_region
      %95 = vsyncadd [#allocation12], 0
      %s96 = sshll.u32 %s6, 4
      %s97 = int_to_ptr.hbm [resolvable:$true] %s96
      %s98 = sshll.u32 [#allocation13], 4
      %s99 = int_to_ptr.vmem [resolvable:$true] %s98
      %104 = dma.hbm_to_vmem [thread:$0]  %s97, 256, %s99, [#allocation12], 64, 64, 4
    $region29: #{tpu_custom_call.1} parent=1 // pred_fallthru
      _
    // Predicated region
    $region30: #{tpu_custom_call.1} parent=1 // pred_check
      _
    $region31: #{tpu_custom_call.1} parent=1 // pred_check_branch
      %106 = sbr.rel (0) target = $region33
    $region32: #{tpu_custom_call.1} parent=1 // pred_region
      _
    $region33: #{tpu_custom_call.1} parent=1 // pred_fallthru
      _
    // Predicated region
    $region34: #{tpu_custom_call.1} parent=1 // pred_check
      _
    $region35: #{tpu_custom_call.1} parent=1 // pred_check_branch
      %108 = sbr.rel (0) target = $region37
    $region36: #{tpu_custom_call.1} parent=1 // pred_region
      %110 = dma.done [#allocation3], 64
    $region37: #{tpu_custom_call.1} parent=1 // pred_fallthru
      _
    // Predicated region
    $region38: #{tpu_custom_call.1} parent=1 // pred_check
      _
    $region39: #{tpu_custom_call.1} parent=1 // pred_check_branch
      %112 = sbr.rel (0) target = $region41
    $region40: #{tpu_custom_call.1} parent=1 // pred_region
      %114 = dma.done [#allocation6], 512
    $region41: #{tpu_custom_call.1} parent=1 // pred_fallthru
      _
    // Predicated region
    $region42: #{tpu_custom_call.1} parent=1 // pred_check
      _
    $region43: #{tpu_custom_call.1} parent=1 // pred_check_branch
      %116 = sbr.rel (0) target = $region45
    $region44: #{tpu_custom_call.1} parent=1 // pred_region
      %118 = dma.done [#allocation6], 512
    $region45: #{tpu_custom_call.1} parent=1 // pred_fallthru
      _
    // Predicated region
    $region46: #{tpu_custom_call.1} parent=1 // pred_check
      _
    $region47: #{tpu_custom_call.1} parent=1 // pred_check_branch
      %120 = sbr.rel (0) target = $region49
    $region48: #{tpu_custom_call.1} parent=1 // pred_region
      %122 = dma.done [#allocation9], 128
    $region49: #{tpu_custom_call.1} parent=1 // pred_fallthru
      _
    // Predicated region
    $region50: #{tpu_custom_call.1} parent=1 // pred_check
      _
    $region51: #{tpu_custom_call.1} parent=1 // pred_check_branch
      %124 = sbr.rel (0) target = $region53
    $region52: #{tpu_custom_call.1} parent=1 // pred_region
      %126 = dma.done [#allocation9], 3072
    $region53: #{tpu_custom_call.1} parent=1 // pred_fallthru
      _
    // Predicated region
    $region54: #{tpu_custom_call.1} parent=1 // pred_check
      _
    $region55: #{tpu_custom_call.1} parent=1 // pred_check_branch
      %128 = sbr.rel (0) target = $region57
    $region56: #{tpu_custom_call.1} parent=1 // pred_region
      %130 = dma.done [#allocation12], 256
    $region57: #{tpu_custom_call.1} parent=1 // pred_fallthru
      _
    // Predicated region
    $region58: #{tpu_custom_call.1} parent=1 // pred_check
      _
    $region59: #{tpu_custom_call.1} parent=1 // pred_check_branch
      %132 = sbr.rel (0) target = $region61
    $region60: #{tpu_custom_call.1} parent=1 // pred_region
      %134 = dma.done [#allocation12], 256
    $region61: #{tpu_custom_call.1} parent=1 // pred_fallthru
      _
    %v136 = vld [vmem:[#allocation2] sm:$0xf]
    %v137 = vld [vmem:[#allocation10] sm:$0xff]
    %v138 = vld [vmem:[#allocation10 + $0xc] sm:$0xff]
    %v139 = vld [vmem:[#allocation10 + $0x18] sm:$0xff]
    %v140 = vld [vmem:[#allocation10 + $0x24] sm:$0xff]
    %v141 = vld [vmem:[#allocation10 + $0x30] sm:$0xff]
    %v142 = vld [vmem:[#allocation10 + $0x3c] sm:$0xff]
    %v143 = vld [vmem:[#allocation10 + $0x48] sm:$0xff]
    %v144 = vld [vmem:[#allocation10 + $0x54] sm:$0xff]
    %v145 = vld [vmem:[#allocation10 + $0x60] sm:$0xff]
    %v146 = vld [vmem:[#allocation10 + $0x6c] sm:$0xff]
    %v147 = vld [vmem:[#allocation10 + $0x78] sm:$0xff]
    %v148 = vld [vmem:[#allocation10 + $0x84] sm:$0xff]
    %v149 = vld [vmem:[#allocation10 + $0x90] sm:$0xff]
    %v150 = vld [vmem:[#allocation10 + $0x9c] sm:$0xff]
    %v151 = vld [vmem:[#allocation10 + $0xa8] sm:$0xff]
    %v152 = vld [vmem:[#allocation10 + $0xb4] sm:$0xff]
    %v169 = vunpack.c.l.b16 %v137
    %v170 = vunpack.c.h.b16 %v137
    %v171 = vunpack.c.l.b16 %v138
    %v172 = vunpack.c.h.b16 %v138
    %v173 = vunpack.c.l.b16 %v139
    %v174 = vunpack.c.h.b16 %v139
    %v175 = vunpack.c.l.b16 %v140
    %v176 = vunpack.c.h.b16 %v140
    %v177 = vunpack.c.l.b16 %v141
    %v178 = vunpack.c.h.b16 %v141
    %v179 = vunpack.c.l.b16 %v142
    %v180 = vunpack.c.h.b16 %v142
    %v181 = vunpack.c.l.b16 %v143
    %v182 = vunpack.c.h.b16 %v143
    %v183 = vunpack.c.l.b16 %v144
    %v184 = vunpack.c.h.b16 %v144
    %v185 = vunpack.c.l.b16 %v145
    %v186 = vunpack.c.h.b16 %v145
    %v187 = vunpack.c.l.b16 %v146
    %v188 = vunpack.c.h.b16 %v146
    %v189 = vunpack.c.l.b16 %v147
    %v190 = vunpack.c.h.b16 %v147
    %v191 = vunpack.c.l.b16 %v148
    %v192 = vunpack.c.h.b16 %v148
    %v193 = vunpack.c.l.b16 %v149
    %v194 = vunpack.c.h.b16 %v149
    %v195 = vunpack.c.l.b16 %v150
    %v196 = vunpack.c.h.b16 %v150
    %v197 = vunpack.c.l.b16 %v151
    %v198 = vunpack.c.h.b16 %v151
    %v199 = vunpack.c.l.b16 %v152
    %v200 = vunpack.c.h.b16 %v152
    %v201 = vpack.c.b16 %v171, %v169
    %v202 = vpack.c.b16 %v172, %v170
    %v203 = vpack.c.b16 %v175, %v173
    %v204 = vpack.c.b16 %v176, %v174
    %v205 = vpack.c.b16 %v179, %v177
    %v206 = vpack.c.b16 %v180, %v178
    %v207 = vpack.c.b16 %v183, %v181
    %v208 = vpack.c.b16 %v184, %v182
    %v209 = vpack.c.b16 %v187, %v185
    %v210 = vpack.c.b16 %v188, %v186
    %v211 = vpack.c.b16 %v191, %v189
    %v212 = vpack.c.b16 %v192, %v190
    %v213 = vpack.c.b16 %v195, %v193
    %v214 = vpack.c.b16 %v196, %v194
    %v215 = vpack.c.b16 %v199, %v197
    %v216 = vpack.c.b16 %v200, %v198
    %233 = vmatpush.bf16.msra.mxu0 %v215
    %234 = vmatpush.bf16.msra.mxu0 %v213
    %235 = vmatpush.bf16.msra.mxu0 %v211
    %236 = vmatpush.bf16.msra.mxu0 %v209
    %237 = vmatpush.bf16.msra.mxu0 %v207
    %238 = vmatpush.bf16.msra.mxu0 %v205
    %239 = vmatpush.bf16.msra.mxu0 %v203
    %240 = vmatpush.bf16.msra.mxu0 %v201
    %241 = vmatmul.bf16.gmra.mxu0 %v136
    %v242 = vpop.f32.mrf.mxu0
    %v243 = vadd.f32 0.0, %v242
    %v244 = vpop.f32.mrf.mxu0
    %245 = vdwg.mxu0
    %246 = vmatpush.bf16.msra.mxu0 %v216
    %247 = vmatpush.bf16.msra.mxu0 %v214
    %248 = vmatpush.bf16.msra.mxu0 %v212
    %249 = vmatpush.bf16.msra.mxu0 %v210
    %250 = vmatpush.bf16.msra.mxu0 %v208
    %251 = vmatpush.bf16.msra.mxu0 %v206
    %252 = vmatpush.bf16.msra.mxu0 %v204
    %253 = vmatpush.bf16.msra.mxu0 %v202
    %254 = vmatmul.bf16.gmra.mxu0 %v136
    %v255 = vpop.f32.mrf.mxu0
    %v256 = vadd.f32 0.0, %v255
    %v257 = vpop.f32.mrf.mxu0
    %258 = vdwg.mxu0
    %v259 = vld [vmem:[#allocation5] sm:$0xf]
    %v260 = vld [vmem:[#allocation5 + $0x4] sm:$0xf]
    %v261 = vld [vmem:[#allocation5 + $0x8] sm:$0xf]
    %v262 = vld [vmem:[#allocation5 + $0xc] sm:$0xf]
    %v263 = vld [vmem:[#allocation5 + $0x10] sm:$0xf]
    %v264 = vld [vmem:[#allocation5 + $0x14] sm:$0xf]
    %v265 = vld [vmem:[#allocation5 + $0x18] sm:$0xf]
    %v266 = vld [vmem:[#allocation5 + $0x1c] sm:$0xf]
    %v267 = vunpack.c.l.bf16 %v259
    %v268 = vunpack.c.l.bf16 %v260
    %v269 = vunpack.c.l.bf16 %v261
    %v270 = vunpack.c.l.bf16 %v262
    %v271 = vunpack.c.l.bf16 %v263
    %v272 = vunpack.c.l.bf16 %v264
    %v273 = vunpack.c.l.bf16 %v265
    %v274 = vunpack.c.l.bf16 %v266
    %v275 = vld [vmem:[#allocation7] sm:$0xf]
    %v276 = vld [vmem:[#allocation7 + $0x4] sm:$0xf]
    %v277 = vld [vmem:[#allocation7 + $0x8] sm:$0xf]
    %v278 = vld [vmem:[#allocation7 + $0xc] sm:$0xf]
    %v279 = vld [vmem:[#allocation7 + $0x10] sm:$0xf]
    %v280 = vld [vmem:[#allocation7 + $0x14] sm:$0xf]
    %v281 = vld [vmem:[#allocation7 + $0x18] sm:$0xf]
    %v282 = vld [vmem:[#allocation7 + $0x1c] sm:$0xf]
    %v283 = vunpack.c.l.bf16 %v275
    %v284 = vunpack.c.l.bf16 %v276
    %v285 = vunpack.c.l.bf16 %v277
    %v286 = vunpack.c.l.bf16 %v278
    %v287 = vunpack.c.l.bf16 %v279
    %v288 = vunpack.c.l.bf16 %v280
    %v289 = vunpack.c.l.bf16 %v281
    %v290 = vunpack.c.l.bf16 %v282
    %v292 = vrot.slane %v243, 1
    %v293 = vrot.slane %v243, 2
    %v294 = vrot.slane %v243, 3
    %v295 = vrot.slane %v243, 4
    %v296 = vrot.slane %v243, 5
    %v297 = vrot.slane %v243, 6
    %v298 = vrot.slane %v243, 7
    %v299 = vperm.slane %v243, 0
    %v300 = vperm.slane %v292, 0
    %v301 = vperm.slane %v293, 0
    %v302 = vperm.slane %v294, 0
    %v303 = vperm.slane %v295, 0
    %v304 = vperm.slane %v296, 0
    %v305 = vperm.slane %v297, 0
    %v306 = vperm.slane %v298, 0
    %v315 = vmul.f32 %v299, %v267
    %v316 = vmul.f32 %v300, %v268
    %v317 = vmul.f32 %v301, %v269
    %v318 = vmul.f32 %v302, %v270
    %v319 = vmul.f32 %v303, %v271
    %v320 = vmul.f32 %v304, %v272
    %v321 = vmul.f32 %v305, %v273
    %v322 = vmul.f32 %v306, %v274
    %323 = vadd.xlane.f32.xlu0 %v315
    %v324 = vpop.xlane.xlu0 %323
    %325 = vadd.xlane.f32.xlu0 %v316
    %v326 = vpop.xlane.xlu0 %325
    %327 = vadd.xlane.f32.xlu0 %v317
    %v328 = vpop.xlane.xlu0 %327
    %329 = vadd.xlane.f32.xlu0 %v318
    %v330 = vpop.xlane.xlu0 %329
    %331 = vadd.xlane.f32.xlu0 %v319
    %v332 = vpop.xlane.xlu0 %331
    %333 = vadd.xlane.f32.xlu0 %v320
    %v334 = vpop.xlane.xlu0 %333
    %335 = vadd.xlane.f32.xlu0 %v321
    %v336 = vpop.xlane.xlu0 %335
    %337 = vadd.xlane.f32.xlu0 %v322
    %v338 = vpop.xlane.xlu0 %337
    %v347 = vlaneseq
    %v348 = vand.u32 %v347, 127
    %v349 = vperm.slane %v324, %v348
    %v350 = vperm.slane %v326, %v348
    %v351 = vperm.slane %v328, %v348
    %v352 = vperm.slane %v330, %v348
    %v353 = vperm.slane %v332, %v348
    %v354 = vperm.slane %v334, %v348
    %v355 = vperm.slane %v336, %v348
    %v356 = vperm.slane %v338, %v348
    %vm357 = vcmask 1041409
    %v358 = vsel %vm357, %v350, %v349
    %vm359 = vcmask 1042434
    %v360 = vsel %vm359, %v351, %v358
    %vm361 = vcmask 1043459
    %v362 = vsel %vm361, %v352, %v360
    %vm363 = vcmask 1044484
    %v364 = vsel %vm363, %v353, %v362
    %vm365 = vcmask 1045509
    %v366 = vsel %vm365, %v354, %v364
    %vm367 = vcmask 1046534
    %v368 = vsel %vm367, %v355, %v366
    %vm369 = vcmask 1047559
    %v370 = vsel %vm369, %v356, %v368
    %vm372 = vcmask 64512
    %v373 = vsel %vm372, %v370, -inf
    %374 = vmax.xlane.f32.xlu0 %v373
    %v375 = vpop.xlane.xlu0 %374
    %v377 = vperm.slane %v375, 0
    %v378 = vperm.slane %v375, 1
    %v379 = vperm.slane %v375, 2
    %v380 = vperm.slane %v375, 3
    %v381 = vperm.slane %v375, 4
    %v382 = vperm.slane %v375, 5
    %v383 = vperm.slane %v375, 6
    %v384 = vperm.slane %v375, 7
    %v393 = vsub.f32 %v324, %v377
    %v394 = vsub.f32 %v326, %v378
    %v395 = vsub.f32 %v328, %v379
    %v396 = vsub.f32 %v330, %v380
    %v397 = vsub.f32 %v332, %v381
    %v398 = vsub.f32 %v334, %v382
    %v399 = vsub.f32 %v336, %v383
    %v400 = vsub.f32 %v338, %v384
    %v401 = vmul.f32 %v393, 1.442695
    %v402 = vpow.pop %v401
    %v403 = vmul.f32 %v394, 1.442695
    %v404 = vpow.pop %v403
    %v405 = vmul.f32 %v395, 1.442695
    %v406 = vpow.pop %v405
    %v407 = vmul.f32 %v396, 1.442695
    %v408 = vpow.pop %v407
    %v409 = vmul.f32 %v397, 1.442695
    %v410 = vpow.pop %v409
    %v411 = vmul.f32 %v398, 1.442695
    %v412 = vpow.pop %v411
    %v413 = vmul.f32 %v399, 1.442695
    %v414 = vpow.pop %v413
    %v415 = vmul.f32 %v400, 1.442695
    %v416 = vpow.pop %v415
    %425 = vset.pattern.permute.xlu0 0
    %426 = vperm.xlu0 %425, %v402
    %v427 = vpop.permute.xlu0 %426
    %428 = vset.pattern.permute.xlu0 0
    %429 = vperm.xlu0 %428, %v404
    %v430 = vpop.permute.xlu0 %429
    %431 = vset.pattern.permute.xlu0 0
    %432 = vperm.xlu0 %431, %v406
    %v433 = vpop.permute.xlu0 %432
    %434 = vset.pattern.permute.xlu0 0
    %435 = vperm.xlu0 %434, %v408
    %v436 = vpop.permute.xlu0 %435
    %437 = vset.pattern.permute.xlu0 0
    %438 = vperm.xlu0 %437, %v410
    %v439 = vpop.permute.xlu0 %438
    %440 = vset.pattern.permute.xlu0 0
    %441 = vperm.xlu0 %440, %v412
    %v442 = vpop.permute.xlu0 %441
    %443 = vset.pattern.permute.xlu0 0
    %444 = vperm.xlu0 %443, %v414
    %v445 = vpop.permute.xlu0 %444
    %446 = vset.pattern.permute.xlu0 0
    %447 = vperm.xlu0 %446, %v416
    %v448 = vpop.permute.xlu0 %447
    %v449 = vperm.slane %v427, %v348
    %v450 = vperm.slane %v430, %v348
    %v451 = vperm.slane %v433, %v348
    %v452 = vperm.slane %v436, %v348
    %v453 = vperm.slane %v439, %v348
    %v454 = vperm.slane %v442, %v348
    %v455 = vperm.slane %v445, %v348
    %v456 = vperm.slane %v448, %v348
    %v457 = vsel %vm357, %v450, %v449
    %v458 = vsel %vm359, %v451, %v457
    %v459 = vsel %vm361, %v452, %v458
    %v460 = vsel %vm363, %v453, %v459
    %v461 = vsel %vm365, %v454, %v460
    %v462 = vsel %vm367, %v455, %v461
    %v463 = vsel %vm369, %v456, %v462
    %v465 = vsel %vm372, %v463, 0.0
    %466 = vadd.xlane.f32.xlu0 %v465
    %v467 = vpop.xlane.xlu0 %466
    %v468 = vrcp.pop %v467
    %v470 = vperm.slane %v468, 0
    %v471 = vperm.slane %v468, 1
    %v472 = vperm.slane %v468, 2
    %v473 = vperm.slane %v468, 3
    %v474 = vperm.slane %v468, 4
    %v475 = vperm.slane %v468, 5
    %v476 = vperm.slane %v468, 6
    %v477 = vperm.slane %v468, 7
    %v486 = vmul.f32 %v402, %v470
    %v487 = vmul.f32 %v404, %v471
    %v488 = vmul.f32 %v406, %v472
    %v489 = vmul.f32 %v408, %v473
    %v490 = vmul.f32 %v410, %v474
    %v491 = vmul.f32 %v412, %v475
    %v492 = vmul.f32 %v414, %v476
    %v493 = vmul.f32 %v416, %v477
    %495 = vset.pattern.permute.xlu0 0
    %496 = vperm.xlu0 %495, %v486
    %v497 = vpop.permute.xlu0 %496
    %500 = vset.pattern.permute.xlu0 0
    %501 = vperm.xlu0 %500, %v487
    %v502 = vpop.permute.xlu0 %501
    %505 = vset.pattern.permute.xlu0 0
    %506 = vperm.xlu0 %505, %v488
    %v507 = vpop.permute.xlu0 %506
    %510 = vset.pattern.permute.xlu0 0
    %511 = vperm.xlu0 %510, %v489
    %v512 = vpop.permute.xlu0 %511
    %515 = vset.pattern.permute.xlu0 0
    %516 = vperm.xlu0 %515, %v490
    %v517 = vpop.permute.xlu0 %516
    %520 = vset.pattern.permute.xlu0 0
    %521 = vperm.xlu0 %520, %v491
    %v522 = vpop.permute.xlu0 %521
    %525 = vset.pattern.permute.xlu0 0
    %526 = vperm.xlu0 %525, %v492
    %v527 = vpop.permute.xlu0 %526
    %530 = vset.pattern.permute.xlu0 0
    %531 = vperm.xlu0 %530, %v493
    %v532 = vpop.permute.xlu0 %531
    %v534 = vmul.f32 %v497, %v283
    %v535 = vmul.f32 %v502, %v284
    %v536 = vmul.f32 %v507, %v285
    %v537 = vmul.f32 %v512, %v286
    %v538 = vmul.f32 %v517, %v287
    %v539 = vmul.f32 %v522, %v288
    %v540 = vmul.f32 %v527, %v289
    %v541 = vmul.f32 %v532, %v290
    %v542 = vrot.slane %v534, 4
    %v543 = vadd.f32 %v534, %v542
    %v544 = vrot.slane %v543, 2
    %v545 = vadd.f32 %v543, %v544
    %v546 = vrot.slane %v545, 1
    %v547 = vadd.f32 %v545, %v546
    %v548 = vrot.slane %v535, 4
    %v549 = vadd.f32 %v535, %v548
    %v550 = vrot.slane %v549, 2
    %v551 = vadd.f32 %v549, %v550
    %v552 = vrot.slane %v551, 1
    %v553 = vadd.f32 %v551, %v552
    %v554 = vrot.slane %v536, 4
    %v555 = vadd.f32 %v536, %v554
    %v556 = vrot.slane %v555, 2
    %v557 = vadd.f32 %v555, %v556
    %v558 = vrot.slane %v557, 1
    %v559 = vadd.f32 %v557, %v558
    %v560 = vrot.slane %v537, 4
    %v561 = vadd.f32 %v537, %v560
    %v562 = vrot.slane %v561, 2
    %v563 = vadd.f32 %v561, %v562
    %v564 = vrot.slane %v563, 1
    %v565 = vadd.f32 %v563, %v564
    %v566 = vrot.slane %v538, 4
    %v567 = vadd.f32 %v538, %v566
    %v568 = vrot.slane %v567, 2
    %v569 = vadd.f32 %v567, %v568
    %v570 = vrot.slane %v569, 1
    %v571 = vadd.f32 %v569, %v570
    %v572 = vrot.slane %v539, 4
    %v573 = vadd.f32 %v539, %v572
    %v574 = vrot.slane %v573, 2
    %v575 = vadd.f32 %v573, %v574
    %v576 = vrot.slane %v575, 1
    %v577 = vadd.f32 %v575, %v576
    %v578 = vrot.slane %v540, 4
    %v579 = vadd.f32 %v540, %v578
    %v580 = vrot.slane %v579, 2
    %v581 = vadd.f32 %v579, %v580
    %v582 = vrot.slane %v581, 1
    %v583 = vadd.f32 %v581, %v582
    %v584 = vrot.slane %v541, 4
    %v585 = vadd.f32 %v541, %v584
    %v586 = vrot.slane %v585, 2
    %v587 = vadd.f32 %v585, %v586
    %v588 = vrot.slane %v587, 1
    %v589 = vadd.f32 %v587, %v588
    %v590 = vpack.c.bf16 %v547, %v547
    %v591 = vpack.c.bf16 %v553, %v553
    %v592 = vpack.c.bf16 %v559, %v559
    %v593 = vpack.c.bf16 %v565, %v565
    %v594 = vpack.c.bf16 %v571, %v571
    %v595 = vpack.c.bf16 %v577, %v577
    %v596 = vpack.c.bf16 %v583, %v583
    %v597 = vpack.c.bf16 %v589, %v589
    %v598 = vld [vmem:[#allocation10 + $0x8] sm:$0xf]
    %v599 = vld [vmem:[#allocation10 + $0x14] sm:$0xf]
    %v600 = vld [vmem:[#allocation10 + $0x20] sm:$0xf]
    %v601 = vld [vmem:[#allocation10 + $0x2c] sm:$0xf]
    %v602 = vld [vmem:[#allocation10 + $0x38] sm:$0xf]
    %v603 = vld [vmem:[#allocation10 + $0x44] sm:$0xf]
    %v604 = vld [vmem:[#allocation10 + $0x50] sm:$0xf]
    %v605 = vld [vmem:[#allocation10 + $0x5c] sm:$0xf]
    %v606 = vld [vmem:[#allocation10 + $0x68] sm:$0xf]
    %v607 = vld [vmem:[#allocation10 + $0x74] sm:$0xf]
    %v608 = vld [vmem:[#allocation10 + $0x80] sm:$0xf]
    %v609 = vld [vmem:[#allocation10 + $0x8c] sm:$0xf]
    %v610 = vld [vmem:[#allocation10 + $0x98] sm:$0xf]
    %v611 = vld [vmem:[#allocation10 + $0xa4] sm:$0xf]
    %v612 = vld [vmem:[#allocation10 + $0xb0] sm:$0xf]
    %v613 = vld [vmem:[#allocation10 + $0xbc] sm:$0xf]
    %v622 = vunpack.c.l.b16 %v590
    %v623 = vunpack.c.l.b16 %v591
    %v624 = vunpack.c.l.b16 %v592
    %v625 = vunpack.c.l.b16 %v593
    %v626 = vunpack.c.l.b16 %v594
    %v627 = vunpack.c.l.b16 %v595
    %v628 = vunpack.c.l.b16 %v596
    %v629 = vunpack.c.l.b16 %v597
    %v630 = vsel %vm357, %v623, %v622
    %v631 = vsel %vm359, %v624, %v630
    %v632 = vsel %vm361, %v625, %v631
    %v633 = vsel %vm363, %v626, %v632
    %v634 = vsel %vm365, %v627, %v633
    %v635 = vsel %vm367, %v628, %v634
    %v636 = vsel %vm369, %v629, %v635
    %v637 = vpack.c.b16 %v636, %v636
    %v655 = vunpack.c.l.b16 %v598
    %v656 = vunpack.c.l.b16 %v599
    %v657 = vunpack.c.l.b16 %v600
    %v658 = vunpack.c.l.b16 %v601
    %v659 = vunpack.c.l.b16 %v602
    %v660 = vunpack.c.l.b16 %v603
    %v661 = vunpack.c.l.b16 %v604
    %v662 = vunpack.c.l.b16 %v605
    %v663 = vunpack.c.l.b16 %v606
    %v664 = vunpack.c.l.b16 %v607
    %v665 = vunpack.c.l.b16 %v608
    %v666 = vunpack.c.l.b16 %v609
    %v667 = vunpack.c.l.b16 %v610
    %v668 = vunpack.c.l.b16 %v611
    %v669 = vunpack.c.l.b16 %v612
    %v670 = vunpack.c.l.b16 %v613
    %v671 = vpack.c.b16 %v656, %v655
    %v672 = vpack.c.b16 %v658, %v657
    %v673 = vpack.c.b16 %v660, %v659
    %v674 = vpack.c.b16 %v662, %v661
    %v675 = vpack.c.b16 %v664, %v663
    %v676 = vpack.c.b16 %v666, %v665
    %v677 = vpack.c.b16 %v668, %v667
    %v678 = vpack.c.b16 %v670, %v669
    %687 = vmatpush.bf16.msra.mxu0 %v678
    %688 = vmatpush.bf16.msra.mxu0 %v677
    %689 = vmatpush.bf16.msra.mxu0 %v676
    %690 = vmatpush.bf16.msra.mxu0 %v675
    %691 = vmatpush.bf16.msra.mxu0 %v674
    %692 = vmatpush.bf16.msra.mxu0 %v673
    %693 = vmatpush.bf16.msra.mxu0 %v672
    %694 = vmatpush.bf16.msra.mxu0 %v671
    %695 = vmatmul.bf16.gmra.mxu0 %v637
    %v696 = vpop.f32.mrf.mxu0
    %v697 = vadd.f32 %v256, %v696
    %v698 = vpop.f32.mrf.mxu0
    %699 = vdwg.mxu0
    %v700 = vtanh.pop %v697
    %v701 = vld [vmem:[#allocation8] sm:$0xff]
    %v702 = vld [vmem:[%s7] sm:$0x1]
    %v703 = vld [vmem:[%s7 + $0x1] sm:$0x1]
    %v704 = vld [vmem:[%s7 + $0x2] sm:$0x1]
    %v705 = vld [vmem:[#allocation11] sm:$0xf]
    %v706 = vld [vmem:[#allocation11 + $0x4] sm:$0xf]
    %v707 = vld [vmem:[#allocation11 + $0x8] sm:$0xf]
    %v708 = vld [vmem:[#allocation11 + $0xc] sm:$0xf]
    %v709 = vperm.slane %v701, 0
    %v710 = vlaneseq
    %v711 = vshrl.u32 %v710, 7
    %713 = vset.pattern.permute.xlu0 %v711
    %714 = vperm.xlu0 %713, %v709
    %v715 = vpop.permute.xlu0 %714
    %v716 = vperm.slane %v701, 1
    %v717 = vlaneseq
    %v718 = vshrl.u32 %v717, 7
    %720 = vset.pattern.permute.xlu0 %v718
    %721 = vperm.xlu0 %720, %v716
    %v722 = vpop.permute.xlu0 %721
    %v723 = vperm.slane %v701, 2
    %v724 = vlaneseq
    %v725 = vshrl.u32 %v724, 7
    %727 = vset.pattern.permute.xlu0 %v725
    %728 = vperm.xlu0 %727, %v723
    %v729 = vpop.permute.xlu0 %728
    %v730 = vperm.slane %v701, 3
    %v731 = vlaneseq
    %v732 = vshrl.u32 %v731, 7
    %734 = vset.pattern.permute.xlu0 %v732
    %735 = vperm.xlu0 %734, %v730
    %v736 = vpop.permute.xlu0 %735
    %v737 = vperm.slane %v701, 4
    %v738 = vlaneseq
    %v739 = vshrl.u32 %v738, 7
    %741 = vset.pattern.permute.xlu0 %v739
    %742 = vperm.xlu0 %741, %v737
    %v743 = vpop.permute.xlu0 %742
    %v744 = vperm.slane %v701, 5
    %v745 = vlaneseq
    %v746 = vshrl.u32 %v745, 7
    %748 = vset.pattern.permute.xlu0 %v746
    %749 = vperm.xlu0 %748, %v744
    %v750 = vpop.permute.xlu0 %749
    %v751 = vperm.slane %v701, 6
    %v752 = vlaneseq
    %v753 = vshrl.u32 %v752, 7
    %755 = vset.pattern.permute.xlu0 %v753
    %756 = vperm.xlu0 %755, %v751
    %v757 = vpop.permute.xlu0 %756
    %v758 = vperm.slane %v701, 7
    %v759 = vlaneseq
    %v760 = vshrl.u32 %v759, 7
    %762 = vset.pattern.permute.xlu0 %v760
    %763 = vperm.xlu0 %762, %v758
    %v764 = vpop.permute.xlu0 %763
    %v765 = vperm.slane %v702, 0
    %v766 = vmul.f32 %v715, %v765
    %v767 = vmul.f32 %v722, %v765
    %v768 = vmul.f32 %v729, %v765
    %v769 = vmul.f32 %v736, %v765
    %v770 = vmul.f32 %v743, %v765
    %v771 = vmul.f32 %v750, %v765
    %v772 = vmul.f32 %v757, %v765
    %v773 = vmul.f32 %v764, %v765
    %v774 = vperm.slane %v703, 0
    %v775 = vadd.f32 %v766, %v774
    %v776 = vadd.f32 %v767, %v774
    %v777 = vadd.f32 %v768, %v774
    %v778 = vadd.f32 %v769, %v774
    %v779 = vadd.f32 %v770, %v774
    %v780 = vadd.f32 %v771, %v774
    %v781 = vadd.f32 %v772, %v774
    %v782 = vadd.f32 %v773, %v774
    %v783 = vpack.c.bf16 %v700, %v700
    %v784 = vperm.slane %v704, 0
    %v789 = vunpack.c.l.b16 %v705
    %v790 = vunpack.c.l.b16 %v706
    %v791 = vunpack.c.l.b16 %v707
    %v792 = vunpack.c.l.b16 %v708
    %v793 = vpack.c.b16 %v790, %v789
    %v794 = vpack.c.b16 %v792, %v791
    %vm797 = vcmask 261120
    %v799 = vsel %vm797, %v783, 0
    %801 = vmatpush.bf16.msra.mxu0 0
    %802 = vmatpush.bf16.msra.mxu0 0
    %803 = vmatpush.bf16.msra.mxu0 0
    %804 = vmatpush.bf16.msra.mxu0 0
    %805 = vmatpush.bf16.msra.mxu0 0
    %806 = vmatpush.bf16.msra.mxu0 0
    %807 = vmatpush.bf16.msra.mxu0 %v794
    %808 = vmatpush.bf16.msra.mxu0 %v793
    %809 = vmatmul.bf16.gmra.mxu0 %v799
    %v810 = vpop.f32.mrf.mxu0
    %v811 = vadd.f32 %v784, %v810
    %v812 = vpop.f32.mrf.mxu0
    %813 = vdwg.mxu0
    %v815 = vrot.slane %v811, 1
    %v816 = vrot.slane %v811, 2
    %v817 = vrot.slane %v811, 3
    %v818 = vrot.slane %v811, 4
    %v819 = vrot.slane %v811, 5
    %v820 = vrot.slane %v811, 6
    %v821 = vrot.slane %v811, 7
    %v830 = vadd.f32 %v775, %v811
    %v831 = vadd.f32 %v776, %v815
    %v832 = vadd.f32 %v777, %v816
    %v833 = vadd.f32 %v778, %v817
    %v834 = vadd.f32 %v779, %v818
    %v835 = vadd.f32 %v780, %v819
    %v836 = vadd.f32 %v781, %v820
    %v837 = vadd.f32 %v782, %v821
    %v838 = vxor.u32 %v830, 2147483648
    %v839 = vxor.u32 %v831, 2147483648
    %v840 = vxor.u32 %v832, 2147483648
    %v841 = vxor.u32 %v833, 2147483648
    %v842 = vxor.u32 %v834, 2147483648
    %v843 = vxor.u32 %v835, 2147483648
    %v844 = vxor.u32 %v836, 2147483648
    %v845 = vxor.u32 %v837, 2147483648
    %v846 = vmul.f32 %v838, 1.442695
    %v847 = vpow.pop %v846
    %v848 = vmul.f32 %v839, 1.442695
    %v849 = vpow.pop %v848
    %v850 = vmul.f32 %v840, 1.442695
    %v851 = vpow.pop %v850
    %v852 = vmul.f32 %v841, 1.442695
    %v853 = vpow.pop %v852
    %v854 = vmul.f32 %v842, 1.442695
    %v855 = vpow.pop %v854
    %v856 = vmul.f32 %v843, 1.442695
    %v857 = vpow.pop %v856
    %v858 = vmul.f32 %v844, 1.442695
    %v859 = vpow.pop %v858
    %v860 = vmul.f32 %v845, 1.442695
    %v861 = vpow.pop %v860
    %v862 = vadd.f32 %v847, 1.0
    %v863 = vadd.f32 %v849, 1.0
    %v864 = vadd.f32 %v851, 1.0
    %v865 = vadd.f32 %v853, 1.0
    %v866 = vadd.f32 %v855, 1.0
    %v867 = vadd.f32 %v857, 1.0
    %v868 = vadd.f32 %v859, 1.0
    %v869 = vadd.f32 %v861, 1.0
    %v870 = vrcp.pop %v862
    %v871 = vmul.f32 %v862, %v870
    %v872 = vsub.f32 1.0, %v871
    %v873 = vmul.f32 %v870, %v872
    %v874 = vadd.f32 %v870, %v873
    %vm875 = vweird.f32 %v862
    %vm876 = vweird.f32 %v870
    %vm877 = vmor %vm875, %vm876
    %v878 = vsel %vm877, %v870, %v874
    %v879 = vand.u32 2147483647, %v862
    %vm880 = vcmp.eq.f32.partialorder %v879, 8.507059e+37
    %v881 = vand.u32 %v862, 2147483648
    %v882 = vor.u32 1.1754944e-38, %v881
    %v883 = vsel %vm880, %v882, %v878
    %v884 = vmul.f32 1.0, %v883
    %v885 = vrcp.pop %v863
    %v886 = vmul.f32 %v863, %v885
    %v887 = vsub.f32 1.0, %v886
    %v888 = vmul.f32 %v885, %v887
    %v889 = vadd.f32 %v885, %v888
    %vm890 = vweird.f32 %v863
    %vm891 = vweird.f32 %v885
    %vm892 = vmor %vm890, %vm891
    %v893 = vsel %vm892, %v885, %v889
    %v894 = vand.u32 2147483647, %v863
    %vm895 = vcmp.eq.f32.partialorder %v894, 8.507059e+37
    %v896 = vand.u32 %v863, 2147483648
    %v897 = vor.u32 1.1754944e-38, %v896
    %v898 = vsel %vm895, %v897, %v893
    %v899 = vmul.f32 1.0, %v898
    %v900 = vrcp.pop %v864
    %v901 = vmul.f32 %v864, %v900
    %v902 = vsub.f32 1.0, %v901
    %v903 = vmul.f32 %v900, %v902
    %v904 = vadd.f32 %v900, %v903
    %vm905 = vweird.f32 %v864
    %vm906 = vweird.f32 %v900
    %vm907 = vmor %vm905, %vm906
    %v908 = vsel %vm907, %v900, %v904
    %v909 = vand.u32 2147483647, %v864
    %vm910 = vcmp.eq.f32.partialorder %v909, 8.507059e+37
    %v911 = vand.u32 %v864, 2147483648
    %v912 = vor.u32 1.1754944e-38, %v911
    %v913 = vsel %vm910, %v912, %v908
    %v914 = vmul.f32 1.0, %v913
    %v915 = vrcp.pop %v865
    %v916 = vmul.f32 %v865, %v915
    %v917 = vsub.f32 1.0, %v916
    %v918 = vmul.f32 %v915, %v917
    %v919 = vadd.f32 %v915, %v918
    %vm920 = vweird.f32 %v865
    %vm921 = vweird.f32 %v915
    %vm922 = vmor %vm920, %vm921
    %v923 = vsel %vm922, %v915, %v919
    %v924 = vand.u32 2147483647, %v865
    %vm925 = vcmp.eq.f32.partialorder %v924, 8.507059e+37
    %v926 = vand.u32 %v865, 2147483648
    %v927 = vor.u32 1.1754944e-38, %v926
    %v928 = vsel %vm925, %v927, %v923
    %v929 = vmul.f32 1.0, %v928
    %v930 = vrcp.pop %v866
    %v931 = vmul.f32 %v866, %v930
    %v932 = vsub.f32 1.0, %v931
    %v933 = vmul.f32 %v930, %v932
    %v934 = vadd.f32 %v930, %v933
    %vm935 = vweird.f32 %v866
    %vm936 = vweird.f32 %v930
    %vm937 = vmor %vm935, %vm936
    %v938 = vsel %vm937, %v930, %v934
    %v939 = vand.u32 2147483647, %v866
    %vm940 = vcmp.eq.f32.partialorder %v939, 8.507059e+37
    %v941 = vand.u32 %v866, 2147483648
    %v942 = vor.u32 1.1754944e-38, %v941
    %v943 = vsel %vm940, %v942, %v938
    %v944 = vmul.f32 1.0, %v943
    %v945 = vrcp.pop %v867
    %v946 = vmul.f32 %v867, %v945
    %v947 = vsub.f32 1.0, %v946
    %v948 = vmul.f32 %v945, %v947
    %v949 = vadd.f32 %v945, %v948
    %vm950 = vweird.f32 %v867
    %vm951 = vweird.f32 %v945
    %vm952 = vmor %vm950, %vm951
    %v953 = vsel %vm952, %v945, %v949
    %v954 = vand.u32 2147483647, %v867
    %vm955 = vcmp.eq.f32.partialorder %v954, 8.507059e+37
    %v956 = vand.u32 %v867, 2147483648
    %v957 = vor.u32 1.1754944e-38, %v956
    %v958 = vsel %vm955, %v957, %v953
    %v959 = vmul.f32 1.0, %v958
    %v960 = vrcp.pop %v868
    %v961 = vmul.f32 %v868, %v960
    %v962 = vsub.f32 1.0, %v961
    %v963 = vmul.f32 %v960, %v962
    %v964 = vadd.f32 %v960, %v963
    %vm965 = vweird.f32 %v868
    %vm966 = vweird.f32 %v960
    %vm967 = vmor %vm965, %vm966
    %v968 = vsel %vm967, %v960, %v964
    %v969 = vand.u32 2147483647, %v868
    %vm970 = vcmp.eq.f32.partialorder %v969, 8.507059e+37
    %v971 = vand.u32 %v868, 2147483648
    %v972 = vor.u32 1.1754944e-38, %v971
    %v973 = vsel %vm970, %v972, %v968
    %v974 = vmul.f32 1.0, %v973
    %v975 = vrcp.pop %v869
    %v976 = vmul.f32 %v869, %v975
    %v977 = vsub.f32 1.0, %v976
    %v978 = vmul.f32 %v975, %v977
    %v979 = vadd.f32 %v975, %v978
    %vm980 = vweird.f32 %v869
    %vm981 = vweird.f32 %v975
    %vm982 = vmor %vm980, %vm981
    %v983 = vsel %vm982, %v975, %v979
    %v984 = vand.u32 2147483647, %v869
    %vm985 = vcmp.eq.f32.partialorder %v984, 8.507059e+37
    %v986 = vand.u32 %v869, 2147483648
    %v987 = vor.u32 1.1754944e-38, %v986
    %v988 = vsel %vm985, %v987, %v983
    %v989 = vmul.f32 1.0, %v988
    %990 = vrot.lane.b32.xlu0 %v811, 64
    %v991 = vpop.permute.xlu0 %990
    %992 = vrot.lane.b32.xlu0 %v815, 64
    %v993 = vpop.permute.xlu0 %992
    %994 = vrot.lane.b32.xlu0 %v816, 64
    %v995 = vpop.permute.xlu0 %994
    %996 = vrot.lane.b32.xlu0 %v817, 64
    %v997 = vpop.permute.xlu0 %996
    %998 = vrot.lane.b32.xlu0 %v818, 64
    %v999 = vpop.permute.xlu0 %998
    %1000 = vrot.lane.b32.xlu0 %v819, 64
    %v1001 = vpop.permute.xlu0 %1000
    %1002 = vrot.lane.b32.xlu0 %v820, 64
    %v1003 = vpop.permute.xlu0 %1002
    %1004 = vrot.lane.b32.xlu0 %v821, 64
    %v1005 = vpop.permute.xlu0 %1004
    %v1014 = vmul.f32 %v884, %v991
    %v1015 = vmul.f32 %v899, %v993
    %v1016 = vmul.f32 %v914, %v995
    %v1017 = vmul.f32 %v929, %v997
    %v1018 = vmul.f32 %v944, %v999
    %v1019 = vmul.f32 %v959, %v1001
    %v1020 = vmul.f32 %v974, %v1003
    %v1021 = vmul.f32 %v989, %v1005
    %1030 = vrot.lane.b32.xlu0 %v1014, 64
    %v1031 = vpop.permute.xlu0 %1030
    %1032 = vrot.lane.b32.xlu0 %v1015, 64
    %v1033 = vpop.permute.xlu0 %1032
    %1034 = vrot.lane.b32.xlu0 %v1016, 64
    %v1035 = vpop.permute.xlu0 %1034
    %1036 = vrot.lane.b32.xlu0 %v1017, 64
    %v1037 = vpop.permute.xlu0 %1036
    %1038 = vrot.lane.b32.xlu0 %v1018, 64
    %v1039 = vpop.permute.xlu0 %1038
    %1040 = vrot.lane.b32.xlu0 %v1019, 64
    %v1041 = vpop.permute.xlu0 %1040
    %1042 = vrot.lane.b32.xlu0 %v1020, 64
    %v1043 = vpop.permute.xlu0 %1042
    %1044 = vrot.lane.b32.xlu0 %v1021, 64
    %v1045 = vpop.permute.xlu0 %1044
    %v1054 = vadd.f32 %v775, %v1031
    %v1055 = vadd.f32 %v776, %v1033
    %v1056 = vadd.f32 %v777, %v1035
    %v1057 = vadd.f32 %v778, %v1037
    %v1058 = vadd.f32 %v779, %v1039
    %v1059 = vadd.f32 %v780, %v1041
    %v1060 = vadd.f32 %v781, %v1043
    %v1061 = vadd.f32 %v782, %v1045
    %v1062 = vtanh.pop %v1054
    %v1063 = vtanh.pop %v1055
    %v1064 = vtanh.pop %v1056
    %v1065 = vtanh.pop %v1057
    %v1066 = vtanh.pop %v1058
    %v1067 = vtanh.pop %v1059
    %v1068 = vtanh.pop %v1060
    %v1069 = vtanh.pop %v1061
    %v1070 = vsub.f32 1.0, %v884
    %v1071 = vsub.f32 1.0, %v899
    %v1072 = vsub.f32 1.0, %v914
    %v1073 = vsub.f32 1.0, %v929
    %v1074 = vsub.f32 1.0, %v944
    %v1075 = vsub.f32 1.0, %v959
    %v1076 = vsub.f32 1.0, %v974
    %v1077 = vsub.f32 1.0, %v989
    %1086 = vrot.lane.b32.xlu0 %v1062, 96
    %v1087 = vpop.permute.xlu0 %1086
    %1088 = vrot.lane.b32.xlu0 %v1063, 96
    %v1089 = vpop.permute.xlu0 %1088
    %1090 = vrot.lane.b32.xlu0 %v1064, 96
    %v1091 = vpop.permute.xlu0 %1090
    %1092 = vrot.lane.b32.xlu0 %v1065, 96
    %v1093 = vpop.permute.xlu0 %1092
    %1094 = vrot.lane.b32.xlu0 %v1066, 96
    %v1095 = vpop.permute.xlu0 %1094
    %1096 = vrot.lane.b32.xlu0 %v1067, 96
    %v1097 = vpop.permute.xlu0 %1096
    %1098 = vrot.lane.b32.xlu0 %v1068, 96
    %v1099 = vpop.permute.xlu0 %1098
    %1100 = vrot.lane.b32.xlu0 %v1069, 96
    %v1101 = vpop.permute.xlu0 %1100
    %v1110 = vmul.f32 %v1070, %v1087
    %v1111 = vmul.f32 %v1071, %v1089
    %v1112 = vmul.f32 %v1072, %v1091
    %v1113 = vmul.f32 %v1073, %v1093
    %v1114 = vmul.f32 %v1074, %v1095
    %v1115 = vmul.f32 %v1075, %v1097
    %v1116 = vmul.f32 %v1076, %v1099
    %v1117 = vmul.f32 %v1077, %v1101
    %v1119 = vrot.slane %v700, 1
    %v1120 = vrot.slane %v700, 2
    %v1121 = vrot.slane %v700, 3
    %v1122 = vrot.slane %v700, 4
    %v1123 = vrot.slane %v700, 5
    %v1124 = vrot.slane %v700, 6
    %v1125 = vrot.slane %v700, 7
    %1126 = vrot.lane.b32.xlu0 %v700, 32
    %v1127 = vpop.permute.xlu0 %1126
    %1128 = vrot.lane.b32.xlu0 %v1119, 32
    %v1129 = vpop.permute.xlu0 %1128
    %1130 = vrot.lane.b32.xlu0 %v1120, 32
    %v1131 = vpop.permute.xlu0 %1130
    %1132 = vrot.lane.b32.xlu0 %v1121, 32
    %v1133 = vpop.permute.xlu0 %1132
    %1134 = vrot.lane.b32.xlu0 %v1122, 32
    %v1135 = vpop.permute.xlu0 %1134
    %1136 = vrot.lane.b32.xlu0 %v1123, 32
    %v1137 = vpop.permute.xlu0 %1136
    %1138 = vrot.lane.b32.xlu0 %v1124, 32
    %v1139 = vpop.permute.xlu0 %1138
    %1140 = vrot.lane.b32.xlu0 %v1125, 32
    %v1141 = vpop.permute.xlu0 %1140
    %v1150 = vmul.f32 %v884, %v1127
    %v1151 = vmul.f32 %v899, %v1129
    %v1152 = vmul.f32 %v914, %v1131
    %v1153 = vmul.f32 %v929, %v1133
    %v1154 = vmul.f32 %v944, %v1135
    %v1155 = vmul.f32 %v959, %v1137
    %v1156 = vmul.f32 %v974, %v1139
    %v1157 = vmul.f32 %v989, %v1141
    %v1158 = vadd.f32 %v1110, %v1150
    %v1159 = vadd.f32 %v1111, %v1151
    %v1160 = vadd.f32 %v1112, %v1152
    %v1161 = vadd.f32 %v1113, %v1153
    %v1162 = vadd.f32 %v1114, %v1154
    %v1163 = vadd.f32 %v1115, %v1155
    %v1164 = vadd.f32 %v1116, %v1156
    %v1165 = vadd.f32 %v1117, %v1157
    %v1166 = vpack.c.bf16 %v1158, %v1158
    %v1167 = vpack.c.bf16 %v1159, %v1159
    %v1168 = vpack.c.bf16 %v1160, %v1160
    %v1169 = vpack.c.bf16 %v1161, %v1161
    %v1170 = vpack.c.bf16 %v1162, %v1162
    %v1171 = vpack.c.bf16 %v1163, %v1163
    %v1172 = vpack.c.bf16 %v1164, %v1164
    %v1173 = vpack.c.bf16 %v1165, %v1165
    %v1182 = vunpack.c.l.b16 %v1166
    %v1183 = vunpack.c.l.b16 %v1167
    %v1184 = vunpack.c.l.b16 %v1168
    %v1185 = vunpack.c.l.b16 %v1169
    %v1186 = vunpack.c.l.b16 %v1170
    %v1187 = vunpack.c.l.b16 %v1171
    %v1188 = vunpack.c.l.b16 %v1172
    %v1189 = vunpack.c.l.b16 %v1173
    %v1190 = vrot.slane %v1183, 7
    %v1191 = vsel %vm357, %v1190, %v1182
    %v1192 = vrot.slane %v1184, 6
    %v1193 = vsel %vm359, %v1192, %v1191
    %v1194 = vrot.slane %v1185, 5
    %v1195 = vsel %vm361, %v1194, %v1193
    %v1196 = vrot.slane %v1186, 4
    %v1197 = vsel %vm363, %v1196, %v1195
    %v1198 = vrot.slane %v1187, 3
    %v1199 = vsel %vm365, %v1198, %v1197
    %v1200 = vrot.slane %v1188, 2
    %v1201 = vsel %vm367, %v1200, %v1199
    %v1202 = vrot.slane %v1189, 1
    %v1203 = vsel %vm369, %v1202, %v1201
    %v1204 = vpack.c.b16 %v1203, %v1203
    %1205 = vrot.lane.b32.xlu0 %v1204, 96
    %v1206 = vpop.permute.xlu0 %1205
    %v1208 = vsel %vm797, %v1206, 0
    %1210 = vmatpush.bf16.msra.mxu0 0
    %1211 = vmatpush.bf16.msra.mxu0 0
    %1212 = vmatpush.bf16.msra.mxu0 0
    %1213 = vmatpush.bf16.msra.mxu0 0
    %1214 = vmatpush.bf16.msra.mxu0 0
    %1215 = vmatpush.bf16.msra.mxu0 0
    %1216 = vmatpush.bf16.msra.mxu0 %v794
    %1217 = vmatpush.bf16.msra.mxu0 %v793
    %1218 = vmatmul.bf16.gmra.mxu0 %v1208
    %v1219 = vpop.f32.mrf.mxu0
    %v1220 = vadd.f32 %v784, %v1219
    %v1221 = vpop.f32.mrf.mxu0
    %1222 = vdwg.mxu0
    %v1224 = vrot.slane %v1220, 7
    %v1225 = vrot.slane %v1220, 1
    %v1226 = vrot.slane %v1220, 2
    %v1227 = vrot.slane %v1220, 3
    %v1228 = vrot.slane %v1220, 4
    %v1229 = vrot.slane %v1220, 5
    %v1230 = vrot.slane %v1220, 6
    %v1239 = vadd.f32 %v775, %v1224
    %v1240 = vadd.f32 %v776, %v1220
    %v1241 = vadd.f32 %v777, %v1225
    %v1242 = vadd.f32 %v778, %v1226
    %v1243 = vadd.f32 %v779, %v1227
    %v1244 = vadd.f32 %v780, %v1228
    %v1245 = vadd.f32 %v781, %v1229
    %v1246 = vadd.f32 %v782, %v1230
    %v1247 = vxor.u32 %v1239, 2147483648
    %v1248 = vxor.u32 %v1240, 2147483648
    %v1249 = vxor.u32 %v1241, 2147483648
    %v1250 = vxor.u32 %v1242, 2147483648
    %v1251 = vxor.u32 %v1243, 2147483648
    %v1252 = vxor.u32 %v1244, 2147483648
    %v1253 = vxor.u32 %v1245, 2147483648
    %v1254 = vxor.u32 %v1246, 2147483648
    %v1255 = vmul.f32 %v1247, 1.442695
    %v1256 = vpow.pop %v1255
    %v1257 = vmul.f32 %v1248, 1.442695
    %v1258 = vpow.pop %v1257
    %v1259 = vmul.f32 %v1249, 1.442695
    %v1260 = vpow.pop %v1259
    %v1261 = vmul.f32 %v1250, 1.442695
    %v1262 = vpow.pop %v1261
    %v1263 = vmul.f32 %v1251, 1.442695
    %v1264 = vpow.pop %v1263
    %v1265 = vmul.f32 %v1252, 1.442695
    %v1266 = vpow.pop %v1265
    %v1267 = vmul.f32 %v1253, 1.442695
    %v1268 = vpow.pop %v1267
    %v1269 = vmul.f32 %v1254, 1.442695
    %v1270 = vpow.pop %v1269
    %v1271 = vadd.f32 %v1256, 1.0
    %v1272 = vadd.f32 %v1258, 1.0
    %v1273 = vadd.f32 %v1260, 1.0
    %v1274 = vadd.f32 %v1262, 1.0
    %v1275 = vadd.f32 %v1264, 1.0
    %v1276 = vadd.f32 %v1266, 1.0
    %v1277 = vadd.f32 %v1268, 1.0
    %v1278 = vadd.f32 %v1270, 1.0
    %v1279 = vrcp.pop %v1271
    %v1280 = vmul.f32 %v1271, %v1279
    %v1281 = vsub.f32 1.0, %v1280
    %v1282 = vmul.f32 %v1279, %v1281
    %v1283 = vadd.f32 %v1279, %v1282
    %vm1284 = vweird.f32 %v1271
    %vm1285 = vweird.f32 %v1279
    %vm1286 = vmor %vm1284, %vm1285
    %v1287 = vsel %vm1286, %v1279, %v1283
    %v1288 = vand.u32 2147483647, %v1271
    %vm1289 = vcmp.eq.f32.partialorder %v1288, 8.507059e+37
    %v1290 = vand.u32 %v1271, 2147483648
    %v1291 = vor.u32 1.1754944e-38, %v1290
    %v1292 = vsel %vm1289, %v1291, %v1287
    %v1293 = vmul.f32 1.0, %v1292
    %v1294 = vrcp.pop %v1272
    %v1295 = vmul.f32 %v1272, %v1294
    %v1296 = vsub.f32 1.0, %v1295
    %v1297 = vmul.f32 %v1294, %v1296
    %v1298 = vadd.f32 %v1294, %v1297
    %vm1299 = vweird.f32 %v1272
    %vm1300 = vweird.f32 %v1294
    %vm1301 = vmor %vm1299, %vm1300
    %v1302 = vsel %vm1301, %v1294, %v1298
    %v1303 = vand.u32 2147483647, %v1272
    %vm1304 = vcmp.eq.f32.partialorder %v1303, 8.507059e+37
    %v1305 = vand.u32 %v1272, 2147483648
    %v1306 = vor.u32 1.1754944e-38, %v1305
    %v1307 = vsel %vm1304, %v1306, %v1302
    %v1308 = vmul.f32 1.0, %v1307
    %v1309 = vrcp.pop %v1273
    %v1310 = vmul.f32 %v1273, %v1309
    %v1311 = vsub.f32 1.0, %v1310
    %v1312 = vmul.f32 %v1309, %v1311
    %v1313 = vadd.f32 %v1309, %v1312
    %vm1314 = vweird.f32 %v1273
    %vm1315 = vweird.f32 %v1309
    %vm1316 = vmor %vm1314, %vm1315
    %v1317 = vsel %vm1316, %v1309, %v1313
    %v1318 = vand.u32 2147483647, %v1273
    %vm1319 = vcmp.eq.f32.partialorder %v1318, 8.507059e+37
    %v1320 = vand.u32 %v1273, 2147483648
    %v1321 = vor.u32 1.1754944e-38, %v1320
    %v1322 = vsel %vm1319, %v1321, %v1317
    %v1323 = vmul.f32 1.0, %v1322
    %v1324 = vrcp.pop %v1274
    %v1325 = vmul.f32 %v1274, %v1324
    %v1326 = vsub.f32 1.0, %v1325
    %v1327 = vmul.f32 %v1324, %v1326
    %v1328 = vadd.f32 %v1324, %v1327
    %vm1329 = vweird.f32 %v1274
    %vm1330 = vweird.f32 %v1324
    %vm1331 = vmor %vm1329, %vm1330
    %v1332 = vsel %vm1331, %v1324, %v1328
    %v1333 = vand.u32 2147483647, %v1274
    %vm1334 = vcmp.eq.f32.partialorder %v1333, 8.507059e+37
    %v1335 = vand.u32 %v1274, 2147483648
    %v1336 = vor.u32 1.1754944e-38, %v1335
    %v1337 = vsel %vm1334, %v1336, %v1332
    %v1338 = vmul.f32 1.0, %v1337
    %v1339 = vrcp.pop %v1275
    %v1340 = vmul.f32 %v1275, %v1339
    %v1341 = vsub.f32 1.0, %v1340
    %v1342 = vmul.f32 %v1339, %v1341
    %v1343 = vadd.f32 %v1339, %v1342
    %vm1344 = vweird.f32 %v1275
    %vm1345 = vweird.f32 %v1339
    %vm1346 = vmor %vm1344, %vm1345
    %v1347 = vsel %vm1346, %v1339, %v1343
    %v1348 = vand.u32 2147483647, %v1275
    %vm1349 = vcmp.eq.f32.partialorder %v1348, 8.507059e+37
    %v1350 = vand.u32 %v1275, 2147483648
    %v1351 = vor.u32 1.1754944e-38, %v1350
    %v1352 = vsel %vm1349, %v1351, %v1347
    %v1353 = vmul.f32 1.0, %v1352
    %v1354 = vrcp.pop %v1276
    %v1355 = vmul.f32 %v1276, %v1354
    %v1356 = vsub.f32 1.0, %v1355
    %v1357 = vmul.f32 %v1354, %v1356
    %v1358 = vadd.f32 %v1354, %v1357
    %vm1359 = vweird.f32 %v1276
    %vm1360 = vweird.f32 %v1354
    %vm1361 = vmor %vm1359, %vm1360
    %v1362 = vsel %vm1361, %v1354, %v1358
    %v1363 = vand.u32 2147483647, %v1276
    %vm1364 = vcmp.eq.f32.partialorder %v1363, 8.507059e+37
    %v1365 = vand.u32 %v1276, 2147483648
    %v1366 = vor.u32 1.1754944e-38, %v1365
    %v1367 = vsel %vm1364, %v1366, %v1362
    %v1368 = vmul.f32 1.0, %v1367
    %v1369 = vrcp.pop %v1277
    %v1370 = vmul.f32 %v1277, %v1369
    %v1371 = vsub.f32 1.0, %v1370
    %v1372 = vmul.f32 %v1369, %v1371
    %v1373 = vadd.f32 %v1369, %v1372
    %vm1374 = vweird.f32 %v1277
    %vm1375 = vweird.f32 %v1369
    %vm1376 = vmor %vm1374, %vm1375
    %v1377 = vsel %vm1376, %v1369, %v1373
    %v1378 = vand.u32 2147483647, %v1277
    %vm1379 = vcmp.eq.f32.partialorder %v1378, 8.507059e+37
    %v1380 = vand.u32 %v1277, 2147483648
    %v1381 = vor.u32 1.1754944e-38, %v1380
    %v1382 = vsel %vm1379, %v1381, %v1377
    %v1383 = vmul.f32 1.0, %v1382
    %v1384 = vrcp.pop %v1278
    %v1385 = vmul.f32 %v1278, %v1384
    %v1386 = vsub.f32 1.0, %v1385
    %v1387 = vmul.f32 %v1384, %v1386
    %v1388 = vadd.f32 %v1384, %v1387
    %vm1389 = vweird.f32 %v1278
    %vm1390 = vweird.f32 %v1384
    %vm1391 = vmor %vm1389, %vm1390
    %v1392 = vsel %vm1391, %v1384, %v1388
    %v1393 = vand.u32 2147483647, %v1278
    %vm1394 = vcmp.eq.f32.partialorder %v1393, 8.507059e+37
    %v1395 = vand.u32 %v1278, 2147483648
    %v1396 = vor.u32 1.1754944e-38, %v1395
    %v1397 = vsel %vm1394, %v1396, %v1392
    %v1398 = vmul.f32 1.0, %v1397
    %1399 = vrot.lane.b32.xlu0 %v1224, 64
    %v1400 = vpop.permute.xlu0 %1399
    %1401 = vrot.lane.b32.xlu0 %v1220, 64
    %v1402 = vpop.permute.xlu0 %1401
    %1403 = vrot.lane.b32.xlu0 %v1225, 64
    %v1404 = vpop.permute.xlu0 %1403
    %1405 = vrot.lane.b32.xlu0 %v1226, 64
    %v1406 = vpop.permute.xlu0 %1405
    %1407 = vrot.lane.b32.xlu0 %v1227, 64
    %v1408 = vpop.permute.xlu0 %1407
    %1409 = vrot.lane.b32.xlu0 %v1228, 64
    %v1410 = vpop.permute.xlu0 %1409
    %1411 = vrot.lane.b32.xlu0 %v1229, 64
    %v1412 = vpop.permute.xlu0 %1411
    %1413 = vrot.lane.b32.xlu0 %v1230, 64
    %v1414 = vpop.permute.xlu0 %1413
    %v1423 = vmul.f32 %v1293, %v1400
    %v1424 = vmul.f32 %v1308, %v1402
    %v1425 = vmul.f32 %v1323, %v1404
    %v1426 = vmul.f32 %v1338, %v1406
    %v1427 = vmul.f32 %v1353, %v1408
    %v1428 = vmul.f32 %v1368, %v1410
    %v1429 = vmul.f32 %v1383, %v1412
    %v1430 = vmul.f32 %v1398, %v1414
    %1439 = vrot.lane.b32.xlu0 %v1423, 64
    %v1440 = vpop.permute.xlu0 %1439
    %1441 = vrot.lane.b32.xlu0 %v1424, 64
    %v1442 = vpop.permute.xlu0 %1441
    %1443 = vrot.lane.b32.xlu0 %v1425, 64
    %v1444 = vpop.permute.xlu0 %1443
    %1445 = vrot.lane.b32.xlu0 %v1426, 64
    %v1446 = vpop.permute.xlu0 %1445
    %1447 = vrot.lane.b32.xlu0 %v1427, 64
    %v1448 = vpop.permute.xlu0 %1447
    %1449 = vrot.lane.b32.xlu0 %v1428, 64
    %v1450 = vpop.permute.xlu0 %1449
    %1451 = vrot.lane.b32.xlu0 %v1429, 64
    %v1452 = vpop.permute.xlu0 %1451
    %1453 = vrot.lane.b32.xlu0 %v1430, 64
    %v1454 = vpop.permute.xlu0 %1453
    %v1463 = vadd.f32 %v775, %v1440
    %v1464 = vadd.f32 %v776, %v1442
    %v1465 = vadd.f32 %v777, %v1444
    %v1466 = vadd.f32 %v778, %v1446
    %v1467 = vadd.f32 %v779, %v1448
    %v1468 = vadd.f32 %v780, %v1450
    %v1469 = vadd.f32 %v781, %v1452
    %v1470 = vadd.f32 %v782, %v1454
    %v1471 = vtanh.pop %v1463
    %v1472 = vtanh.pop %v1464
    %v1473 = vtanh.pop %v1465
    %v1474 = vtanh.pop %v1466
    %v1475 = vtanh.pop %v1467
    %v1476 = vtanh.pop %v1468
    %v1477 = vtanh.pop %v1469
    %v1478 = vtanh.pop %v1470
    %v1479 = vsub.f32 1.0, %v1293
    %v1480 = vsub.f32 1.0, %v1308
    %v1481 = vsub.f32 1.0, %v1323
    %v1482 = vsub.f32 1.0, %v1338
    %v1483 = vsub.f32 1.0, %v1353
    %v1484 = vsub.f32 1.0, %v1368
    %v1485 = vsub.f32 1.0, %v1383
    %v1486 = vsub.f32 1.0, %v1398
    %1495 = vrot.lane.b32.xlu0 %v1471, 96
    %v1496 = vpop.permute.xlu0 %1495
    %1497 = vrot.lane.b32.xlu0 %v1472, 96
    %v1498 = vpop.permute.xlu0 %1497
    %1499 = vrot.lane.b32.xlu0 %v1473, 96
    %v1500 = vpop.permute.xlu0 %1499
    %1501 = vrot.lane.b32.xlu0 %v1474, 96
    %v1502 = vpop.permute.xlu0 %1501
    %1503 = vrot.lane.b32.xlu0 %v1475, 96
    %v1504 = vpop.permute.xlu0 %1503
    %1505 = vrot.lane.b32.xlu0 %v1476, 96
    %v1506 = vpop.permute.xlu0 %1505
    %1507 = vrot.lane.b32.xlu0 %v1477, 96
    %v1508 = vpop.permute.xlu0 %1507
    %1509 = vrot.lane.b32.xlu0 %v1478, 96
    %v1510 = vpop.permute.xlu0 %1509
    %v1519 = vmul.f32 %v1479, %v1496
    %v1520 = vmul.f32 %v1480, %v1498
    %v1521 = vmul.f32 %v1481, %v1500
    %v1522 = vmul.f32 %v1482, %v1502
    %v1523 = vmul.f32 %v1483, %v1504
    %v1524 = vmul.f32 %v1484, %v1506
    %v1525 = vmul.f32 %v1485, %v1508
    %v1526 = vmul.f32 %v1486, %v1510
    %v1535 = vrot.slane %v1158, 7
    %v1536 = vrot.slane %v1159, 7
    %v1537 = vrot.slane %v1160, 7
    %v1538 = vrot.slane %v1161, 7
    %v1539 = vrot.slane %v1162, 7
    %v1540 = vrot.slane %v1163, 7
    %v1541 = vrot.slane %v1164, 7
    %v1542 = vrot.slane %v1165, 7
    %v1551 = vmul.f32 %v1293, %v1535
    %v1552 = vmul.f32 %v1308, %v1536
    %v1553 = vmul.f32 %v1323, %v1537
    %v1554 = vmul.f32 %v1338, %v1538
    %v1555 = vmul.f32 %v1353, %v1539
    %v1556 = vmul.f32 %v1368, %v1540
    %v1557 = vmul.f32 %v1383, %v1541
    %v1558 = vmul.f32 %v1398, %v1542
    %v1559 = vadd.f32 %v1519, %v1551
    %v1560 = vadd.f32 %v1520, %v1552
    %v1561 = vadd.f32 %v1521, %v1553
    %v1562 = vadd.f32 %v1522, %v1554
    %v1563 = vadd.f32 %v1523, %v1555
    %v1564 = vadd.f32 %v1524, %v1556
    %v1565 = vadd.f32 %v1525, %v1557
    %v1566 = vadd.f32 %v1526, %v1558
    %v1567 = vpack.c.bf16 %v1559, %v1559
    %v1568 = vpack.c.bf16 %v1560, %v1560
    %v1569 = vpack.c.bf16 %v1561, %v1561
    %v1570 = vpack.c.bf16 %v1562, %v1562
    %v1571 = vpack.c.bf16 %v1563, %v1563
    %v1572 = vpack.c.bf16 %v1564, %v1564
    %v1573 = vpack.c.bf16 %v1565, %v1565
    %v1574 = vpack.c.bf16 %v1566, %v1566
    %v1583 = vunpack.c.l.b16 %v1567
    %v1584 = vunpack.c.l.b16 %v1568
    %v1585 = vunpack.c.l.b16 %v1569
    %v1586 = vunpack.c.l.b16 %v1570
    %v1587 = vunpack.c.l.b16 %v1571
    %v1588 = vunpack.c.l.b16 %v1572
    %v1589 = vunpack.c.l.b16 %v1573
    %v1590 = vunpack.c.l.b16 %v1574
    %v1591 = vrot.slane %v1583, 1
    %v1592 = vsel %vm357, %v1584, %v1591
    %v1593 = vrot.slane %v1585, 7
    %v1594 = vsel %vm359, %v1593, %v1592
    %v1595 = vrot.slane %v1586, 6
    %v1596 = vsel %vm361, %v1595, %v1594
    %v1597 = vrot.slane %v1587, 5
    %v1598 = vsel %vm363, %v1597, %v1596
    %v1599 = vrot.slane %v1588, 4
    %v1600 = vsel %vm365, %v1599, %v1598
    %v1601 = vrot.slane %v1589, 3
    %v1602 = vsel %vm367, %v1601, %v1600
    %v1603 = vrot.slane %v1590, 2
    %v1604 = vsel %vm369, %v1603, %v1602
    %v1605 = vpack.c.b16 %v1604, %v1604
    %1606 = vrot.lane.b32.xlu0 %v1605, 96
    %v1607 = vpop.permute.xlu0 %1606
    %v1609 = vsel %vm797, %v1607, 0
    %1611 = vmatpush.bf16.msra.mxu0 0
    %1612 = vmatpush.bf16.msra.mxu0 0
    %1613 = vmatpush.bf16.msra.mxu0 0
    %1614 = vmatpush.bf16.msra.mxu0 0
    %1615 = vmatpush.bf16.msra.mxu0 0
    %1616 = vmatpush.bf16.msra.mxu0 0
    %1617 = vmatpush.bf16.msra.mxu0 %v794
    %1618 = vmatpush.bf16.msra.mxu0 %v793
    %1619 = vmatmul.bf16.gmra.mxu0 %v1609
    %v1620 = vpop.f32.mrf.mxu0
    %v1621 = vadd.f32 %v784, %v1620
    %v1622 = vpop.f32.mrf.mxu0
    %1623 = vdwg.mxu0
    %v1625 = vrot.slane %v1621, 6
    %v1626 = vrot.slane %v1621, 7
    %v1627 = vrot.slane %v1621, 1
    %v1628 = vrot.slane %v1621, 2
    %v1629 = vrot.slane %v1621, 3
    %v1630 = vrot.slane %v1621, 4
    %v1631 = vrot.slane %v1621, 5
    %v1640 = vadd.f32 %v775, %v1625
    %v1641 = vadd.f32 %v776, %v1626
    %v1642 = vadd.f32 %v777, %v1621
    %v1643 = vadd.f32 %v778, %v1627
    %v1644 = vadd.f32 %v779, %v1628
    %v1645 = vadd.f32 %v780, %v1629
    %v1646 = vadd.f32 %v781, %v1630
    %v1647 = vadd.f32 %v782, %v1631
    %v1648 = vxor.u32 %v1640, 2147483648
    %v1649 = vxor.u32 %v1641, 2147483648
    %v1650 = vxor.u32 %v1642, 2147483648
    %v1651 = vxor.u32 %v1643, 2147483648
    %v1652 = vxor.u32 %v1644, 2147483648
    %v1653 = vxor.u32 %v1645, 2147483648
    %v1654 = vxor.u32 %v1646, 2147483648
    %v1655 = vxor.u32 %v1647, 2147483648
    %v1656 = vmul.f32 %v1648, 1.442695
    %v1657 = vpow.pop %v1656
    %v1658 = vmul.f32 %v1649, 1.442695
    %v1659 = vpow.pop %v1658
    %v1660 = vmul.f32 %v1650, 1.442695
    %v1661 = vpow.pop %v1660
    %v1662 = vmul.f32 %v1651, 1.442695
    %v1663 = vpow.pop %v1662
    %v1664 = vmul.f32 %v1652, 1.442695
    %v1665 = vpow.pop %v1664
    %v1666 = vmul.f32 %v1653, 1.442695
    %v1667 = vpow.pop %v1666
    %v1668 = vmul.f32 %v1654, 1.442695
    %v1669 = vpow.pop %v1668
    %v1670 = vmul.f32 %v1655, 1.442695
    %v1671 = vpow.pop %v1670
    %v1672 = vadd.f32 %v1657, 1.0
    %v1673 = vadd.f32 %v1659, 1.0
    %v1674 = vadd.f32 %v1661, 1.0
    %v1675 = vadd.f32 %v1663, 1.0
    %v1676 = vadd.f32 %v1665, 1.0
    %v1677 = vadd.f32 %v1667, 1.0
    %v1678 = vadd.f32 %v1669, 1.0
    %v1679 = vadd.f32 %v1671, 1.0
    %v1680 = vrcp.pop %v1672
    %v1681 = vmul.f32 %v1672, %v1680
    %v1682 = vsub.f32 1.0, %v1681
    %v1683 = vmul.f32 %v1680, %v1682
    %v1684 = vadd.f32 %v1680, %v1683
    %vm1685 = vweird.f32 %v1672
    %vm1686 = vweird.f32 %v1680
    %vm1687 = vmor %vm1685, %vm1686
    %v1688 = vsel %vm1687, %v1680, %v1684
    %v1689 = vand.u32 2147483647, %v1672
    %vm1690 = vcmp.eq.f32.partialorder %v1689, 8.507059e+37
    %v1691 = vand.u32 %v1672, 2147483648
    %v1692 = vor.u32 1.1754944e-38, %v1691
    %v1693 = vsel %vm1690, %v1692, %v1688
    %v1694 = vmul.f32 1.0, %v1693
    %v1695 = vrcp.pop %v1673
    %v1696 = vmul.f32 %v1673, %v1695
    %v1697 = vsub.f32 1.0, %v1696
    %v1698 = vmul.f32 %v1695, %v1697
    %v1699 = vadd.f32 %v1695, %v1698
    %vm1700 = vweird.f32 %v1673
    %vm1701 = vweird.f32 %v1695
    %vm1702 = vmor %vm1700, %vm1701
    %v1703 = vsel %vm1702, %v1695, %v1699
    %v1704 = vand.u32 2147483647, %v1673
    %vm1705 = vcmp.eq.f32.partialorder %v1704, 8.507059e+37
    %v1706 = vand.u32 %v1673, 2147483648
    %v1707 = vor.u32 1.1754944e-38, %v1706
    %v1708 = vsel %vm1705, %v1707, %v1703
    %v1709 = vmul.f32 1.0, %v1708
    %v1710 = vrcp.pop %v1674
    %v1711 = vmul.f32 %v1674, %v1710
    %v1712 = vsub.f32 1.0, %v1711
    %v1713 = vmul.f32 %v1710, %v1712
    %v1714 = vadd.f32 %v1710, %v1713
    %vm1715 = vweird.f32 %v1674
    %vm1716 = vweird.f32 %v1710
    %vm1717 = vmor %vm1715, %vm1716
    %v1718 = vsel %vm1717, %v1710, %v1714
    %v1719 = vand.u32 2147483647, %v1674
    %vm1720 = vcmp.eq.f32.partialorder %v1719, 8.507059e+37
    %v1721 = vand.u32 %v1674, 2147483648
    %v1722 = vor.u32 1.1754944e-38, %v1721
    %v1723 = vsel %vm1720, %v1722, %v1718
    %v1724 = vmul.f32 1.0, %v1723
    %v1725 = vrcp.pop %v1675
    %v1726 = vmul.f32 %v1675, %v1725
    %v1727 = vsub.f32 1.0, %v1726
    %v1728 = vmul.f32 %v1725, %v1727
    %v1729 = vadd.f32 %v1725, %v1728
    %vm1730 = vweird.f32 %v1675
    %vm1731 = vweird.f32 %v1725
    %vm1732 = vmor %vm1730, %vm1731
    %v1733 = vsel %vm1732, %v1725, %v1729
    %v1734 = vand.u32 2147483647, %v1675
    %vm1735 = vcmp.eq.f32.partialorder %v1734, 8.507059e+37
    %v1736 = vand.u32 %v1675, 2147483648
    %v1737 = vor.u32 1.1754944e-38, %v1736
    %v1738 = vsel %vm1735, %v1737, %v1733
    %v1739 = vmul.f32 1.0, %v1738
    %v1740 = vrcp.pop %v1676
    %v1741 = vmul.f32 %v1676, %v1740
    %v1742 = vsub.f32 1.0, %v1741
    %v1743 = vmul.f32 %v1740, %v1742
    %v1744 = vadd.f32 %v1740, %v1743
    %vm1745 = vweird.f32 %v1676
    %vm1746 = vweird.f32 %v1740
    %vm1747 = vmor %vm1745, %vm1746
    %v1748 = vsel %vm1747, %v1740, %v1744
    %v1749 = vand.u32 2147483647, %v1676
    %vm1750 = vcmp.eq.f32.partialorder %v1749, 8.507059e+37
    %v1751 = vand.u32 %v1676, 2147483648
    %v1752 = vor.u32 1.1754944e-38, %v1751
    %v1753 = vsel %vm1750, %v1752, %v1748
    %v1754 = vmul.f32 1.0, %v1753
    %v1755 = vrcp.pop %v1677
    %v1756 = vmul.f32 %v1677, %v1755
    %v1757 = vsub.f32 1.0, %v1756
    %v1758 = vmul.f32 %v1755, %v1757
    %v1759 = vadd.f32 %v1755, %v1758
    %vm1760 = vweird.f32 %v1677
    %vm1761 = vweird.f32 %v1755
    %vm1762 = vmor %vm1760, %vm1761
    %v1763 = vsel %vm1762, %v1755, %v1759
    %v1764 = vand.u32 2147483647, %v1677
    %vm1765 = vcmp.eq.f32.partialorder %v1764, 8.507059e+37
    %v1766 = vand.u32 %v1677, 2147483648
    %v1767 = vor.u32 1.1754944e-38, %v1766
    %v1768 = vsel %vm1765, %v1767, %v1763
    %v1769 = vmul.f32 1.0, %v1768
    %v1770 = vrcp.pop %v1678
    %v1771 = vmul.f32 %v1678, %v1770
    %v1772 = vsub.f32 1.0, %v1771
    %v1773 = vmul.f32 %v1770, %v1772
    %v1774 = vadd.f32 %v1770, %v1773
    %vm1775 = vweird.f32 %v1678
    %vm1776 = vweird.f32 %v1770
    %vm1777 = vmor %vm1775, %vm1776
    %v1778 = vsel %vm1777, %v1770, %v1774
    %v1779 = vand.u32 2147483647, %v1678
    %vm1780 = vcmp.eq.f32.partialorder %v1779, 8.507059e+37
    %v1781 = vand.u32 %v1678, 2147483648
    %v1782 = vor.u32 1.1754944e-38, %v1781
    %v1783 = vsel %vm1780, %v1782, %v1778
    %v1784 = vmul.f32 1.0, %v1783
    %v1785 = vrcp.pop %v1679
    %v1786 = vmul.f32 %v1679, %v1785
    %v1787 = vsub.f32 1.0, %v1786
    %v1788 = vmul.f32 %v1785, %v1787
    %v1789 = vadd.f32 %v1785, %v1788
    %vm1790 = vweird.f32 %v1679
    %vm1791 = vweird.f32 %v1785
    %vm1792 = vmor %vm1790, %vm1791
    %v1793 = vsel %vm1792, %v1785, %v1789
    %v1794 = vand.u32 2147483647, %v1679
    %vm1795 = vcmp.eq.f32.partialorder %v1794, 8.507059e+37
    %v1796 = vand.u32 %v1679, 2147483648
    %v1797 = vor.u32 1.1754944e-38, %v1796
    %v1798 = vsel %vm1795, %v1797, %v1793
    %v1799 = vmul.f32 1.0, %v1798
    %1800 = vrot.lane.b32.xlu0 %v1625, 64
    %v1801 = vpop.permute.xlu0 %1800
    %1802 = vrot.lane.b32.xlu0 %v1626, 64
    %v1803 = vpop.permute.xlu0 %1802
    %1804 = vrot.lane.b32.xlu0 %v1621, 64
    %v1805 = vpop.permute.xlu0 %1804
    %1806 = vrot.lane.b32.xlu0 %v1627, 64
    %v1807 = vpop.permute.xlu0 %1806
    %1808 = vrot.lane.b32.xlu0 %v1628, 64
    %v1809 = vpop.permute.xlu0 %1808
    %1810 = vrot.lane.b32.xlu0 %v1629, 64
    %v1811 = vpop.permute.xlu0 %1810
    %1812 = vrot.lane.b32.xlu0 %v1630, 64
    %v1813 = vpop.permute.xlu0 %1812
    %1814 = vrot.lane.b32.xlu0 %v1631, 64
    %v1815 = vpop.permute.xlu0 %1814
    %v1824 = vmul.f32 %v1694, %v1801
    %v1825 = vmul.f32 %v1709, %v1803
    %v1826 = vmul.f32 %v1724, %v1805
    %v1827 = vmul.f32 %v1739, %v1807
    %v1828 = vmul.f32 %v1754, %v1809
    %v1829 = vmul.f32 %v1769, %v1811
    %v1830 = vmul.f32 %v1784, %v1813
    %v1831 = vmul.f32 %v1799, %v1815
    %1840 = vrot.lane.b32.xlu0 %v1824, 64
    %v1841 = vpop.permute.xlu0 %1840
    %1842 = vrot.lane.b32.xlu0 %v1825, 64
    %v1843 = vpop.permute.xlu0 %1842
    %1844 = vrot.lane.b32.xlu0 %v1826, 64
    %v1845 = vpop.permute.xlu0 %1844
    %1846 = vrot.lane.b32.xlu0 %v1827, 64
    %v1847 = vpop.permute.xlu0 %1846
    %1848 = vrot.lane.b32.xlu0 %v1828, 64
    %v1849 = vpop.permute.xlu0 %1848
    %1850 = vrot.lane.b32.xlu0 %v1829, 64
    %v1851 = vpop.permute.xlu0 %1850
    %1852 = vrot.lane.b32.xlu0 %v1830, 64
    %v1853 = vpop.permute.xlu0 %1852
    %1854 = vrot.lane.b32.xlu0 %v1831, 64
    %v1855 = vpop.permute.xlu0 %1854
    %v1864 = vadd.f32 %v775, %v1841
    %v1865 = vadd.f32 %v776, %v1843
    %v1866 = vadd.f32 %v777, %v1845
    %v1867 = vadd.f32 %v778, %v1847
    %v1868 = vadd.f32 %v779, %v1849
    %v1869 = vadd.f32 %v780, %v1851
    %v1870 = vadd.f32 %v781, %v1853
    %v1871 = vadd.f32 %v782, %v1855
    %v1872 = vtanh.pop %v1864
    %v1873 = vtanh.pop %v1865
    %v1874 = vtanh.pop %v1866
    %v1875 = vtanh.pop %v1867
    %v1876 = vtanh.pop %v1868
    %v1877 = vtanh.pop %v1869
    %v1878 = vtanh.pop %v1870
    %v1879 = vtanh.pop %v1871
    %v1880 = vsub.f32 1.0, %v1694
    %v1881 = vsub.f32 1.0, %v1709
    %v1882 = vsub.f32 1.0, %v1724
    %v1883 = vsub.f32 1.0, %v1739
    %v1884 = vsub.f32 1.0, %v1754
    %v1885 = vsub.f32 1.0, %v1769
    %v1886 = vsub.f32 1.0, %v1784
    %v1887 = vsub.f32 1.0, %v1799
    %1896 = vrot.lane.b32.xlu0 %v1872, 96
    %v1897 = vpop.permute.xlu0 %1896
    %1898 = vrot.lane.b32.xlu0 %v1873, 96
    %v1899 = vpop.permute.xlu0 %1898
    %1900 = vrot.lane.b32.xlu0 %v1874, 96
    %v1901 = vpop.permute.xlu0 %1900
    %1902 = vrot.lane.b32.xlu0 %v1875, 96
    %v1903 = vpop.permute.xlu0 %1902
    %1904 = vrot.lane.b32.xlu0 %v1876, 96
    %v1905 = vpop.permute.xlu0 %1904
    %1906 = vrot.lane.b32.xlu0 %v1877, 96
    %v1907 = vpop.permute.xlu0 %1906
    %1908 = vrot.lane.b32.xlu0 %v1878, 96
    %v1909 = vpop.permute.xlu0 %1908
    %1910 = vrot.lane.b32.xlu0 %v1879, 96
    %v1911 = vpop.permute.xlu0 %1910
    %v1920 = vmul.f32 %v1880, %v1897
    %v1921 = vmul.f32 %v1881, %v1899
    %v1922 = vmul.f32 %v1882, %v1901
    %v1923 = vmul.f32 %v1883, %v1903
    %v1924 = vmul.f32 %v1884, %v1905
    %v1925 = vmul.f32 %v1885, %v1907
    %v1926 = vmul.f32 %v1886, %v1909
    %v1927 = vmul.f32 %v1887, %v1911
    %v1936 = vrot.slane %v1559, 7
    %v1937 = vrot.slane %v1560, 7
    %v1938 = vrot.slane %v1561, 7
    %v1939 = vrot.slane %v1562, 7
    %v1940 = vrot.slane %v1563, 7
    %v1941 = vrot.slane %v1564, 7
    %v1942 = vrot.slane %v1565, 7
    %v1943 = vrot.slane %v1566, 7
    %v1952 = vmul.f32 %v1694, %v1936
    %v1953 = vmul.f32 %v1709, %v1937
    %v1954 = vmul.f32 %v1724, %v1938
    %v1955 = vmul.f32 %v1739, %v1939
    %v1956 = vmul.f32 %v1754, %v1940
    %v1957 = vmul.f32 %v1769, %v1941
    %v1958 = vmul.f32 %v1784, %v1942
    %v1959 = vmul.f32 %v1799, %v1943
    %v1960 = vadd.f32 %v1920, %v1952
    %v1961 = vadd.f32 %v1921, %v1953
    %v1962 = vadd.f32 %v1922, %v1954
    %v1963 = vadd.f32 %v1923, %v1955
    %v1964 = vadd.f32 %v1924, %v1956
    %v1965 = vadd.f32 %v1925, %v1957
    %v1966 = vadd.f32 %v1926, %v1958
    %v1967 = vadd.f32 %v1927, %v1959
    %v1968 = vpack.c.bf16 %v1960, %v1960
    %v1969 = vpack.c.bf16 %v1961, %v1961
    %v1970 = vpack.c.bf16 %v1962, %v1962
    %v1971 = vpack.c.bf16 %v1963, %v1963
    %v1972 = vpack.c.bf16 %v1964, %v1964
    %v1973 = vpack.c.bf16 %v1965, %v1965
    %v1974 = vpack.c.bf16 %v1966, %v1966
    %v1975 = vpack.c.bf16 %v1967, %v1967
    %v1984 = vunpack.c.l.b16 %v1968
    %v1985 = vunpack.c.l.b16 %v1969
    %v1986 = vunpack.c.l.b16 %v1970
    %v1987 = vunpack.c.l.b16 %v1971
    %v1988 = vunpack.c.l.b16 %v1972
    %v1989 = vunpack.c.l.b16 %v1973
    %v1990 = vunpack.c.l.b16 %v1974
    %v1991 = vunpack.c.l.b16 %v1975
    %v1992 = vrot.slane %v1984, 2
    %v1993 = vrot.slane %v1985, 1
    %v1994 = vsel %vm357, %v1993, %v1992
    %v1995 = vsel %vm359, %v1986, %v1994
    %v1996 = vrot.slane %v1987, 7
    %v1997 = vsel %vm361, %v1996, %v1995
    %v1998 = vrot.slane %v1988, 6
    %v1999 = vsel %vm363, %v1998, %v1997
    %v2000 = vrot.slane %v1989, 5
    %v2001 = vsel %vm365, %v2000, %v1999
    %v2002 = vrot.slane %v1990, 4
    %v2003 = vsel %vm367, %v2002, %v2001
    %v2004 = vrot.slane %v1991, 3
    %v2005 = vsel %vm369, %v2004, %v2003
    %v2006 = vpack.c.b16 %v2005, %v2005
    %2007 = vrot.lane.b32.xlu0 %v2006, 96
    %v2008 = vpop.permute.xlu0 %2007
    %v2010 = vsel %vm797, %v2008, 0
    %2012 = vmatpush.bf16.msra.mxu0 0
    %2013 = vmatpush.bf16.msra.mxu0 0
    %2014 = vmatpush.bf16.msra.mxu0 0
    %2015 = vmatpush.bf16.msra.mxu0 0
    %2016 = vmatpush.bf16.msra.mxu0 0
    %2017 = vmatpush.bf16.msra.mxu0 0
    %2018 = vmatpush.bf16.msra.mxu0 %v794
    %2019 = vmatpush.bf16.msra.mxu0 %v793
    %2020 = vmatmul.bf16.gmra.mxu0 %v2010
    %v2021 = vpop.f32.mrf.mxu0
    %v2022 = vadd.f32 %v784, %v2021
    %v2023 = vpop.f32.mrf.mxu0
    %2024 = vdwg.mxu0
    %v2026 = vrot.slane %v2022, 5
    %v2027 = vrot.slane %v2022, 6
    %v2028 = vrot.slane %v2022, 7
    %v2029 = vrot.slane %v2022, 1
    %v2030 = vrot.slane %v2022, 2
    %v2031 = vrot.slane %v2022, 3
    %v2032 = vrot.slane %v2022, 4
    %v2041 = vadd.f32 %v775, %v2026
    %v2042 = vadd.f32 %v776, %v2027
    %v2043 = vadd.f32 %v777, %v2028
    %v2044 = vadd.f32 %v778, %v2022
    %v2045 = vadd.f32 %v779, %v2029
    %v2046 = vadd.f32 %v780, %v2030
    %v2047 = vadd.f32 %v781, %v2031
    %v2048 = vadd.f32 %v782, %v2032
    %v2049 = vxor.u32 %v2041, 2147483648
    %v2050 = vxor.u32 %v2042, 2147483648
    %v2051 = vxor.u32 %v2043, 2147483648
    %v2052 = vxor.u32 %v2044, 2147483648
    %v2053 = vxor.u32 %v2045, 2147483648
    %v2054 = vxor.u32 %v2046, 2147483648
    %v2055 = vxor.u32 %v2047, 2147483648
    %v2056 = vxor.u32 %v2048, 2147483648
    %v2057 = vmul.f32 %v2049, 1.442695
    %v2058 = vpow.pop %v2057
    %v2059 = vmul.f32 %v2050, 1.442695
    %v2060 = vpow.pop %v2059
    %v2061 = vmul.f32 %v2051, 1.442695
    %v2062 = vpow.pop %v2061
    %v2063 = vmul.f32 %v2052, 1.442695
    %v2064 = vpow.pop %v2063
    %v2065 = vmul.f32 %v2053, 1.442695
    %v2066 = vpow.pop %v2065
    %v2067 = vmul.f32 %v2054, 1.442695
    %v2068 = vpow.pop %v2067
    %v2069 = vmul.f32 %v2055, 1.442695
    %v2070 = vpow.pop %v2069
    %v2071 = vmul.f32 %v2056, 1.442695
    %v2072 = vpow.pop %v2071
    %v2073 = vadd.f32 %v2058, 1.0
    %v2074 = vadd.f32 %v2060, 1.0
    %v2075 = vadd.f32 %v2062, 1.0
    %v2076 = vadd.f32 %v2064, 1.0
    %v2077 = vadd.f32 %v2066, 1.0
    %v2078 = vadd.f32 %v2068, 1.0
    %v2079 = vadd.f32 %v2070, 1.0
    %v2080 = vadd.f32 %v2072, 1.0
    %v2081 = vrcp.pop %v2073
    %v2082 = vmul.f32 %v2073, %v2081
    %v2083 = vsub.f32 1.0, %v2082
    %v2084 = vmul.f32 %v2081, %v2083
    %v2085 = vadd.f32 %v2081, %v2084
    %vm2086 = vweird.f32 %v2073
    %vm2087 = vweird.f32 %v2081
    %vm2088 = vmor %vm2086, %vm2087
    %v2089 = vsel %vm2088, %v2081, %v2085
    %v2090 = vand.u32 2147483647, %v2073
    %vm2091 = vcmp.eq.f32.partialorder %v2090, 8.507059e+37
    %v2092 = vand.u32 %v2073, 2147483648
    %v2093 = vor.u32 1.1754944e-38, %v2092
    %v2094 = vsel %vm2091, %v2093, %v2089
    %v2095 = vmul.f32 1.0, %v2094
    %v2096 = vrcp.pop %v2074
    %v2097 = vmul.f32 %v2074, %v2096
    %v2098 = vsub.f32 1.0, %v2097
    %v2099 = vmul.f32 %v2096, %v2098
    %v2100 = vadd.f32 %v2096, %v2099
    %vm2101 = vweird.f32 %v2074
    %vm2102 = vweird.f32 %v2096
    %vm2103 = vmor %vm2101, %vm2102
    %v2104 = vsel %vm2103, %v2096, %v2100
    %v2105 = vand.u32 2147483647, %v2074
    %vm2106 = vcmp.eq.f32.partialorder %v2105, 8.507059e+37
    %v2107 = vand.u32 %v2074, 2147483648
    %v2108 = vor.u32 1.1754944e-38, %v2107
    %v2109 = vsel %vm2106, %v2108, %v2104
    %v2110 = vmul.f32 1.0, %v2109
    %v2111 = vrcp.pop %v2075
    %v2112 = vmul.f32 %v2075, %v2111
    %v2113 = vsub.f32 1.0, %v2112
    %v2114 = vmul.f32 %v2111, %v2113
    %v2115 = vadd.f32 %v2111, %v2114
    %vm2116 = vweird.f32 %v2075
    %vm2117 = vweird.f32 %v2111
    %vm2118 = vmor %vm2116, %vm2117
    %v2119 = vsel %vm2118, %v2111, %v2115
    %v2120 = vand.u32 2147483647, %v2075
    %vm2121 = vcmp.eq.f32.partialorder %v2120, 8.507059e+37
    %v2122 = vand.u32 %v2075, 2147483648
    %v2123 = vor.u32 1.1754944e-38, %v2122
    %v2124 = vsel %vm2121, %v2123, %v2119
    %v2125 = vmul.f32 1.0, %v2124
    %v2126 = vrcp.pop %v2076
    %v2127 = vmul.f32 %v2076, %v2126
    %v2128 = vsub.f32 1.0, %v2127
    %v2129 = vmul.f32 %v2126, %v2128
    %v2130 = vadd.f32 %v2126, %v2129
    %vm2131 = vweird.f32 %v2076
    %vm2132 = vweird.f32 %v2126
    %vm2133 = vmor %vm2131, %vm2132
    %v2134 = vsel %vm2133, %v2126, %v2130
    %v2135 = vand.u32 2147483647, %v2076
    %vm2136 = vcmp.eq.f32.partialorder %v2135, 8.507059e+37
    %v2137 = vand.u32 %v2076, 2147483648
    %v2138 = vor.u32 1.1754944e-38, %v2137
    %v2139 = vsel %vm2136, %v2138, %v2134
    %v2140 = vmul.f32 1.0, %v2139
    %v2141 = vrcp.pop %v2077
    %v2142 = vmul.f32 %v2077, %v2141
    %v2143 = vsub.f32 1.0, %v2142
    %v2144 = vmul.f32 %v2141, %v2143
    %v2145 = vadd.f32 %v2141, %v2144
    %vm2146 = vweird.f32 %v2077
    %vm2147 = vweird.f32 %v2141
    %vm2148 = vmor %vm2146, %vm2147
    %v2149 = vsel %vm2148, %v2141, %v2145
    %v2150 = vand.u32 2147483647, %v2077
    %vm2151 = vcmp.eq.f32.partialorder %v2150, 8.507059e+37
    %v2152 = vand.u32 %v2077, 2147483648
    %v2153 = vor.u32 1.1754944e-38, %v2152
    %v2154 = vsel %vm2151, %v2153, %v2149
    %v2155 = vmul.f32 1.0, %v2154
    %v2156 = vrcp.pop %v2078
    %v2157 = vmul.f32 %v2078, %v2156
    %v2158 = vsub.f32 1.0, %v2157
    %v2159 = vmul.f32 %v2156, %v2158
    %v2160 = vadd.f32 %v2156, %v2159
    %vm2161 = vweird.f32 %v2078
    %vm2162 = vweird.f32 %v2156
    %vm2163 = vmor %vm2161, %vm2162
    %v2164 = vsel %vm2163, %v2156, %v2160
    %v2165 = vand.u32 2147483647, %v2078
    %vm2166 = vcmp.eq.f32.partialorder %v2165, 8.507059e+37
    %v2167 = vand.u32 %v2078, 2147483648
    %v2168 = vor.u32 1.1754944e-38, %v2167
    %v2169 = vsel %vm2166, %v2168, %v2164
    %v2170 = vmul.f32 1.0, %v2169
    %v2171 = vrcp.pop %v2079
    %v2172 = vmul.f32 %v2079, %v2171
    %v2173 = vsub.f32 1.0, %v2172
    %v2174 = vmul.f32 %v2171, %v2173
    %v2175 = vadd.f32 %v2171, %v2174
    %vm2176 = vweird.f32 %v2079
    %vm2177 = vweird.f32 %v2171
    %vm2178 = vmor %vm2176, %vm2177
    %v2179 = vsel %vm2178, %v2171, %v2175
    %v2180 = vand.u32 2147483647, %v2079
    %vm2181 = vcmp.eq.f32.partialorder %v2180, 8.507059e+37
    %v2182 = vand.u32 %v2079, 2147483648
    %v2183 = vor.u32 1.1754944e-38, %v2182
    %v2184 = vsel %vm2181, %v2183, %v2179
    %v2185 = vmul.f32 1.0, %v2184
    %v2186 = vrcp.pop %v2080
    %v2187 = vmul.f32 %v2080, %v2186
    %v2188 = vsub.f32 1.0, %v2187
    %v2189 = vmul.f32 %v2186, %v2188
    %v2190 = vadd.f32 %v2186, %v2189
    %vm2191 = vweird.f32 %v2080
    %vm2192 = vweird.f32 %v2186
    %vm2193 = vmor %vm2191, %vm2192
    %v2194 = vsel %vm2193, %v2186, %v2190
    %v2195 = vand.u32 2147483647, %v2080
    %vm2196 = vcmp.eq.f32.partialorder %v2195, 8.507059e+37
    %v2197 = vand.u32 %v2080, 2147483648
    %v2198 = vor.u32 1.1754944e-38, %v2197
    %v2199 = vsel %vm2196, %v2198, %v2194
    %v2200 = vmul.f32 1.0, %v2199
    %2201 = vrot.lane.b32.xlu0 %v2026, 64
    %v2202 = vpop.permute.xlu0 %2201
    %2203 = vrot.lane.b32.xlu0 %v2027, 64
    %v2204 = vpop.permute.xlu0 %2203
    %2205 = vrot.lane.b32.xlu0 %v2028, 64
    %v2206 = vpop.permute.xlu0 %2205
    %2207 = vrot.lane.b32.xlu0 %v2022, 64
    %v2208 = vpop.permute.xlu0 %2207
    %2209 = vrot.lane.b32.xlu0 %v2029, 64
    %v2210 = vpop.permute.xlu0 %2209
    %2211 = vrot.lane.b32.xlu0 %v2030, 64
    %v2212 = vpop.permute.xlu0 %2211
    %2213 = vrot.lane.b32.xlu0 %v2031, 64
    %v2214 = vpop.permute.xlu0 %2213
    %2215 = vrot.lane.b32.xlu0 %v2032, 64
    %v2216 = vpop.permute.xlu0 %2215
    %v2225 = vmul.f32 %v2095, %v2202
    %v2226 = vmul.f32 %v2110, %v2204
    %v2227 = vmul.f32 %v2125, %v2206
    %v2228 = vmul.f32 %v2140, %v2208
    %v2229 = vmul.f32 %v2155, %v2210
    %v2230 = vmul.f32 %v2170, %v2212
    %v2231 = vmul.f32 %v2185, %v2214
    %v2232 = vmul.f32 %v2200, %v2216
    %2241 = vrot.lane.b32.xlu0 %v2225, 64
    %v2242 = vpop.permute.xlu0 %2241
    %2243 = vrot.lane.b32.xlu0 %v2226, 64
    %v2244 = vpop.permute.xlu0 %2243
    %2245 = vrot.lane.b32.xlu0 %v2227, 64
    %v2246 = vpop.permute.xlu0 %2245
    %2247 = vrot.lane.b32.xlu0 %v2228, 64
    %v2248 = vpop.permute.xlu0 %2247
    %2249 = vrot.lane.b32.xlu0 %v2229, 64
    %v2250 = vpop.permute.xlu0 %2249
    %2251 = vrot.lane.b32.xlu0 %v2230, 64
    %v2252 = vpop.permute.xlu0 %2251
    %2253 = vrot.lane.b32.xlu0 %v2231, 64
    %v2254 = vpop.permute.xlu0 %2253
    %2255 = vrot.lane.b32.xlu0 %v2232, 64
    %v2256 = vpop.permute.xlu0 %2255
    %v2265 = vadd.f32 %v775, %v2242
    %v2266 = vadd.f32 %v776, %v2244
    %v2267 = vadd.f32 %v777, %v2246
    %v2268 = vadd.f32 %v778, %v2248
    %v2269 = vadd.f32 %v779, %v2250
    %v2270 = vadd.f32 %v780, %v2252
    %v2271 = vadd.f32 %v781, %v2254
    %v2272 = vadd.f32 %v782, %v2256
    %v2273 = vtanh.pop %v2265
    %v2274 = vtanh.pop %v2266
    %v2275 = vtanh.pop %v2267
    %v2276 = vtanh.pop %v2268
    %v2277 = vtanh.pop %v2269
    %v2278 = vtanh.pop %v2270
    %v2279 = vtanh.pop %v2271
    %v2280 = vtanh.pop %v2272
    %v2281 = vsub.f32 1.0, %v2095
    %v2282 = vsub.f32 1.0, %v2110
    %v2283 = vsub.f32 1.0, %v2125
    %v2284 = vsub.f32 1.0, %v2140
    %v2285 = vsub.f32 1.0, %v2155
    %v2286 = vsub.f32 1.0, %v2170
    %v2287 = vsub.f32 1.0, %v2185
    %v2288 = vsub.f32 1.0, %v2200
    %2297 = vrot.lane.b32.xlu0 %v2273, 96
    %v2298 = vpop.permute.xlu0 %2297
    %2299 = vrot.lane.b32.xlu0 %v2274, 96
    %v2300 = vpop.permute.xlu0 %2299
    %2301 = vrot.lane.b32.xlu0 %v2275, 96
    %v2302 = vpop.permute.xlu0 %2301
    %2303 = vrot.lane.b32.xlu0 %v2276, 96
    %v2304 = vpop.permute.xlu0 %2303
    %2305 = vrot.lane.b32.xlu0 %v2277, 96
    %v2306 = vpop.permute.xlu0 %2305
    %2307 = vrot.lane.b32.xlu0 %v2278, 96
    %v2308 = vpop.permute.xlu0 %2307
    %2309 = vrot.lane.b32.xlu0 %v2279, 96
    %v2310 = vpop.permute.xlu0 %2309
    %2311 = vrot.lane.b32.xlu0 %v2280, 96
    %v2312 = vpop.permute.xlu0 %2311
    %v2321 = vmul.f32 %v2281, %v2298
    %v2322 = vmul.f32 %v2282, %v2300
    %v2323 = vmul.f32 %v2283, %v2302
    %v2324 = vmul.f32 %v2284, %v2304
    %v2325 = vmul.f32 %v2285, %v2306
    %v2326 = vmul.f32 %v2286, %v2308
    %v2327 = vmul.f32 %v2287, %v2310
    %v2328 = vmul.f32 %v2288, %v2312
    %v2337 = vrot.slane %v1960, 7
    %v2338 = vrot.slane %v1961, 7
    %v2339 = vrot.slane %v1962, 7
    %v2340 = vrot.slane %v1963, 7
    %v2341 = vrot.slane %v1964, 7
    %v2342 = vrot.slane %v1965, 7
    %v2343 = vrot.slane %v1966, 7
    %v2344 = vrot.slane %v1967, 7
    %v2353 = vmul.f32 %v2095, %v2337
    %v2354 = vmul.f32 %v2110, %v2338
    %v2355 = vmul.f32 %v2125, %v2339
    %v2356 = vmul.f32 %v2140, %v2340
    %v2357 = vmul.f32 %v2155, %v2341
    %v2358 = vmul.f32 %v2170, %v2342
    %v2359 = vmul.f32 %v2185, %v2343
    %v2360 = vmul.f32 %v2200, %v2344
    %v2361 = vadd.f32 %v2321, %v2353
    %v2362 = vadd.f32 %v2322, %v2354
    %v2363 = vadd.f32 %v2323, %v2355
    %v2364 = vadd.f32 %v2324, %v2356
    %v2365 = vadd.f32 %v2325, %v2357
    %v2366 = vadd.f32 %v2326, %v2358
    %v2367 = vadd.f32 %v2327, %v2359
    %v2368 = vadd.f32 %v2328, %v2360
    %v2369 = vpack.c.bf16 %v2361, %v2361
    %v2370 = vpack.c.bf16 %v2362, %v2362
    %v2371 = vpack.c.bf16 %v2363, %v2363
    %v2372 = vpack.c.bf16 %v2364, %v2364
    %v2373 = vpack.c.bf16 %v2365, %v2365
    %v2374 = vpack.c.bf16 %v2366, %v2366
    %v2375 = vpack.c.bf16 %v2367, %v2367
    %v2376 = vpack.c.bf16 %v2368, %v2368
    %v2385 = vunpack.c.l.b16 %v2369
    %v2386 = vunpack.c.l.b16 %v2370
    %v2387 = vunpack.c.l.b16 %v2371
    %v2388 = vunpack.c.l.b16 %v2372
    %v2389 = vunpack.c.l.b16 %v2373
    %v2390 = vunpack.c.l.b16 %v2374
    %v2391 = vunpack.c.l.b16 %v2375
    %v2392 = vunpack.c.l.b16 %v2376
    %v2393 = vrot.slane %v2385, 3
    %v2394 = vrot.slane %v2386, 2
    %v2395 = vsel %vm357, %v2394, %v2393
    %v2396 = vrot.slane %v2387, 1
    %v2397 = vsel %vm359, %v2396, %v2395
    %v2398 = vsel %vm361, %v2388, %v2397
    %v2399 = vrot.slane %v2389, 7
    %v2400 = vsel %vm363, %v2399, %v2398
    %v2401 = vrot.slane %v2390, 6
    %v2402 = vsel %vm365, %v2401, %v2400
    %v2403 = vrot.slane %v2391, 5
    %v2404 = vsel %vm367, %v2403, %v2402
    %v2405 = vrot.slane %v2392, 4
    %v2406 = vsel %vm369, %v2405, %v2404
    %v2407 = vpack.c.b16 %v2406, %v2406
    %2408 = vrot.lane.b32.xlu0 %v2407, 96
    %v2409 = vpop.permute.xlu0 %2408
    %v2411 = vsel %vm797, %v2409, 0
    %2413 = vmatpush.bf16.msra.mxu0 0
    %2414 = vmatpush.bf16.msra.mxu0 0
    %2415 = vmatpush.bf16.msra.mxu0 0
    %2416 = vmatpush.bf16.msra.mxu0 0
    %2417 = vmatpush.bf16.msra.mxu0 0
    %2418 = vmatpush.bf16.msra.mxu0 0
    %2419 = vmatpush.bf16.msra.mxu0 %v794
    %2420 = vmatpush.bf16.msra.mxu0 %v793
    %2421 = vmatmul.bf16.gmra.mxu0 %v2411
    %v2422 = vpop.f32.mrf.mxu0
    %v2423 = vadd.f32 %v784, %v2422
    %v2424 = vpop.f32.mrf.mxu0
    %2425 = vdwg.mxu0
    %v2427 = vrot.slane %v2423, 4
    %v2428 = vrot.slane %v2423, 5
    %v2429 = vrot.slane %v2423, 6
    %v2430 = vrot.slane %v2423, 7
    %v2431 = vrot.slane %v2423, 1
    %v2432 = vrot.slane %v2423, 2
    %v2433 = vrot.slane %v2423, 3
    %v2442 = vadd.f32 %v775, %v2427
    %v2443 = vadd.f32 %v776, %v2428
    %v2444 = vadd.f32 %v777, %v2429
    %v2445 = vadd.f32 %v778, %v2430
    %v2446 = vadd.f32 %v779, %v2423
    %v2447 = vadd.f32 %v780, %v2431
    %v2448 = vadd.f32 %v781, %v2432
    %v2449 = vadd.f32 %v782, %v2433
    %v2450 = vxor.u32 %v2442, 2147483648
    %v2451 = vxor.u32 %v2443, 2147483648
    %v2452 = vxor.u32 %v2444, 2147483648
    %v2453 = vxor.u32 %v2445, 2147483648
    %v2454 = vxor.u32 %v2446, 2147483648
    %v2455 = vxor.u32 %v2447, 2147483648
    %v2456 = vxor.u32 %v2448, 2147483648
    %v2457 = vxor.u32 %v2449, 2147483648
    %v2458 = vmul.f32 %v2450, 1.442695
    %v2459 = vpow.pop %v2458
    %v2460 = vmul.f32 %v2451, 1.442695
    %v2461 = vpow.pop %v2460
    %v2462 = vmul.f32 %v2452, 1.442695
    %v2463 = vpow.pop %v2462
    %v2464 = vmul.f32 %v2453, 1.442695
    %v2465 = vpow.pop %v2464
    %v2466 = vmul.f32 %v2454, 1.442695
    %v2467 = vpow.pop %v2466
    %v2468 = vmul.f32 %v2455, 1.442695
    %v2469 = vpow.pop %v2468
    %v2470 = vmul.f32 %v2456, 1.442695
    %v2471 = vpow.pop %v2470
    %v2472 = vmul.f32 %v2457, 1.442695
    %v2473 = vpow.pop %v2472
    %v2474 = vadd.f32 %v2459, 1.0
    %v2475 = vadd.f32 %v2461, 1.0
    %v2476 = vadd.f32 %v2463, 1.0
    %v2477 = vadd.f32 %v2465, 1.0
    %v2478 = vadd.f32 %v2467, 1.0
    %v2479 = vadd.f32 %v2469, 1.0
    %v2480 = vadd.f32 %v2471, 1.0
    %v2481 = vadd.f32 %v2473, 1.0
    %v2482 = vrcp.pop %v2474
    %v2483 = vmul.f32 %v2474, %v2482
    %v2484 = vsub.f32 1.0, %v2483
    %v2485 = vmul.f32 %v2482, %v2484
    %v2486 = vadd.f32 %v2482, %v2485
    %vm2487 = vweird.f32 %v2474
    %vm2488 = vweird.f32 %v2482
    %vm2489 = vmor %vm2487, %vm2488
    %v2490 = vsel %vm2489, %v2482, %v2486
    %v2491 = vand.u32 2147483647, %v2474
    %vm2492 = vcmp.eq.f32.partialorder %v2491, 8.507059e+37
    %v2493 = vand.u32 %v2474, 2147483648
    %v2494 = vor.u32 1.1754944e-38, %v2493
    %v2495 = vsel %vm2492, %v2494, %v2490
    %v2496 = vmul.f32 1.0, %v2495
    %v2497 = vrcp.pop %v2475
    %v2498 = vmul.f32 %v2475, %v2497
    %v2499 = vsub.f32 1.0, %v2498
    %v2500 = vmul.f32 %v2497, %v2499
    %v2501 = vadd.f32 %v2497, %v2500
    %vm2502 = vweird.f32 %v2475
    %vm2503 = vweird.f32 %v2497
    %vm2504 = vmor %vm2502, %vm2503
    %v2505 = vsel %vm2504, %v2497, %v2501
    %v2506 = vand.u32 2147483647, %v2475
    %vm2507 = vcmp.eq.f32.partialorder %v2506, 8.507059e+37
    %v2508 = vand.u32 %v2475, 2147483648
    %v2509 = vor.u32 1.1754944e-38, %v2508
    %v2510 = vsel %vm2507, %v2509, %v2505
    %v2511 = vmul.f32 1.0, %v2510
    %v2512 = vrcp.pop %v2476
    %v2513 = vmul.f32 %v2476, %v2512
    %v2514 = vsub.f32 1.0, %v2513
    %v2515 = vmul.f32 %v2512, %v2514
    %v2516 = vadd.f32 %v2512, %v2515
    %vm2517 = vweird.f32 %v2476
    %vm2518 = vweird.f32 %v2512
    %vm2519 = vmor %vm2517, %vm2518
    %v2520 = vsel %vm2519, %v2512, %v2516
    %v2521 = vand.u32 2147483647, %v2476
    %vm2522 = vcmp.eq.f32.partialorder %v2521, 8.507059e+37
    %v2523 = vand.u32 %v2476, 2147483648
    %v2524 = vor.u32 1.1754944e-38, %v2523
    %v2525 = vsel %vm2522, %v2524, %v2520
    %v2526 = vmul.f32 1.0, %v2525
    %v2527 = vrcp.pop %v2477
    %v2528 = vmul.f32 %v2477, %v2527
    %v2529 = vsub.f32 1.0, %v2528
    %v2530 = vmul.f32 %v2527, %v2529
    %v2531 = vadd.f32 %v2527, %v2530
    %vm2532 = vweird.f32 %v2477
    %vm2533 = vweird.f32 %v2527
    %vm2534 = vmor %vm2532, %vm2533
    %v2535 = vsel %vm2534, %v2527, %v2531
    %v2536 = vand.u32 2147483647, %v2477
    %vm2537 = vcmp.eq.f32.partialorder %v2536, 8.507059e+37
    %v2538 = vand.u32 %v2477, 2147483648
    %v2539 = vor.u32 1.1754944e-38, %v2538
    %v2540 = vsel %vm2537, %v2539, %v2535
    %v2541 = vmul.f32 1.0, %v2540
    %v2542 = vrcp.pop %v2478
    %v2543 = vmul.f32 %v2478, %v2542
    %v2544 = vsub.f32 1.0, %v2543
    %v2545 = vmul.f32 %v2542, %v2544
    %v2546 = vadd.f32 %v2542, %v2545
    %vm2547 = vweird.f32 %v2478
    %vm2548 = vweird.f32 %v2542
    %vm2549 = vmor %vm2547, %vm2548
    %v2550 = vsel %vm2549, %v2542, %v2546
    %v2551 = vand.u32 2147483647, %v2478
    %vm2552 = vcmp.eq.f32.partialorder %v2551, 8.507059e+37
    %v2553 = vand.u32 %v2478, 2147483648
    %v2554 = vor.u32 1.1754944e-38, %v2553
    %v2555 = vsel %vm2552, %v2554, %v2550
    %v2556 = vmul.f32 1.0, %v2555
    %v2557 = vrcp.pop %v2479
    %v2558 = vmul.f32 %v2479, %v2557
    %v2559 = vsub.f32 1.0, %v2558
    %v2560 = vmul.f32 %v2557, %v2559
    %v2561 = vadd.f32 %v2557, %v2560
    %vm2562 = vweird.f32 %v2479
    %vm2563 = vweird.f32 %v2557
    %vm2564 = vmor %vm2562, %vm2563
    %v2565 = vsel %vm2564, %v2557, %v2561
    %v2566 = vand.u32 2147483647, %v2479
    %vm2567 = vcmp.eq.f32.partialorder %v2566, 8.507059e+37
    %v2568 = vand.u32 %v2479, 2147483648
    %v2569 = vor.u32 1.1754944e-38, %v2568
    %v2570 = vsel %vm2567, %v2569, %v2565
    %v2571 = vmul.f32 1.0, %v2570
    %v2572 = vrcp.pop %v2480
    %v2573 = vmul.f32 %v2480, %v2572
    %v2574 = vsub.f32 1.0, %v2573
    %v2575 = vmul.f32 %v2572, %v2574
    %v2576 = vadd.f32 %v2572, %v2575
    %vm2577 = vweird.f32 %v2480
    %vm2578 = vweird.f32 %v2572
    %vm2579 = vmor %vm2577, %vm2578
    %v2580 = vsel %vm2579, %v2572, %v2576
    %v2581 = vand.u32 2147483647, %v2480
    %vm2582 = vcmp.eq.f32.partialorder %v2581, 8.507059e+37
    %v2583 = vand.u32 %v2480, 2147483648
    %v2584 = vor.u32 1.1754944e-38, %v2583
    %v2585 = vsel %vm2582, %v2584, %v2580
    %v2586 = vmul.f32 1.0, %v2585
    %v2587 = vrcp.pop %v2481
    %v2588 = vmul.f32 %v2481, %v2587
    %v2589 = vsub.f32 1.0, %v2588
    %v2590 = vmul.f32 %v2587, %v2589
    %v2591 = vadd.f32 %v2587, %v2590
    %vm2592 = vweird.f32 %v2481
    %vm2593 = vweird.f32 %v2587
    %vm2594 = vmor %vm2592, %vm2593
    %v2595 = vsel %vm2594, %v2587, %v2591
    %v2596 = vand.u32 2147483647, %v2481
    %vm2597 = vcmp.eq.f32.partialorder %v2596, 8.507059e+37
    %v2598 = vand.u32 %v2481, 2147483648
    %v2599 = vor.u32 1.1754944e-38, %v2598
    %v2600 = vsel %vm2597, %v2599, %v2595
    %v2601 = vmul.f32 1.0, %v2600
    %2602 = vrot.lane.b32.xlu0 %v2427, 64
    %v2603 = vpop.permute.xlu0 %2602
    %2604 = vrot.lane.b32.xlu0 %v2428, 64
    %v2605 = vpop.permute.xlu0 %2604
    %2606 = vrot.lane.b32.xlu0 %v2429, 64
    %v2607 = vpop.permute.xlu0 %2606
    %2608 = vrot.lane.b32.xlu0 %v2430, 64
    %v2609 = vpop.permute.xlu0 %2608
    %2610 = vrot.lane.b32.xlu0 %v2423, 64
    %v2611 = vpop.permute.xlu0 %2610
    %2612 = vrot.lane.b32.xlu0 %v2431, 64
    %v2613 = vpop.permute.xlu0 %2612
    %2614 = vrot.lane.b32.xlu0 %v2432, 64
    %v2615 = vpop.permute.xlu0 %2614
    %2616 = vrot.lane.b32.xlu0 %v2433, 64
    %v2617 = vpop.permute.xlu0 %2616
    %v2626 = vmul.f32 %v2496, %v2603
    %v2627 = vmul.f32 %v2511, %v2605
    %v2628 = vmul.f32 %v2526, %v2607
    %v2629 = vmul.f32 %v2541, %v2609
    %v2630 = vmul.f32 %v2556, %v2611
    %v2631 = vmul.f32 %v2571, %v2613
    %v2632 = vmul.f32 %v2586, %v2615
    %v2633 = vmul.f32 %v2601, %v2617
    %2642 = vrot.lane.b32.xlu0 %v2626, 64
    %v2643 = vpop.permute.xlu0 %2642
    %2644 = vrot.lane.b32.xlu0 %v2627, 64
    %v2645 = vpop.permute.xlu0 %2644
    %2646 = vrot.lane.b32.xlu0 %v2628, 64
    %v2647 = vpop.permute.xlu0 %2646
    %2648 = vrot.lane.b32.xlu0 %v2629, 64
    %v2649 = vpop.permute.xlu0 %2648
    %2650 = vrot.lane.b32.xlu0 %v2630, 64
    %v2651 = vpop.permute.xlu0 %2650
    %2652 = vrot.lane.b32.xlu0 %v2631, 64
    %v2653 = vpop.permute.xlu0 %2652
    %2654 = vrot.lane.b32.xlu0 %v2632, 64
    %v2655 = vpop.permute.xlu0 %2654
    %2656 = vrot.lane.b32.xlu0 %v2633, 64
    %v2657 = vpop.permute.xlu0 %2656
    %v2666 = vadd.f32 %v775, %v2643
    %v2667 = vadd.f32 %v776, %v2645
    %v2668 = vadd.f32 %v777, %v2647
    %v2669 = vadd.f32 %v778, %v2649
    %v2670 = vadd.f32 %v779, %v2651
    %v2671 = vadd.f32 %v780, %v2653
    %v2672 = vadd.f32 %v781, %v2655
    %v2673 = vadd.f32 %v782, %v2657
    %v2674 = vtanh.pop %v2666
    %v2675 = vtanh.pop %v2667
    %v2676 = vtanh.pop %v2668
    %v2677 = vtanh.pop %v2669
    %v2678 = vtanh.pop %v2670
    %v2679 = vtanh.pop %v2671
    %v2680 = vtanh.pop %v2672
    %v2681 = vtanh.pop %v2673
    %v2682 = vsub.f32 1.0, %v2496
    %v2683 = vsub.f32 1.0, %v2511
    %v2684 = vsub.f32 1.0, %v2526
    %v2685 = vsub.f32 1.0, %v2541
    %v2686 = vsub.f32 1.0, %v2556
    %v2687 = vsub.f32 1.0, %v2571
    %v2688 = vsub.f32 1.0, %v2586
    %v2689 = vsub.f32 1.0, %v2601
    %2698 = vrot.lane.b32.xlu0 %v2674, 96
    %v2699 = vpop.permute.xlu0 %2698
    %2700 = vrot.lane.b32.xlu0 %v2675, 96
    %v2701 = vpop.permute.xlu0 %2700
    %2702 = vrot.lane.b32.xlu0 %v2676, 96
    %v2703 = vpop.permute.xlu0 %2702
    %2704 = vrot.lane.b32.xlu0 %v2677, 96
    %v2705 = vpop.permute.xlu0 %2704
    %2706 = vrot.lane.b32.xlu0 %v2678, 96
    %v2707 = vpop.permute.xlu0 %2706
    %2708 = vrot.lane.b32.xlu0 %v2679, 96
    %v2709 = vpop.permute.xlu0 %2708
    %2710 = vrot.lane.b32.xlu0 %v2680, 96
    %v2711 = vpop.permute.xlu0 %2710
    %2712 = vrot.lane.b32.xlu0 %v2681, 96
    %v2713 = vpop.permute.xlu0 %2712
    %v2722 = vmul.f32 %v2682, %v2699
    %v2723 = vmul.f32 %v2683, %v2701
    %v2724 = vmul.f32 %v2684, %v2703
    %v2725 = vmul.f32 %v2685, %v2705
    %v2726 = vmul.f32 %v2686, %v2707
    %v2727 = vmul.f32 %v2687, %v2709
    %v2728 = vmul.f32 %v2688, %v2711
    %v2729 = vmul.f32 %v2689, %v2713
    %v2738 = vrot.slane %v2361, 7
    %v2739 = vrot.slane %v2362, 7
    %v2740 = vrot.slane %v2363, 7
    %v2741 = vrot.slane %v2364, 7
    %v2742 = vrot.slane %v2365, 7
    %v2743 = vrot.slane %v2366, 7
    %v2744 = vrot.slane %v2367, 7
    %v2745 = vrot.slane %v2368, 7
    %v2754 = vmul.f32 %v2496, %v2738
    %v2755 = vmul.f32 %v2511, %v2739
    %v2756 = vmul.f32 %v2526, %v2740
    %v2757 = vmul.f32 %v2541, %v2741
    %v2758 = vmul.f32 %v2556, %v2742
    %v2759 = vmul.f32 %v2571, %v2743
    %v2760 = vmul.f32 %v2586, %v2744
    %v2761 = vmul.f32 %v2601, %v2745
    %v2762 = vadd.f32 %v2722, %v2754
    %v2763 = vadd.f32 %v2723, %v2755
    %v2764 = vadd.f32 %v2724, %v2756
    %v2765 = vadd.f32 %v2725, %v2757
    %v2766 = vadd.f32 %v2726, %v2758
    %v2767 = vadd.f32 %v2727, %v2759
    %v2768 = vadd.f32 %v2728, %v2760
    %v2769 = vadd.f32 %v2729, %v2761
    %v2770 = vpack.c.bf16 %v2762, %v2762
    %v2771 = vpack.c.bf16 %v2763, %v2763
    %v2772 = vpack.c.bf16 %v2764, %v2764
    %v2773 = vpack.c.bf16 %v2765, %v2765
    %v2774 = vpack.c.bf16 %v2766, %v2766
    %v2775 = vpack.c.bf16 %v2767, %v2767
    %v2776 = vpack.c.bf16 %v2768, %v2768
    %v2777 = vpack.c.bf16 %v2769, %v2769
    %v2786 = vunpack.c.l.b16 %v2770
    %v2787 = vunpack.c.l.b16 %v2771
    %v2788 = vunpack.c.l.b16 %v2772
    %v2789 = vunpack.c.l.b16 %v2773
    %v2790 = vunpack.c.l.b16 %v2774
    %v2791 = vunpack.c.l.b16 %v2775
    %v2792 = vunpack.c.l.b16 %v2776
    %v2793 = vunpack.c.l.b16 %v2777
    %v2794 = vrot.slane %v2786, 4
    %v2795 = vrot.slane %v2787, 3
    %v2796 = vsel %vm357, %v2795, %v2794
    %v2797 = vrot.slane %v2788, 2
    %v2798 = vsel %vm359, %v2797, %v2796
    %v2799 = vrot.slane %v2789, 1
    %v2800 = vsel %vm361, %v2799, %v2798
    %v2801 = vsel %vm363, %v2790, %v2800
    %v2802 = vrot.slane %v2791, 7
    %v2803 = vsel %vm365, %v2802, %v2801
    %v2804 = vrot.slane %v2792, 6
    %v2805 = vsel %vm367, %v2804, %v2803
    %v2806 = vrot.slane %v2793, 5
    %v2807 = vsel %vm369, %v2806, %v2805
    %v2808 = vpack.c.b16 %v2807, %v2807
    %2809 = vrot.lane.b32.xlu0 %v2808, 96
    %v2810 = vpop.permute.xlu0 %2809
    %v2812 = vsel %vm797, %v2810, 0
    %2814 = vmatpush.bf16.msra.mxu0 0
    %2815 = vmatpush.bf16.msra.mxu0 0
    %2816 = vmatpush.bf16.msra.mxu0 0
    %2817 = vmatpush.bf16.msra.mxu0 0
    %2818 = vmatpush.bf16.msra.mxu0 0
    %2819 = vmatpush.bf16.msra.mxu0 0
    %2820 = vmatpush.bf16.msra.mxu0 %v794
    %2821 = vmatpush.bf16.msra.mxu0 %v793
    %2822 = vmatmul.bf16.gmra.mxu0 %v2812
    %v2823 = vpop.f32.mrf.mxu0
    %v2824 = vadd.f32 %v784, %v2823
    %v2825 = vpop.f32.mrf.mxu0
    %2826 = vdwg.mxu0
    %v2828 = vrot.slane %v2824, 3
    %v2829 = vrot.slane %v2824, 4
    %v2830 = vrot.slane %v2824, 5
    %v2831 = vrot.slane %v2824, 6
    %v2832 = vrot.slane %v2824, 7
    %v2833 = vrot.slane %v2824, 1
    %v2834 = vrot.slane %v2824, 2
    %v2843 = vadd.f32 %v775, %v2828
    %v2844 = vadd.f32 %v776, %v2829
    %v2845 = vadd.f32 %v777, %v2830
    %v2846 = vadd.f32 %v778, %v2831
    %v2847 = vadd.f32 %v779, %v2832
    %v2848 = vadd.f32 %v780, %v2824
    %v2849 = vadd.f32 %v781, %v2833
    %v2850 = vadd.f32 %v782, %v2834
    %v2851 = vxor.u32 %v2843, 2147483648
    %v2852 = vxor.u32 %v2844, 2147483648
    %v2853 = vxor.u32 %v2845, 2147483648
    %v2854 = vxor.u32 %v2846, 2147483648
    %v2855 = vxor.u32 %v2847, 2147483648
    %v2856 = vxor.u32 %v2848, 2147483648
    %v2857 = vxor.u32 %v2849, 2147483648
    %v2858 = vxor.u32 %v2850, 2147483648
    %v2859 = vmul.f32 %v2851, 1.442695
    %v2860 = vpow.pop %v2859
    %v2861 = vmul.f32 %v2852, 1.442695
    %v2862 = vpow.pop %v2861
    %v2863 = vmul.f32 %v2853, 1.442695
    %v2864 = vpow.pop %v2863
    %v2865 = vmul.f32 %v2854, 1.442695
    %v2866 = vpow.pop %v2865
    %v2867 = vmul.f32 %v2855, 1.442695
    %v2868 = vpow.pop %v2867
    %v2869 = vmul.f32 %v2856, 1.442695
    %v2870 = vpow.pop %v2869
    %v2871 = vmul.f32 %v2857, 1.442695
    %v2872 = vpow.pop %v2871
    %v2873 = vmul.f32 %v2858, 1.442695
    %v2874 = vpow.pop %v2873
    %v2875 = vadd.f32 %v2860, 1.0
    %v2876 = vadd.f32 %v2862, 1.0
    %v2877 = vadd.f32 %v2864, 1.0
    %v2878 = vadd.f32 %v2866, 1.0
    %v2879 = vadd.f32 %v2868, 1.0
    %v2880 = vadd.f32 %v2870, 1.0
    %v2881 = vadd.f32 %v2872, 1.0
    %v2882 = vadd.f32 %v2874, 1.0
    %v2883 = vrcp.pop %v2875
    %v2884 = vmul.f32 %v2875, %v2883
    %v2885 = vsub.f32 1.0, %v2884
    %v2886 = vmul.f32 %v2883, %v2885
    %v2887 = vadd.f32 %v2883, %v2886
    %vm2888 = vweird.f32 %v2875
    %vm2889 = vweird.f32 %v2883
    %vm2890 = vmor %vm2888, %vm2889
    %v2891 = vsel %vm2890, %v2883, %v2887
    %v2892 = vand.u32 2147483647, %v2875
    %vm2893 = vcmp.eq.f32.partialorder %v2892, 8.507059e+37
    %v2894 = vand.u32 %v2875, 2147483648
    %v2895 = vor.u32 1.1754944e-38, %v2894
    %v2896 = vsel %vm2893, %v2895, %v2891
    %v2897 = vmul.f32 1.0, %v2896
    %v2898 = vrcp.pop %v2876
    %v2899 = vmul.f32 %v2876, %v2898
    %v2900 = vsub.f32 1.0, %v2899
    %v2901 = vmul.f32 %v2898, %v2900
    %v2902 = vadd.f32 %v2898, %v2901
    %vm2903 = vweird.f32 %v2876
    %vm2904 = vweird.f32 %v2898
    %vm2905 = vmor %vm2903, %vm2904
    %v2906 = vsel %vm2905, %v2898, %v2902
    %v2907 = vand.u32 2147483647, %v2876
    %vm2908 = vcmp.eq.f32.partialorder %v2907, 8.507059e+37
    %v2909 = vand.u32 %v2876, 2147483648
    %v2910 = vor.u32 1.1754944e-38, %v2909
    %v2911 = vsel %vm2908, %v2910, %v2906
    %v2912 = vmul.f32 1.0, %v2911
    %v2913 = vrcp.pop %v2877
    %v2914 = vmul.f32 %v2877, %v2913
    %v2915 = vsub.f32 1.0, %v2914
    %v2916 = vmul.f32 %v2913, %v2915
    %v2917 = vadd.f32 %v2913, %v2916
    %vm2918 = vweird.f32 %v2877
    %vm2919 = vweird.f32 %v2913
    %vm2920 = vmor %vm2918, %vm2919
    %v2921 = vsel %vm2920, %v2913, %v2917
    %v2922 = vand.u32 2147483647, %v2877
    %vm2923 = vcmp.eq.f32.partialorder %v2922, 8.507059e+37
    %v2924 = vand.u32 %v2877, 2147483648
    %v2925 = vor.u32 1.1754944e-38, %v2924
    %v2926 = vsel %vm2923, %v2925, %v2921
    %v2927 = vmul.f32 1.0, %v2926
    %v2928 = vrcp.pop %v2878
    %v2929 = vmul.f32 %v2878, %v2928
    %v2930 = vsub.f32 1.0, %v2929
    %v2931 = vmul.f32 %v2928, %v2930
    %v2932 = vadd.f32 %v2928, %v2931
    %vm2933 = vweird.f32 %v2878
    %vm2934 = vweird.f32 %v2928
    %vm2935 = vmor %vm2933, %vm2934
    %v2936 = vsel %vm2935, %v2928, %v2932
    %v2937 = vand.u32 2147483647, %v2878
    %vm2938 = vcmp.eq.f32.partialorder %v2937, 8.507059e+37
    %v2939 = vand.u32 %v2878, 2147483648
    %v2940 = vor.u32 1.1754944e-38, %v2939
    %v2941 = vsel %vm2938, %v2940, %v2936
    %v2942 = vmul.f32 1.0, %v2941
    %v2943 = vrcp.pop %v2879
    %v2944 = vmul.f32 %v2879, %v2943
    %v2945 = vsub.f32 1.0, %v2944
    %v2946 = vmul.f32 %v2943, %v2945
    %v2947 = vadd.f32 %v2943, %v2946
    %vm2948 = vweird.f32 %v2879
    %vm2949 = vweird.f32 %v2943
    %vm2950 = vmor %vm2948, %vm2949
    %v2951 = vsel %vm2950, %v2943, %v2947
    %v2952 = vand.u32 2147483647, %v2879
    %vm2953 = vcmp.eq.f32.partialorder %v2952, 8.507059e+37
    %v2954 = vand.u32 %v2879, 2147483648
    %v2955 = vor.u32 1.1754944e-38, %v2954
    %v2956 = vsel %vm2953, %v2955, %v2951
    %v2957 = vmul.f32 1.0, %v2956
    %v2958 = vrcp.pop %v2880
    %v2959 = vmul.f32 %v2880, %v2958
    %v2960 = vsub.f32 1.0, %v2959
    %v2961 = vmul.f32 %v2958, %v2960
    %v2962 = vadd.f32 %v2958, %v2961
    %vm2963 = vweird.f32 %v2880
    %vm2964 = vweird.f32 %v2958
    %vm2965 = vmor %vm2963, %vm2964
    %v2966 = vsel %vm2965, %v2958, %v2962
    %v2967 = vand.u32 2147483647, %v2880
    %vm2968 = vcmp.eq.f32.partialorder %v2967, 8.507059e+37
    %v2969 = vand.u32 %v2880, 2147483648
    %v2970 = vor.u32 1.1754944e-38, %v2969
    %v2971 = vsel %vm2968, %v2970, %v2966
    %v2972 = vmul.f32 1.0, %v2971
    %v2973 = vrcp.pop %v2881
    %v2974 = vmul.f32 %v2881, %v2973
    %v2975 = vsub.f32 1.0, %v2974
    %v2976 = vmul.f32 %v2973, %v2975
    %v2977 = vadd.f32 %v2973, %v2976
    %vm2978 = vweird.f32 %v2881
    %vm2979 = vweird.f32 %v2973
    %vm2980 = vmor %vm2978, %vm2979
    %v2981 = vsel %vm2980, %v2973, %v2977
    %v2982 = vand.u32 2147483647, %v2881
    %vm2983 = vcmp.eq.f32.partialorder %v2982, 8.507059e+37
    %v2984 = vand.u32 %v2881, 2147483648
    %v2985 = vor.u32 1.1754944e-38, %v2984
    %v2986 = vsel %vm2983, %v2985, %v2981
    %v2987 = vmul.f32 1.0, %v2986
    %v2988 = vrcp.pop %v2882
    %v2989 = vmul.f32 %v2882, %v2988
    %v2990 = vsub.f32 1.0, %v2989
    %v2991 = vmul.f32 %v2988, %v2990
    %v2992 = vadd.f32 %v2988, %v2991
    %vm2993 = vweird.f32 %v2882
    %vm2994 = vweird.f32 %v2988
    %vm2995 = vmor %vm2993, %vm2994
    %v2996 = vsel %vm2995, %v2988, %v2992
    %v2997 = vand.u32 2147483647, %v2882
    %vm2998 = vcmp.eq.f32.partialorder %v2997, 8.507059e+37
    %v2999 = vand.u32 %v2882, 2147483648
    %v3000 = vor.u32 1.1754944e-38, %v2999
    %v3001 = vsel %vm2998, %v3000, %v2996
    %v3002 = vmul.f32 1.0, %v3001
    %3003 = vrot.lane.b32.xlu0 %v2828, 64
    %v3004 = vpop.permute.xlu0 %3003
    %3005 = vrot.lane.b32.xlu0 %v2829, 64
    %v3006 = vpop.permute.xlu0 %3005
    %3007 = vrot.lane.b32.xlu0 %v2830, 64
    %v3008 = vpop.permute.xlu0 %3007
    %3009 = vrot.lane.b32.xlu0 %v2831, 64
    %v3010 = vpop.permute.xlu0 %3009
    %3011 = vrot.lane.b32.xlu0 %v2832, 64
    %v3012 = vpop.permute.xlu0 %3011
    %3013 = vrot.lane.b32.xlu0 %v2824, 64
    %v3014 = vpop.permute.xlu0 %3013
    %3015 = vrot.lane.b32.xlu0 %v2833, 64
    %v3016 = vpop.permute.xlu0 %3015
    %3017 = vrot.lane.b32.xlu0 %v2834, 64
    %v3018 = vpop.permute.xlu0 %3017
    %v3027 = vmul.f32 %v2897, %v3004
    %v3028 = vmul.f32 %v2912, %v3006
    %v3029 = vmul.f32 %v2927, %v3008
    %v3030 = vmul.f32 %v2942, %v3010
    %v3031 = vmul.f32 %v2957, %v3012
    %v3032 = vmul.f32 %v2972, %v3014
    %v3033 = vmul.f32 %v2987, %v3016
    %v3034 = vmul.f32 %v3002, %v3018
    %3043 = vrot.lane.b32.xlu0 %v3027, 64
    %v3044 = vpop.permute.xlu0 %3043
    %3045 = vrot.lane.b32.xlu0 %v3028, 64
    %v3046 = vpop.permute.xlu0 %3045
    %3047 = vrot.lane.b32.xlu0 %v3029, 64
    %v3048 = vpop.permute.xlu0 %3047
    %3049 = vrot.lane.b32.xlu0 %v3030, 64
    %v3050 = vpop.permute.xlu0 %3049
    %3051 = vrot.lane.b32.xlu0 %v3031, 64
    %v3052 = vpop.permute.xlu0 %3051
    %3053 = vrot.lane.b32.xlu0 %v3032, 64
    %v3054 = vpop.permute.xlu0 %3053
    %3055 = vrot.lane.b32.xlu0 %v3033, 64
    %v3056 = vpop.permute.xlu0 %3055
    %3057 = vrot.lane.b32.xlu0 %v3034, 64
    %v3058 = vpop.permute.xlu0 %3057
    %v3067 = vadd.f32 %v775, %v3044
    %v3068 = vadd.f32 %v776, %v3046
    %v3069 = vadd.f32 %v777, %v3048
    %v3070 = vadd.f32 %v778, %v3050
    %v3071 = vadd.f32 %v779, %v3052
    %v3072 = vadd.f32 %v780, %v3054
    %v3073 = vadd.f32 %v781, %v3056
    %v3074 = vadd.f32 %v782, %v3058
    %v3075 = vtanh.pop %v3067
    %v3076 = vtanh.pop %v3068
    %v3077 = vtanh.pop %v3069
    %v3078 = vtanh.pop %v3070
    %v3079 = vtanh.pop %v3071
    %v3080 = vtanh.pop %v3072
    %v3081 = vtanh.pop %v3073
    %v3082 = vtanh.pop %v3074
    %v3083 = vsub.f32 1.0, %v2897
    %v3084 = vsub.f32 1.0, %v2912
    %v3085 = vsub.f32 1.0, %v2927
    %v3086 = vsub.f32 1.0, %v2942
    %v3087 = vsub.f32 1.0, %v2957
    %v3088 = vsub.f32 1.0, %v2972
    %v3089 = vsub.f32 1.0, %v2987
    %v3090 = vsub.f32 1.0, %v3002
    %3099 = vrot.lane.b32.xlu0 %v3075, 96
    %v3100 = vpop.permute.xlu0 %3099
    %3101 = vrot.lane.b32.xlu0 %v3076, 96
    %v3102 = vpop.permute.xlu0 %3101
    %3103 = vrot.lane.b32.xlu0 %v3077, 96
    %v3104 = vpop.permute.xlu0 %3103
    %3105 = vrot.lane.b32.xlu0 %v3078, 96
    %v3106 = vpop.permute.xlu0 %3105
    %3107 = vrot.lane.b32.xlu0 %v3079, 96
    %v3108 = vpop.permute.xlu0 %3107
    %3109 = vrot.lane.b32.xlu0 %v3080, 96
    %v3110 = vpop.permute.xlu0 %3109
    %3111 = vrot.lane.b32.xlu0 %v3081, 96
    %v3112 = vpop.permute.xlu0 %3111
    %3113 = vrot.lane.b32.xlu0 %v3082, 96
    %v3114 = vpop.permute.xlu0 %3113
    %v3123 = vmul.f32 %v3083, %v3100
    %v3124 = vmul.f32 %v3084, %v3102
    %v3125 = vmul.f32 %v3085, %v3104
    %v3126 = vmul.f32 %v3086, %v3106
    %v3127 = vmul.f32 %v3087, %v3108
    %v3128 = vmul.f32 %v3088, %v3110
    %v3129 = vmul.f32 %v3089, %v3112
    %v3130 = vmul.f32 %v3090, %v3114
    %v3139 = vrot.slane %v2762, 7
    %v3140 = vrot.slane %v2763, 7
    %v3141 = vrot.slane %v2764, 7
    %v3142 = vrot.slane %v2765, 7
    %v3143 = vrot.slane %v2766, 7
    %v3144 = vrot.slane %v2767, 7
    %v3145 = vrot.slane %v2768, 7
    %v3146 = vrot.slane %v2769, 7
    %v3155 = vmul.f32 %v2897, %v3139
    %v3156 = vmul.f32 %v2912, %v3140
    %v3157 = vmul.f32 %v2927, %v3141
    %v3158 = vmul.f32 %v2942, %v3142
    %v3159 = vmul.f32 %v2957, %v3143
    %v3160 = vmul.f32 %v2972, %v3144
    %v3161 = vmul.f32 %v2987, %v3145
    %v3162 = vmul.f32 %v3002, %v3146
    %v3163 = vadd.f32 %v3123, %v3155
    %v3164 = vadd.f32 %v3124, %v3156
    %v3165 = vadd.f32 %v3125, %v3157
    %v3166 = vadd.f32 %v3126, %v3158
    %v3167 = vadd.f32 %v3127, %v3159
    %v3168 = vadd.f32 %v3128, %v3160
    %v3169 = vadd.f32 %v3129, %v3161
    %v3170 = vadd.f32 %v3130, %v3162
    %v3171 = vpack.c.bf16 %v3163, %v3163
    %v3172 = vpack.c.bf16 %v3164, %v3164
    %v3173 = vpack.c.bf16 %v3165, %v3165
    %v3174 = vpack.c.bf16 %v3166, %v3166
    %v3175 = vpack.c.bf16 %v3167, %v3167
    %v3176 = vpack.c.bf16 %v3168, %v3168
    %v3177 = vpack.c.bf16 %v3169, %v3169
    %v3178 = vpack.c.bf16 %v3170, %v3170
    %v3187 = vunpack.c.l.b16 %v3171
    %v3188 = vunpack.c.l.b16 %v3172
    %v3189 = vunpack.c.l.b16 %v3173
    %v3190 = vunpack.c.l.b16 %v3174
    %v3191 = vunpack.c.l.b16 %v3175
    %v3192 = vunpack.c.l.b16 %v3176
    %v3193 = vunpack.c.l.b16 %v3177
    %v3194 = vunpack.c.l.b16 %v3178
    %v3195 = vrot.slane %v3187, 5
    %v3196 = vrot.slane %v3188, 4
    %v3197 = vsel %vm357, %v3196, %v3195
    %v3198 = vrot.slane %v3189, 3
    %v3199 = vsel %vm359, %v3198, %v3197
    %v3200 = vrot.slane %v3190, 2
    %v3201 = vsel %vm361, %v3200, %v3199
    %v3202 = vrot.slane %v3191, 1
    %v3203 = vsel %vm363, %v3202, %v3201
    %v3204 = vsel %vm365, %v3192, %v3203
    %v3205 = vrot.slane %v3193, 7
    %v3206 = vsel %vm367, %v3205, %v3204
    %v3207 = vrot.slane %v3194, 6
    %v3208 = vsel %vm369, %v3207, %v3206
    %v3209 = vpack.c.b16 %v3208, %v3208
    %3210 = vrot.lane.b32.xlu0 %v3209, 96
    %v3211 = vpop.permute.xlu0 %3210
    %v3213 = vsel %vm797, %v3211, 0
    %3215 = vmatpush.bf16.msra.mxu0 0
    %3216 = vmatpush.bf16.msra.mxu0 0
    %3217 = vmatpush.bf16.msra.mxu0 0
    %3218 = vmatpush.bf16.msra.mxu0 0
    %3219 = vmatpush.bf16.msra.mxu0 0
    %3220 = vmatpush.bf16.msra.mxu0 0
    %3221 = vmatpush.bf16.msra.mxu0 %v794
    %3222 = vmatpush.bf16.msra.mxu0 %v793
    %3223 = vmatmul.bf16.gmra.mxu0 %v3213
    %v3224 = vpop.f32.mrf.mxu0
    %v3225 = vadd.f32 %v784, %v3224
    %v3226 = vpop.f32.mrf.mxu0
    %3227 = vdwg.mxu0
    %v3229 = vrot.slane %v3225, 2
    %v3230 = vrot.slane %v3225, 3
    %v3231 = vrot.slane %v3225, 4
    %v3232 = vrot.slane %v3225, 5
    %v3233 = vrot.slane %v3225, 6
    %v3234 = vrot.slane %v3225, 7
    %v3235 = vrot.slane %v3225, 1
    %v3244 = vadd.f32 %v775, %v3229
    %v3245 = vadd.f32 %v776, %v3230
    %v3246 = vadd.f32 %v777, %v3231
    %v3247 = vadd.f32 %v778, %v3232
    %v3248 = vadd.f32 %v779, %v3233
    %v3249 = vadd.f32 %v780, %v3234
    %v3250 = vadd.f32 %v781, %v3225
    %v3251 = vadd.f32 %v782, %v3235
    %v3252 = vxor.u32 %v3244, 2147483648
    %v3253 = vxor.u32 %v3245, 2147483648
    %v3254 = vxor.u32 %v3246, 2147483648
    %v3255 = vxor.u32 %v3247, 2147483648
    %v3256 = vxor.u32 %v3248, 2147483648
    %v3257 = vxor.u32 %v3249, 2147483648
    %v3258 = vxor.u32 %v3250, 2147483648
    %v3259 = vxor.u32 %v3251, 2147483648
    %v3260 = vmul.f32 %v3252, 1.442695
    %v3261 = vpow.pop %v3260
    %v3262 = vmul.f32 %v3253, 1.442695
    %v3263 = vpow.pop %v3262
    %v3264 = vmul.f32 %v3254, 1.442695
    %v3265 = vpow.pop %v3264
    %v3266 = vmul.f32 %v3255, 1.442695
    %v3267 = vpow.pop %v3266
    %v3268 = vmul.f32 %v3256, 1.442695
    %v3269 = vpow.pop %v3268
    %v3270 = vmul.f32 %v3257, 1.442695
    %v3271 = vpow.pop %v3270
    %v3272 = vmul.f32 %v3258, 1.442695
    %v3273 = vpow.pop %v3272
    %v3274 = vmul.f32 %v3259, 1.442695
    %v3275 = vpow.pop %v3274
    %v3276 = vadd.f32 %v3261, 1.0
    %v3277 = vadd.f32 %v3263, 1.0
    %v3278 = vadd.f32 %v3265, 1.0
    %v3279 = vadd.f32 %v3267, 1.0
    %v3280 = vadd.f32 %v3269, 1.0
    %v3281 = vadd.f32 %v3271, 1.0
    %v3282 = vadd.f32 %v3273, 1.0
    %v3283 = vadd.f32 %v3275, 1.0
    %v3284 = vrcp.pop %v3276
    %v3285 = vmul.f32 %v3276, %v3284
    %v3286 = vsub.f32 1.0, %v3285
    %v3287 = vmul.f32 %v3284, %v3286
    %v3288 = vadd.f32 %v3284, %v3287
    %vm3289 = vweird.f32 %v3276
    %vm3290 = vweird.f32 %v3284
    %vm3291 = vmor %vm3289, %vm3290
    %v3292 = vsel %vm3291, %v3284, %v3288
    %v3293 = vand.u32 2147483647, %v3276
    %vm3294 = vcmp.eq.f32.partialorder %v3293, 8.507059e+37
    %v3295 = vand.u32 %v3276, 2147483648
    %v3296 = vor.u32 1.1754944e-38, %v3295
    %v3297 = vsel %vm3294, %v3296, %v3292
    %v3298 = vmul.f32 1.0, %v3297
    %v3299 = vrcp.pop %v3277
    %v3300 = vmul.f32 %v3277, %v3299
    %v3301 = vsub.f32 1.0, %v3300
    %v3302 = vmul.f32 %v3299, %v3301
    %v3303 = vadd.f32 %v3299, %v3302
    %vm3304 = vweird.f32 %v3277
    %vm3305 = vweird.f32 %v3299
    %vm3306 = vmor %vm3304, %vm3305
    %v3307 = vsel %vm3306, %v3299, %v3303
    %v3308 = vand.u32 2147483647, %v3277
    %vm3309 = vcmp.eq.f32.partialorder %v3308, 8.507059e+37
    %v3310 = vand.u32 %v3277, 2147483648
    %v3311 = vor.u32 1.1754944e-38, %v3310
    %v3312 = vsel %vm3309, %v3311, %v3307
    %v3313 = vmul.f32 1.0, %v3312
    %v3314 = vrcp.pop %v3278
    %v3315 = vmul.f32 %v3278, %v3314
    %v3316 = vsub.f32 1.0, %v3315
    %v3317 = vmul.f32 %v3314, %v3316
    %v3318 = vadd.f32 %v3314, %v3317
    %vm3319 = vweird.f32 %v3278
    %vm3320 = vweird.f32 %v3314
    %vm3321 = vmor %vm3319, %vm3320
    %v3322 = vsel %vm3321, %v3314, %v3318
    %v3323 = vand.u32 2147483647, %v3278
    %vm3324 = vcmp.eq.f32.partialorder %v3323, 8.507059e+37
    %v3325 = vand.u32 %v3278, 2147483648
    %v3326 = vor.u32 1.1754944e-38, %v3325
    %v3327 = vsel %vm3324, %v3326, %v3322
    %v3328 = vmul.f32 1.0, %v3327
    %v3329 = vrcp.pop %v3279
    %v3330 = vmul.f32 %v3279, %v3329
    %v3331 = vsub.f32 1.0, %v3330
    %v3332 = vmul.f32 %v3329, %v3331
    %v3333 = vadd.f32 %v3329, %v3332
    %vm3334 = vweird.f32 %v3279
    %vm3335 = vweird.f32 %v3329
    %vm3336 = vmor %vm3334, %vm3335
    %v3337 = vsel %vm3336, %v3329, %v3333
    %v3338 = vand.u32 2147483647, %v3279
    %vm3339 = vcmp.eq.f32.partialorder %v3338, 8.507059e+37
    %v3340 = vand.u32 %v3279, 2147483648
    %v3341 = vor.u32 1.1754944e-38, %v3340
    %v3342 = vsel %vm3339, %v3341, %v3337
    %v3343 = vmul.f32 1.0, %v3342
    %v3344 = vrcp.pop %v3280
    %v3345 = vmul.f32 %v3280, %v3344
    %v3346 = vsub.f32 1.0, %v3345
    %v3347 = vmul.f32 %v3344, %v3346
    %v3348 = vadd.f32 %v3344, %v3347
    %vm3349 = vweird.f32 %v3280
    %vm3350 = vweird.f32 %v3344
    %vm3351 = vmor %vm3349, %vm3350
    %v3352 = vsel %vm3351, %v3344, %v3348
    %v3353 = vand.u32 2147483647, %v3280
    %vm3354 = vcmp.eq.f32.partialorder %v3353, 8.507059e+37
    %v3355 = vand.u32 %v3280, 2147483648
    %v3356 = vor.u32 1.1754944e-38, %v3355
    %v3357 = vsel %vm3354, %v3356, %v3352
    %v3358 = vmul.f32 1.0, %v3357
    %v3359 = vrcp.pop %v3281
    %v3360 = vmul.f32 %v3281, %v3359
    %v3361 = vsub.f32 1.0, %v3360
    %v3362 = vmul.f32 %v3359, %v3361
    %v3363 = vadd.f32 %v3359, %v3362
    %vm3364 = vweird.f32 %v3281
    %vm3365 = vweird.f32 %v3359
    %vm3366 = vmor %vm3364, %vm3365
    %v3367 = vsel %vm3366, %v3359, %v3363
    %v3368 = vand.u32 2147483647, %v3281
    %vm3369 = vcmp.eq.f32.partialorder %v3368, 8.507059e+37
    %v3370 = vand.u32 %v3281, 2147483648
    %v3371 = vor.u32 1.1754944e-38, %v3370
    %v3372 = vsel %vm3369, %v3371, %v3367
    %v3373 = vmul.f32 1.0, %v3372
    %v3374 = vrcp.pop %v3282
    %v3375 = vmul.f32 %v3282, %v3374
    %v3376 = vsub.f32 1.0, %v3375
    %v3377 = vmul.f32 %v3374, %v3376
    %v3378 = vadd.f32 %v3374, %v3377
    %vm3379 = vweird.f32 %v3282
    %vm3380 = vweird.f32 %v3374
    %vm3381 = vmor %vm3379, %vm3380
    %v3382 = vsel %vm3381, %v3374, %v3378
    %v3383 = vand.u32 2147483647, %v3282
    %vm3384 = vcmp.eq.f32.partialorder %v3383, 8.507059e+37
    %v3385 = vand.u32 %v3282, 2147483648
    %v3386 = vor.u32 1.1754944e-38, %v3385
    %v3387 = vsel %vm3384, %v3386, %v3382
    %v3388 = vmul.f32 1.0, %v3387
    %v3389 = vrcp.pop %v3283
    %v3390 = vmul.f32 %v3283, %v3389
    %v3391 = vsub.f32 1.0, %v3390
    %v3392 = vmul.f32 %v3389, %v3391
    %v3393 = vadd.f32 %v3389, %v3392
    %vm3394 = vweird.f32 %v3283
    %vm3395 = vweird.f32 %v3389
    %vm3396 = vmor %vm3394, %vm3395
    %v3397 = vsel %vm3396, %v3389, %v3393
    %v3398 = vand.u32 2147483647, %v3283
    %vm3399 = vcmp.eq.f32.partialorder %v3398, 8.507059e+37
    %v3400 = vand.u32 %v3283, 2147483648
    %v3401 = vor.u32 1.1754944e-38, %v3400
    %v3402 = vsel %vm3399, %v3401, %v3397
    %v3403 = vmul.f32 1.0, %v3402
    %3404 = vrot.lane.b32.xlu0 %v3229, 64
    %v3405 = vpop.permute.xlu0 %3404
    %3406 = vrot.lane.b32.xlu0 %v3230, 64
    %v3407 = vpop.permute.xlu0 %3406
    %3408 = vrot.lane.b32.xlu0 %v3231, 64
    %v3409 = vpop.permute.xlu0 %3408
    %3410 = vrot.lane.b32.xlu0 %v3232, 64
    %v3411 = vpop.permute.xlu0 %3410
    %3412 = vrot.lane.b32.xlu0 %v3233, 64
    %v3413 = vpop.permute.xlu0 %3412
    %3414 = vrot.lane.b32.xlu0 %v3234, 64
    %v3415 = vpop.permute.xlu0 %3414
    %3416 = vrot.lane.b32.xlu0 %v3225, 64
    %v3417 = vpop.permute.xlu0 %3416
    %3418 = vrot.lane.b32.xlu0 %v3235, 64
    %v3419 = vpop.permute.xlu0 %3418
    %v3428 = vmul.f32 %v3298, %v3405
    %v3429 = vmul.f32 %v3313, %v3407
    %v3430 = vmul.f32 %v3328, %v3409
    %v3431 = vmul.f32 %v3343, %v3411
    %v3432 = vmul.f32 %v3358, %v3413
    %v3433 = vmul.f32 %v3373, %v3415
    %v3434 = vmul.f32 %v3388, %v3417
    %v3435 = vmul.f32 %v3403, %v3419
    %3444 = vrot.lane.b32.xlu0 %v3428, 64
    %v3445 = vpop.permute.xlu0 %3444
    %3446 = vrot.lane.b32.xlu0 %v3429, 64
    %v3447 = vpop.permute.xlu0 %3446
    %3448 = vrot.lane.b32.xlu0 %v3430, 64
    %v3449 = vpop.permute.xlu0 %3448
    %3450 = vrot.lane.b32.xlu0 %v3431, 64
    %v3451 = vpop.permute.xlu0 %3450
    %3452 = vrot.lane.b32.xlu0 %v3432, 64
    %v3453 = vpop.permute.xlu0 %3452
    %3454 = vrot.lane.b32.xlu0 %v3433, 64
    %v3455 = vpop.permute.xlu0 %3454
    %3456 = vrot.lane.b32.xlu0 %v3434, 64
    %v3457 = vpop.permute.xlu0 %3456
    %3458 = vrot.lane.b32.xlu0 %v3435, 64
    %v3459 = vpop.permute.xlu0 %3458
    %v3468 = vadd.f32 %v775, %v3445
    %v3469 = vadd.f32 %v776, %v3447
    %v3470 = vadd.f32 %v777, %v3449
    %v3471 = vadd.f32 %v778, %v3451
    %v3472 = vadd.f32 %v779, %v3453
    %v3473 = vadd.f32 %v780, %v3455
    %v3474 = vadd.f32 %v781, %v3457
    %v3475 = vadd.f32 %v782, %v3459
    %v3476 = vtanh.pop %v3468
    %v3477 = vtanh.pop %v3469
    %v3478 = vtanh.pop %v3470
    %v3479 = vtanh.pop %v3471
    %v3480 = vtanh.pop %v3472
    %v3481 = vtanh.pop %v3473
    %v3482 = vtanh.pop %v3474
    %v3483 = vtanh.pop %v3475
    %v3484 = vsub.f32 1.0, %v3298
    %v3485 = vsub.f32 1.0, %v3313
    %v3486 = vsub.f32 1.0, %v3328
    %v3487 = vsub.f32 1.0, %v3343
    %v3488 = vsub.f32 1.0, %v3358
    %v3489 = vsub.f32 1.0, %v3373
    %v3490 = vsub.f32 1.0, %v3388
    %v3491 = vsub.f32 1.0, %v3403
    %3500 = vrot.lane.b32.xlu0 %v3476, 96
    %v3501 = vpop.permute.xlu0 %3500
    %3502 = vrot.lane.b32.xlu0 %v3477, 96
    %v3503 = vpop.permute.xlu0 %3502
    %3504 = vrot.lane.b32.xlu0 %v3478, 96
    %v3505 = vpop.permute.xlu0 %3504
    %3506 = vrot.lane.b32.xlu0 %v3479, 96
    %v3507 = vpop.permute.xlu0 %3506
    %3508 = vrot.lane.b32.xlu0 %v3480, 96
    %v3509 = vpop.permute.xlu0 %3508
    %3510 = vrot.lane.b32.xlu0 %v3481, 96
    %v3511 = vpop.permute.xlu0 %3510
    %3512 = vrot.lane.b32.xlu0 %v3482, 96
    %v3513 = vpop.permute.xlu0 %3512
    %3514 = vrot.lane.b32.xlu0 %v3483, 96
    %v3515 = vpop.permute.xlu0 %3514
    %v3524 = vmul.f32 %v3484, %v3501
    %v3525 = vmul.f32 %v3485, %v3503
    %v3526 = vmul.f32 %v3486, %v3505
    %v3527 = vmul.f32 %v3487, %v3507
    %v3528 = vmul.f32 %v3488, %v3509
    %v3529 = vmul.f32 %v3489, %v3511
    %v3530 = vmul.f32 %v3490, %v3513
    %v3531 = vmul.f32 %v3491, %v3515
    %v3540 = vrot.slane %v3163, 7
    %v3541 = vrot.slane %v3164, 7
    %v3542 = vrot.slane %v3165, 7
    %v3543 = vrot.slane %v3166, 7
    %v3544 = vrot.slane %v3167, 7
    %v3545 = vrot.slane %v3168, 7
    %v3546 = vrot.slane %v3169, 7
    %v3547 = vrot.slane %v3170, 7
    %v3556 = vmul.f32 %v3298, %v3540
    %v3557 = vmul.f32 %v3313, %v3541
    %v3558 = vmul.f32 %v3328, %v3542
    %v3559 = vmul.f32 %v3343, %v3543
    %v3560 = vmul.f32 %v3358, %v3544
    %v3561 = vmul.f32 %v3373, %v3545
    %v3562 = vmul.f32 %v3388, %v3546
    %v3563 = vmul.f32 %v3403, %v3547
    %v3564 = vadd.f32 %v3524, %v3556
    %v3565 = vadd.f32 %v3525, %v3557
    %v3566 = vadd.f32 %v3526, %v3558
    %v3567 = vadd.f32 %v3527, %v3559
    %v3568 = vadd.f32 %v3528, %v3560
    %v3569 = vadd.f32 %v3529, %v3561
    %v3570 = vadd.f32 %v3530, %v3562
    %v3571 = vadd.f32 %v3531, %v3563
    %v3572 = vpack.c.bf16 %v3564, %v3564
    %v3573 = vpack.c.bf16 %v3565, %v3565
    %v3574 = vpack.c.bf16 %v3566, %v3566
    %v3575 = vpack.c.bf16 %v3567, %v3567
    %v3576 = vpack.c.bf16 %v3568, %v3568
    %v3577 = vpack.c.bf16 %v3569, %v3569
    %v3578 = vpack.c.bf16 %v3570, %v3570
    %v3579 = vpack.c.bf16 %v3571, %v3571
    %v3588 = vunpack.c.l.b16 %v3572
    %v3589 = vunpack.c.l.b16 %v3573
    %v3590 = vunpack.c.l.b16 %v3574
    %v3591 = vunpack.c.l.b16 %v3575
    %v3592 = vunpack.c.l.b16 %v3576
    %v3593 = vunpack.c.l.b16 %v3577
    %v3594 = vunpack.c.l.b16 %v3578
    %v3595 = vunpack.c.l.b16 %v3579
    %v3596 = vrot.slane %v3588, 6
    %v3597 = vrot.slane %v3589, 5
    %v3598 = vsel %vm357, %v3597, %v3596
    %v3599 = vrot.slane %v3590, 4
    %v3600 = vsel %vm359, %v3599, %v3598
    %v3601 = vrot.slane %v3591, 3
    %v3602 = vsel %vm361, %v3601, %v3600
    %v3603 = vrot.slane %v3592, 2
    %v3604 = vsel %vm363, %v3603, %v3602
    %v3605 = vrot.slane %v3593, 1
    %v3606 = vsel %vm365, %v3605, %v3604
    %v3607 = vsel %vm367, %v3594, %v3606
    %v3608 = vrot.slane %v3595, 7
    %v3609 = vsel %vm369, %v3608, %v3607
    %v3610 = vpack.c.b16 %v3609, %v3609
    %3611 = vrot.lane.b32.xlu0 %v3610, 96
    %v3612 = vpop.permute.xlu0 %3611
    %v3614 = vsel %vm797, %v3612, 0
    %3616 = vmatpush.bf16.msra.mxu0 0
    %3617 = vmatpush.bf16.msra.mxu0 0
    %3618 = vmatpush.bf16.msra.mxu0 0
    %3619 = vmatpush.bf16.msra.mxu0 0
    %3620 = vmatpush.bf16.msra.mxu0 0
    %3621 = vmatpush.bf16.msra.mxu0 0
    %3622 = vmatpush.bf16.msra.mxu0 %v794
    %3623 = vmatpush.bf16.msra.mxu0 %v793
    %3624 = vmatmul.bf16.gmra.mxu0 %v3614
    %v3625 = vpop.f32.mrf.mxu0
    %v3626 = vadd.f32 %v784, %v3625
    %v3627 = vpop.f32.mrf.mxu0
    %3628 = vdwg.mxu0
    %v3630 = vrot.slane %v3626, 1
    %v3631 = vrot.slane %v3626, 2
    %v3632 = vrot.slane %v3626, 3
    %v3633 = vrot.slane %v3626, 4
    %v3634 = vrot.slane %v3626, 5
    %v3635 = vrot.slane %v3626, 6
    %v3636 = vrot.slane %v3626, 7
    %v3645 = vadd.f32 %v775, %v3630
    %v3646 = vadd.f32 %v776, %v3631
    %v3647 = vadd.f32 %v777, %v3632
    %v3648 = vadd.f32 %v778, %v3633
    %v3649 = vadd.f32 %v779, %v3634
    %v3650 = vadd.f32 %v780, %v3635
    %v3651 = vadd.f32 %v781, %v3636
    %v3652 = vadd.f32 %v782, %v3626
    %v3653 = vxor.u32 %v3645, 2147483648
    %v3654 = vxor.u32 %v3646, 2147483648
    %v3655 = vxor.u32 %v3647, 2147483648
    %v3656 = vxor.u32 %v3648, 2147483648
    %v3657 = vxor.u32 %v3649, 2147483648
    %v3658 = vxor.u32 %v3650, 2147483648
    %v3659 = vxor.u32 %v3651, 2147483648
    %v3660 = vxor.u32 %v3652, 2147483648
    %v3661 = vmul.f32 %v3653, 1.442695
    %v3662 = vpow.pop %v3661
    %v3663 = vmul.f32 %v3654, 1.442695
    %v3664 = vpow.pop %v3663
    %v3665 = vmul.f32 %v3655, 1.442695
    %v3666 = vpow.pop %v3665
    %v3667 = vmul.f32 %v3656, 1.442695
    %v3668 = vpow.pop %v3667
    %v3669 = vmul.f32 %v3657, 1.442695
    %v3670 = vpow.pop %v3669
    %v3671 = vmul.f32 %v3658, 1.442695
    %v3672 = vpow.pop %v3671
    %v3673 = vmul.f32 %v3659, 1.442695
    %v3674 = vpow.pop %v3673
    %v3675 = vmul.f32 %v3660, 1.442695
    %v3676 = vpow.pop %v3675
    %v3677 = vadd.f32 %v3662, 1.0
    %v3678 = vadd.f32 %v3664, 1.0
    %v3679 = vadd.f32 %v3666, 1.0
    %v3680 = vadd.f32 %v3668, 1.0
    %v3681 = vadd.f32 %v3670, 1.0
    %v3682 = vadd.f32 %v3672, 1.0
    %v3683 = vadd.f32 %v3674, 1.0
    %v3684 = vadd.f32 %v3676, 1.0
    %v3685 = vrcp.pop %v3677
    %v3686 = vmul.f32 %v3677, %v3685
    %v3687 = vsub.f32 1.0, %v3686
    %v3688 = vmul.f32 %v3685, %v3687
    %v3689 = vadd.f32 %v3685, %v3688
    %vm3690 = vweird.f32 %v3677
    %vm3691 = vweird.f32 %v3685
    %vm3692 = vmor %vm3690, %vm3691
    %v3693 = vsel %vm3692, %v3685, %v3689
    %v3694 = vand.u32 2147483647, %v3677
    %vm3695 = vcmp.eq.f32.partialorder %v3694, 8.507059e+37
    %v3696 = vand.u32 %v3677, 2147483648
    %v3697 = vor.u32 1.1754944e-38, %v3696
    %v3698 = vsel %vm3695, %v3697, %v3693
    %v3699 = vmul.f32 1.0, %v3698
    %v3700 = vrcp.pop %v3678
    %v3701 = vmul.f32 %v3678, %v3700
    %v3702 = vsub.f32 1.0, %v3701
    %v3703 = vmul.f32 %v3700, %v3702
    %v3704 = vadd.f32 %v3700, %v3703
    %vm3705 = vweird.f32 %v3678
    %vm3706 = vweird.f32 %v3700
    %vm3707 = vmor %vm3705, %vm3706
    %v3708 = vsel %vm3707, %v3700, %v3704
    %v3709 = vand.u32 2147483647, %v3678
    %vm3710 = vcmp.eq.f32.partialorder %v3709, 8.507059e+37
    %v3711 = vand.u32 %v3678, 2147483648
    %v3712 = vor.u32 1.1754944e-38, %v3711
    %v3713 = vsel %vm3710, %v3712, %v3708
    %v3714 = vmul.f32 1.0, %v3713
    %v3715 = vrcp.pop %v3679
    %v3716 = vmul.f32 %v3679, %v3715
    %v3717 = vsub.f32 1.0, %v3716
    %v3718 = vmul.f32 %v3715, %v3717
    %v3719 = vadd.f32 %v3715, %v3718
    %vm3720 = vweird.f32 %v3679
    %vm3721 = vweird.f32 %v3715
    %vm3722 = vmor %vm3720, %vm3721
    %v3723 = vsel %vm3722, %v3715, %v3719
    %v3724 = vand.u32 2147483647, %v3679
    %vm3725 = vcmp.eq.f32.partialorder %v3724, 8.507059e+37
    %v3726 = vand.u32 %v3679, 2147483648
    %v3727 = vor.u32 1.1754944e-38, %v3726
    %v3728 = vsel %vm3725, %v3727, %v3723
    %v3729 = vmul.f32 1.0, %v3728
    %v3730 = vrcp.pop %v3680
    %v3731 = vmul.f32 %v3680, %v3730
    %v3732 = vsub.f32 1.0, %v3731
    %v3733 = vmul.f32 %v3730, %v3732
    %v3734 = vadd.f32 %v3730, %v3733
    %vm3735 = vweird.f32 %v3680
    %vm3736 = vweird.f32 %v3730
    %vm3737 = vmor %vm3735, %vm3736
    %v3738 = vsel %vm3737, %v3730, %v3734
    %v3739 = vand.u32 2147483647, %v3680
    %vm3740 = vcmp.eq.f32.partialorder %v3739, 8.507059e+37
    %v3741 = vand.u32 %v3680, 2147483648
    %v3742 = vor.u32 1.1754944e-38, %v3741
    %v3743 = vsel %vm3740, %v3742, %v3738
    %v3744 = vmul.f32 1.0, %v3743
    %v3745 = vrcp.pop %v3681
    %v3746 = vmul.f32 %v3681, %v3745
    %v3747 = vsub.f32 1.0, %v3746
    %v3748 = vmul.f32 %v3745, %v3747
    %v3749 = vadd.f32 %v3745, %v3748
    %vm3750 = vweird.f32 %v3681
    %vm3751 = vweird.f32 %v3745
    %vm3752 = vmor %vm3750, %vm3751
    %v3753 = vsel %vm3752, %v3745, %v3749
    %v3754 = vand.u32 2147483647, %v3681
    %vm3755 = vcmp.eq.f32.partialorder %v3754, 8.507059e+37
    %v3756 = vand.u32 %v3681, 2147483648
    %v3757 = vor.u32 1.1754944e-38, %v3756
    %v3758 = vsel %vm3755, %v3757, %v3753
    %v3759 = vmul.f32 1.0, %v3758
    %v3760 = vrcp.pop %v3682
    %v3761 = vmul.f32 %v3682, %v3760
    %v3762 = vsub.f32 1.0, %v3761
    %v3763 = vmul.f32 %v3760, %v3762
    %v3764 = vadd.f32 %v3760, %v3763
    %vm3765 = vweird.f32 %v3682
    %vm3766 = vweird.f32 %v3760
    %vm3767 = vmor %vm3765, %vm3766
    %v3768 = vsel %vm3767, %v3760, %v3764
    %v3769 = vand.u32 2147483647, %v3682
    %vm3770 = vcmp.eq.f32.partialorder %v3769, 8.507059e+37
    %v3771 = vand.u32 %v3682, 2147483648
    %v3772 = vor.u32 1.1754944e-38, %v3771
    %v3773 = vsel %vm3770, %v3772, %v3768
    %v3774 = vmul.f32 1.0, %v3773
    %v3775 = vrcp.pop %v3683
    %v3776 = vmul.f32 %v3683, %v3775
    %v3777 = vsub.f32 1.0, %v3776
    %v3778 = vmul.f32 %v3775, %v3777
    %v3779 = vadd.f32 %v3775, %v3778
    %vm3780 = vweird.f32 %v3683
    %vm3781 = vweird.f32 %v3775
    %vm3782 = vmor %vm3780, %vm3781
    %v3783 = vsel %vm3782, %v3775, %v3779
    %v3784 = vand.u32 2147483647, %v3683
    %vm3785 = vcmp.eq.f32.partialorder %v3784, 8.507059e+37
    %v3786 = vand.u32 %v3683, 2147483648
    %v3787 = vor.u32 1.1754944e-38, %v3786
    %v3788 = vsel %vm3785, %v3787, %v3783
    %v3789 = vmul.f32 1.0, %v3788
    %v3790 = vrcp.pop %v3684
    %v3791 = vmul.f32 %v3684, %v3790
    %v3792 = vsub.f32 1.0, %v3791
    %v3793 = vmul.f32 %v3790, %v3792
    %v3794 = vadd.f32 %v3790, %v3793
    %vm3795 = vweird.f32 %v3684
    %vm3796 = vweird.f32 %v3790
    %vm3797 = vmor %vm3795, %vm3796
    %v3798 = vsel %vm3797, %v3790, %v3794
    %v3799 = vand.u32 2147483647, %v3684
    %vm3800 = vcmp.eq.f32.partialorder %v3799, 8.507059e+37
    %v3801 = vand.u32 %v3684, 2147483648
    %v3802 = vor.u32 1.1754944e-38, %v3801
    %v3803 = vsel %vm3800, %v3802, %v3798
    %v3804 = vmul.f32 1.0, %v3803
    %3805 = vrot.lane.b32.xlu0 %v3630, 64
    %v3806 = vpop.permute.xlu0 %3805
    %3807 = vrot.lane.b32.xlu0 %v3631, 64
    %v3808 = vpop.permute.xlu0 %3807
    %3809 = vrot.lane.b32.xlu0 %v3632, 64
    %v3810 = vpop.permute.xlu0 %3809
    %3811 = vrot.lane.b32.xlu0 %v3633, 64
    %v3812 = vpop.permute.xlu0 %3811
    %3813 = vrot.lane.b32.xlu0 %v3634, 64
    %v3814 = vpop.permute.xlu0 %3813
    %3815 = vrot.lane.b32.xlu0 %v3635, 64
    %v3816 = vpop.permute.xlu0 %3815
    %3817 = vrot.lane.b32.xlu0 %v3636, 64
    %v3818 = vpop.permute.xlu0 %3817
    %3819 = vrot.lane.b32.xlu0 %v3626, 64
    %v3820 = vpop.permute.xlu0 %3819
    %v3829 = vmul.f32 %v3699, %v3806
    %v3830 = vmul.f32 %v3714, %v3808
    %v3831 = vmul.f32 %v3729, %v3810
    %v3832 = vmul.f32 %v3744, %v3812
    %v3833 = vmul.f32 %v3759, %v3814
    %v3834 = vmul.f32 %v3774, %v3816
    %v3835 = vmul.f32 %v3789, %v3818
    %v3836 = vmul.f32 %v3804, %v3820
    %3845 = vrot.lane.b32.xlu0 %v3829, 64
    %v3846 = vpop.permute.xlu0 %3845
    %3847 = vrot.lane.b32.xlu0 %v3830, 64
    %v3848 = vpop.permute.xlu0 %3847
    %3849 = vrot.lane.b32.xlu0 %v3831, 64
    %v3850 = vpop.permute.xlu0 %3849
    %3851 = vrot.lane.b32.xlu0 %v3832, 64
    %v3852 = vpop.permute.xlu0 %3851
    %3853 = vrot.lane.b32.xlu0 %v3833, 64
    %v3854 = vpop.permute.xlu0 %3853
    %3855 = vrot.lane.b32.xlu0 %v3834, 64
    %v3856 = vpop.permute.xlu0 %3855
    %3857 = vrot.lane.b32.xlu0 %v3835, 64
    %v3858 = vpop.permute.xlu0 %3857
    %3859 = vrot.lane.b32.xlu0 %v3836, 64
    %v3860 = vpop.permute.xlu0 %3859
    %v3869 = vadd.f32 %v775, %v3846
    %v3870 = vadd.f32 %v776, %v3848
    %v3871 = vadd.f32 %v777, %v3850
    %v3872 = vadd.f32 %v778, %v3852
    %v3873 = vadd.f32 %v779, %v3854
    %v3874 = vadd.f32 %v780, %v3856
    %v3875 = vadd.f32 %v781, %v3858
    %v3876 = vadd.f32 %v782, %v3860
    %v3877 = vtanh.pop %v3869
    %v3878 = vtanh.pop %v3870
    %v3879 = vtanh.pop %v3871
    %v3880 = vtanh.pop %v3872
    %v3881 = vtanh.pop %v3873
    %v3882 = vtanh.pop %v3874
    %v3883 = vtanh.pop %v3875
    %v3884 = vtanh.pop %v3876
    %v3885 = vsub.f32 1.0, %v3699
    %v3886 = vsub.f32 1.0, %v3714
    %v3887 = vsub.f32 1.0, %v3729
    %v3888 = vsub.f32 1.0, %v3744
    %v3889 = vsub.f32 1.0, %v3759
    %v3890 = vsub.f32 1.0, %v3774
    %v3891 = vsub.f32 1.0, %v3789
    %v3892 = vsub.f32 1.0, %v3804
    %3901 = vrot.lane.b32.xlu0 %v3877, 96
    %v3902 = vpop.permute.xlu0 %3901
    %3903 = vrot.lane.b32.xlu0 %v3878, 96
    %v3904 = vpop.permute.xlu0 %3903
    %3905 = vrot.lane.b32.xlu0 %v3879, 96
    %v3906 = vpop.permute.xlu0 %3905
    %3907 = vrot.lane.b32.xlu0 %v3880, 96
    %v3908 = vpop.permute.xlu0 %3907
    %3909 = vrot.lane.b32.xlu0 %v3881, 96
    %v3910 = vpop.permute.xlu0 %3909
    %3911 = vrot.lane.b32.xlu0 %v3882, 96
    %v3912 = vpop.permute.xlu0 %3911
    %3913 = vrot.lane.b32.xlu0 %v3883, 96
    %v3914 = vpop.permute.xlu0 %3913
    %3915 = vrot.lane.b32.xlu0 %v3884, 96
    %v3916 = vpop.permute.xlu0 %3915
    %v3925 = vmul.f32 %v3885, %v3902
    %v3926 = vmul.f32 %v3886, %v3904
    %v3927 = vmul.f32 %v3887, %v3906
    %v3928 = vmul.f32 %v3888, %v3908
    %v3929 = vmul.f32 %v3889, %v3910
    %v3930 = vmul.f32 %v3890, %v3912
    %v3931 = vmul.f32 %v3891, %v3914
    %v3932 = vmul.f32 %v3892, %v3916
    %v3941 = vrot.slane %v3564, 7
    %v3942 = vrot.slane %v3565, 7
    %v3943 = vrot.slane %v3566, 7
    %v3944 = vrot.slane %v3567, 7
    %v3945 = vrot.slane %v3568, 7
    %v3946 = vrot.slane %v3569, 7
    %v3947 = vrot.slane %v3570, 7
    %v3948 = vrot.slane %v3571, 7
    %v3957 = vmul.f32 %v3699, %v3941
    %v3958 = vmul.f32 %v3714, %v3942
    %v3959 = vmul.f32 %v3729, %v3943
    %v3960 = vmul.f32 %v3744, %v3944
    %v3961 = vmul.f32 %v3759, %v3945
    %v3962 = vmul.f32 %v3774, %v3946
    %v3963 = vmul.f32 %v3789, %v3947
    %v3964 = vmul.f32 %v3804, %v3948
    %v3965 = vadd.f32 %v3925, %v3957
    %v3966 = vadd.f32 %v3926, %v3958
    %v3967 = vadd.f32 %v3927, %v3959
    %v3968 = vadd.f32 %v3928, %v3960
    %v3969 = vadd.f32 %v3929, %v3961
    %v3970 = vadd.f32 %v3930, %v3962
    %v3971 = vadd.f32 %v3931, %v3963
    %v3972 = vadd.f32 %v3932, %v3964
    %v3973 = vpack.c.bf16 %v3965, %v3965
    %v3974 = vpack.c.bf16 %v3966, %v3966
    %v3975 = vpack.c.bf16 %v3967, %v3967
    %v3976 = vpack.c.bf16 %v3968, %v3968
    %v3977 = vpack.c.bf16 %v3969, %v3969
    %v3978 = vpack.c.bf16 %v3970, %v3970
    %v3979 = vpack.c.bf16 %v3971, %v3971
    %v3980 = vpack.c.bf16 %v3972, %v3972
    %v3981 = vld [vmem:[#allocation13] sm:$0xf]
    %v3982 = vld [vmem:[#allocation13 + $0x4] sm:$0xf]
    %v3983 = vld [vmem:[#allocation13 + $0x8] sm:$0xf]
    %v3984 = vld [vmem:[#allocation13 + $0xc] sm:$0xf]
    %v3985 = vld [vmem:[%s7 + $0x3] sm:$0x1]
    %v3986 = vperm.slane %v3985, 0
    %v3995 = vunpack.c.l.b16 %v3973
    %v3996 = vunpack.c.l.b16 %v3974
    %v3997 = vunpack.c.l.b16 %v3975
    %v3998 = vunpack.c.l.b16 %v3976
    %v3999 = vunpack.c.l.b16 %v3977
    %v4000 = vunpack.c.l.b16 %v3978
    %v4001 = vunpack.c.l.b16 %v3979
    %v4002 = vunpack.c.l.b16 %v3980
    %v4003 = vrot.slane %v3995, 7
    %v4004 = vrot.slane %v3996, 6
    %v4005 = vsel %vm357, %v4004, %v4003
    %v4006 = vrot.slane %v3997, 5
    %v4007 = vsel %vm359, %v4006, %v4005
    %v4008 = vrot.slane %v3998, 4
    %v4009 = vsel %vm361, %v4008, %v4007
    %v4010 = vrot.slane %v3999, 3
    %v4011 = vsel %vm363, %v4010, %v4009
    %v4012 = vrot.slane %v4000, 2
    %v4013 = vsel %vm365, %v4012, %v4011
    %v4014 = vrot.slane %v4001, 1
    %v4015 = vsel %vm367, %v4014, %v4013
    %v4016 = vsel %vm369, %v4002, %v4015
    %v4017 = vpack.c.b16 %v4016, %v4016
    %4018 = vrot.lane.b32.xlu0 %v4017, 96
    %v4019 = vpop.permute.xlu0 %4018
    %v4024 = vunpack.c.l.b16 %v3981
    %v4025 = vunpack.c.l.b16 %v3982
    %v4026 = vunpack.c.l.b16 %v3983
    %v4027 = vunpack.c.l.b16 %v3984
    %v4028 = vpack.c.b16 %v4025, %v4024
    %v4029 = vpack.c.b16 %v4027, %v4026
    %v4033 = vsel %vm797, %v4019, 0
    %4035 = vmatpush.bf16.msra.mxu0 0
    %4036 = vmatpush.bf16.msra.mxu0 0
    %4037 = vmatpush.bf16.msra.mxu0 0
    %4038 = vmatpush.bf16.msra.mxu0 0
    %4039 = vmatpush.bf16.msra.mxu0 0
    %4040 = vmatpush.bf16.msra.mxu0 0
    %4041 = vmatpush.bf16.msra.mxu0 %v4029
    %4042 = vmatpush.bf16.msra.mxu0 %v4028
    %4043 = vmatmul.bf16.gmra.mxu0 %v4033
    %v4044 = vpop.f32.mrf.mxu0
    %v4045 = vadd.f32 %v3986, %v4044
    %v4046 = vpop.f32.mrf.mxu0
    %4047 = vdwg.mxu0
    %4048 = vst [vmem:[#allocation14] sm:$0xff] %v4045
    // Predicated region
    $region62: #{tpu_custom_call.1} parent=1 // pred_check
      _
    $region63: #{tpu_custom_call.1} parent=1 // pred_check_branch
      %4050 = sbr.rel (0) target = $region65
    $region64: #{tpu_custom_call.1} parent=1 // pred_region
      %4052 = vsyncadd [#allocation4], 0
      %s4054 = sshll.u32 [#allocation14], 4
      %s4055 = int_to_ptr.vmem [resolvable:$true] %s4054
      %s4056 = sshll.u32 %s8, 4
      %s4057 = int_to_ptr.hbm [resolvable:$true] %s4056
      %4059 = dma.vmem_to_hbm [thread:$0]  %s4055, 128, %s4057, [#allocation4]
    $region65: #{tpu_custom_call.1} parent=1 // pred_fallthru
      _
    // Predicated region
    $region66: #{tpu_custom_call.1} parent=1 // pred_check
      _
    $region67: #{tpu_custom_call.1} parent=1 // pred_check_branch
      %4061 = sbr.rel (0) target = $region69
    $region68: #{tpu_custom_call.1} parent=1 // pred_region
      %4063 = dma.done [#allocation4], 128
    $region69: #{tpu_custom_call.1} parent=1 // pred_fallthru
      _
    %4064 = vsyncpa [#allocation3], 1
    %4065 = vsyncpa [#allocation6], 1
    %4066 = vsyncpa [#allocation9], 1
    %4067 = vsyncpa [#allocation12], 1
    %4068 = vsyncpa [#allocation4], 1

</llo_original>
